<compile_context>
chip_gen: v7x
topology: tpu7x:2x2x1
jax: 0.10.0
libtpu: 0.0.40
codegen_flags: <defaults>
</compile_context>

<pallas_src>
import jax
import jax.numpy as jnp
from jax.experimental import pallas as pl
from jax.experimental.pallas import tpu as pltpu


# -----------------------------------------------------------------------------
# helpers
# -----------------------------------------------------------------------------
def _round_up(x, m):
    return (x + m - 1) // m * m


def _vmem_capacity_bytes():
    try:
        return int(pltpu.get_tpu_info().vmem_capacity_bytes)
    except Exception:
        return 64 << 20  # conservative fallback (v7x per-TC VMEM)


def _usable_vmem():
    # Leave headroom for Mosaic internals / other allocations.
    return max(int(_vmem_capacity_bytes() * 0.7), 24 << 20)


def _pick_tiles(n, hp, mp, fp, cs, usable, tile_rows=None, tile_k=None):
    """Choose (tm, tk): row tile and prop-K tile."""
    if tile_k is not None:
        tk = min(max(128, _round_up(int(tile_k), 128)), _round_up(mp, 128))
    else:
        tk = min(512, mp)

    # VMEM that does not scale with tm: double-buffered W_self_t, cross K-tile,
    # trans_feats (+ small bias) -- in compute dtype.
    fixed = 2 * (hp * hp + tk * hp + fp * hp) * cs + 8 * 128 * 4 + (2 << 20)
    # Per-row VMEM: embs(f32) + prop + feat_mat + new(f32), double-buffered,
    # plus the f32 accumulator and row-sum scratch.
    per_row = 2 * (hp * 4 + tk * cs + fp * cs + hp * 4) + hp * 4 + 128 * 4

    cap = max(8, (usable - fixed) // max(per_row, 1))
    cap = min(cap, 512)  # ~512 rows already near the HBM roofline

    if tile_rows is not None:
        tm = int(tile_rows)
    else:
        tm = min(cap, max(8, -(-n // 2)))  # >=2 row tiles when n permits
    tm = min(tm, _round_up(n, 8))
    if tm >= 128:
        tm = (tm // 128) * 128
    else:
        tm = max(8, _round_up(tm, 8))
    return int(tm), int(tk)


# -----------------------------------------------------------------------------
# Per-side update kernel.  Grid = (row_tiles, k_tiles); K ("arbitrary") tiles
# the prop @ cross contraction; accumulator + prop-row-sum live in f32 scratch.
#
#   acc   = embs @ W_self_t + feat_mat @ trans_feats + b          (at k == 0)
#   acc  += prop[:, k_tile] @ cross[k_tile, :]                    (every k)
#   rsum += sum(prop[:, k_tile], axis=1)                          (every k)
#   at k == last:
#     mask  = rsum > 0
#     delta = relu(acc) * mask
#     new   = embs + delta            (embs kept f32; residual precision)
#     ssq / msk partial sums emitted lane-dense per row tile
# -----------------------------------------------------------------------------
def _update_side_kernel(embs_ref, prop_ref, featm_ref, wself_ref, cross_ref,
                        tfeat_ref, b_ref, new_ref, ssq_ref, msk_ref,
                        acc_ref, rsum_ref):
    k = pl.program_id(1)
    nk = pl.num_programs(1)
    cdt = cross_ref.dtype  # compute dtype of the matmul operands

    @pl.when(k == 0)
    def _():
        acc_ref[...] = (
            jnp.dot(embs_ref[...].astype(cdt), wself_ref[...],
                    preferred_element_type=jnp.float32)
            + jnp.dot(featm_ref[...], tfeat_ref[...],
                      preferred_element_type=jnp.float32)
            + b_ref[...])
        rsum_ref[...] = jnp.zeros_like(rsum_ref)

    prop = prop_ref[...]
    acc_ref[...] += jnp.dot(prop, cross_ref[...],
                            preferred_element_type=jnp.float32)
    rsum_ref[...] += jnp.sum(prop.astype(jnp.float32), axis=1, keepdims=True)

    @pl.when(k == nk - 1)
    def _():
        mask = (rsum_ref[...] > 0.0).astype(jnp.float32)       # (tm, 1)
        delta = jnp.maximum(acc_ref[...], 0.0) * mask           # (tm, hp)
        new_ref[...] = (embs_ref[...].astype(jnp.float32)
                        + delta).astype(new_ref.dtype)
        # Lane-dense (1, 1, 128) partials -> unmasked full-lane stores.
        ssq_ref[...] = jnp.broadcast_to(jnp.sum(delta * delta), ssq_ref.shape)
        msk_ref[...] = jnp.broadcast_to(jnp.sum(mask), msk_ref.shape)


def _update_side(embs, w_self_t, b_self, cross, prop, trans_feats, feat_mat,
                 *, tile_rows=None, tile_k=None, compute_dtype=jnp.bfloat16):
    n, h = embs.shape
    m = prop.shape[1]
    nf = feat_mat.shape[1]
    cs = jnp.dtype(compute_dtype).itemsize

    # Lane-align everything to 128 (zero padding is exact for this math:
    # padded columns give zero contributions, padded rows have zero prop ->
    # mask 0 -> zero delta / zero ssq contribution).
    hp = _round_up(h, 128)
    fp = _round_up(nf, 128)
    mp = _round_up(m, 128)

    usable = _usable_vmem()
    tm, tk = _pick_tiles(n, hp, mp, fp, cs, usable, tile_rows, tile_k)
    mp2 = _round_up(mp, tk)
    n_pad = _round_up(n, tm)
    n_tiles = n_pad // tm
    k_tiles = mp2 // tk

    def pad2(a, rows, cols, dtype):
        a = jnp.pad(a, ((0, rows - a.shape[0]), (0, cols - a.shape[1])))
        return a.astype(dtype)

    embs_p = pad2(embs, n_pad, hp, jnp.float32)           # embs stay f32
    prop_p = pad2(prop, n_pad, mp2, compute_dtype)
    featm_p = pad2(feat_mat, n_pad, fp, compute_dtype)
    wself_p = pad2(w_self_t, hp, hp, compute_dtype)
    cross_p = pad2(cross, mp2, hp, compute_dtype)
    tfeat_p = pad2(trans_feats, fp, hp, compute_dtype)
    b_p = jnp.pad(b_self.astype(jnp.float32), (0, hp - h)).reshape(1, hp)

    need = (2 * tm * (hp * 4 + tk * cs + fp * cs + hp * 4)
            + 2 * (hp * hp + tk * hp + fp * hp) * cs
            + tm * (hp + 128) * 4 + (4 << 20))
    vmem_limit = int(min(max(need, 16 << 20), usable))

    out_shapes = (
        jax.ShapeDtypeStruct((n_pad, hp), embs.dtype),
        jax.ShapeDtypeStruct((n_tiles, 1, 128), jnp.float32),
        jax.ShapeDtypeStruct((n_tiles, 1, 128), jnp.float32),
    )
    new_p, ssq, msk = pl.pallas_call(
        _update_side_kernel,
        out_shape=out_shapes,
        grid=(n_tiles, k_tiles),
        in_specs=[
            pl.BlockSpec((tm, hp), lambda i, k: (i, 0)),   # embs row tile (f32)
            pl.BlockSpec((tm, tk), lambda i, k: (i, k)),   # prop row x K tile
            pl.BlockSpec((tm, fp), lambda i, k: (i, 0)),   # feat_mat row tile
            pl.BlockSpec((hp, hp), lambda i, k: (0, 0)),   # W_self_t (resident)
            pl.BlockSpec((tk, hp), lambda i, k: (k, 0)),   # cross K tile
            pl.BlockSpec((fp, hp), lambda i, k: (0, 0)),   # trans_feats (resident)
            pl.BlockSpec((1, hp), lambda i, k: (0, 0)),    # bias (resident)
        ],
        out_specs=(
            pl.BlockSpec((tm, hp), lambda i, k: (i, 0)),
            pl.BlockSpec((1, 1, 128), lambda i, k: (i, 0, 0)),
            pl.BlockSpec((1, 1, 128), lambda i, k: (i, 0, 0)),
        ),
        scratch_shapes=[
            pltpu.VMEM((tm, hp), jnp.float32),   # delta accumulator
            pltpu.VMEM((tm, 1), jnp.float32),    # prop row-sum (mask) accumulator
        ],
        compiler_params=pltpu.CompilerParams(
            dimension_semantics=("parallel", "arbitrary"),
            vmem_limit_bytes=vmem_limit,
        ),
    )(embs_p, prop_p, featm_p, wself_p, cross_p, tfeat_p, b_p)

    return new_p[:n, :h], jnp.sum(ssq[:, 0, 0]), jnp.sum(msk[:, 0, 0])


# -----------------------------------------------------------------------------
# Full UpdateUnit.forward
# -----------------------------------------------------------------------------
def update_unit_forward(params, user_embs, item_embs, feat_tuple,
                        i2u_prop_mat, u2i_prop_mat, *, tile_rows=None,
                        tile_k=None, compute_dtype=jnp.bfloat16):
    feats, feat_umat, feat_imat = feat_tuple
    cd = compute_dtype

    # Hoisted linears (tiny): computed once, left to XLA to fuse.
    cross_u = (item_embs @ params["W_iu"].T).astype(cd)                 # iu_mapping(item_embs)
    cross_i = (user_embs @ params["W_ui"].T).astype(cd)                 # ui_mapping(user_embs)
    trans_feats = (feats @ params["W_feat"].T + params["b_feat"]).astype(cd)

    new_user, ssu, msu = _update_side(
        user_embs, params["W_uu"].T, params["b_uu"], cross_u, i2u_prop_mat,
        trans_feats, feat_umat, tile_rows=tile_rows, tile_k=tile_k,
        compute_dtype=cd)
    new_item, ssi, msi = _update_side(
        item_embs, params["W_ii"].T, params["b_ii"], cross_i, u2i_prop_mat,
        trans_feats, feat_imat, tile_rows=tile_rows, tile_k=tile_k,
        compute_dtype=cd)

    # Matches the PyTorch module (divides by zero if a side has no active rows).
    delta_norm = ssu / msu + ssi / msi
    return new_user, new_item, delta_norm


# -----------------------------------------------------------------------------
# Pure-JAX reference (correctness check)
# -----------------------------------------------------------------------------
def update_unit_reference(params, user_embs, item_embs, feat_tuple,
                          i2u_prop_mat, u2i_prop_mat):
    feats, feat_umat, feat_imat = feat_tuple
    lin = lambda x, w, b=None: x @ w.T + (0.0 if b is None else b)

    delta_u = lin(user_embs, params["W_uu"], params["b_uu"]) + \
        i2u_prop_mat @ lin(item_embs, params["W_iu"])
    delta_i = lin(item_embs, params["W_ii"], params["b_ii"]) + \
        u2i_prop_mat @ lin(user_embs, params["W_ui"])
    trans_feats = lin(feats, params["W_feat"], params["b_feat"])
    delta_u = delta_u + feat_umat @ trans_feats
    delta_i = delta_i + feat_imat @ trans_feats
    delta_u = jax.nn.relu(delta_u)
    delta_i = jax.nn.relu(delta_i)
    u_mask = (jnp.sum(i2u_prop_mat, axis=1) > 0).astype(jnp.float32)
    i_mask = (jnp.sum(u2i_prop_mat, axis=1) > 0).astype(jnp.float32)
    delta_u = delta_u * u_mask[:, None]
    delta_i = delta_i * i_mask[:, None]
    new_user = user_embs + delta_u
    new_item = item_embs + delta_i
    delta_norm = (delta_u ** 2).sum() / u_mask.sum() + \
                 (delta_i ** 2).sum() / i_mask.sum()
    return new_user, new_item, delta_norm


if __name__ == "__main__":
    H = 128       # hidden_size (lane-aligned)
    FD = 32       # feat_dim
    U = 384       # num users
    I = 256       # num items
    NF = 64       # num feature rows

    key = jax.random.PRNGKey(0)
    ks = jax.random.split(key, 16)
    s = 0.05

    params = {
        "W_uu": jax.random.normal(ks[0], (H, H), jnp.float32) * s,
        "b_uu": jax.random.normal(ks[1], (H,), jnp.float32) * s,
        "W_ii": jax.random.normal(ks[2], (H, H), jnp.float32) * s,
        "b_ii": jax.random.normal(ks[3], (H,), jnp.float32) * s,
        "W_ui": jax.random.normal(ks[4], (H, H), jnp.float32) * s,
        "W_iu": jax.random.normal(ks[5], (H, H), jnp.float32) * s,
        "W_feat": jax.random.normal(ks[6], (H, FD), jnp.float32) * s,
        "b_feat": jax.random.normal(ks[7], (H,), jnp.float32) * s,
    }

    user_embs = jax.random.normal(ks[8], (U, H), jnp.float32)
    item_embs = jax.random.normal(ks[9], (I, H), jnp.float32)

    # Dense stand-ins for the sparse propagation matrices; zero out some rows
    # so the >0 row-sum masks are non-trivial.
    i2u = (jax.random.uniform(ks[10], (U, I)) > 0.7).astype(jnp.float32)
    i2u = i2u.at[:4, :].set(0.0)
    u2i = (jax.random.uniform(ks[11], (I, U)) > 0.7).astype(jnp.float32)
    u2i = u2i.at[5:9, :].set(0.0)

    feats = jax.random.normal(ks[12], (NF, FD), jnp.float32)
    feat_umat = (jax.random.uniform(ks[13], (U, NF)) > 0.5).astype(jnp.float32)
    feat_imat = (jax.random.uniform(ks[14], (I, NF)) > 0.5).astype(jnp.float32)
    feat_tuple = (feats, feat_umat, feat_imat)

    fwd = jax.jit(update_unit_forward,
                  static_argnames=("tile_rows", "tile_k", "compute_dtype"))

    ref_u, ref_i, ref_n = update_unit_reference(
        params, user_embs, item_embs, feat_tuple, i2u, u2i)

    # 1) f32 operands + K-tiling exercised (tile_k=128 -> 2-3 K steps): tight check.
    new_u, new_i, dnorm = fwd(params, user_embs, item_embs, feat_tuple,
                              i2u, u2i, tile_k=128, compute_dtype=jnp.float32)
    jax.block_until_ready((new_u, new_i, dnorm))
    assert new_u.shape == ref_u.shape and new_i.shape == ref_i.shape
    assert jnp.allclose(new_u, ref_u, atol=2e-3, rtol=2e-3)
    assert jnp.allclose(new_i, ref_i, atol=2e-3, rtol=2e-3)
    assert jnp.allclose(dnorm, ref_n, atol=2e-3, rtol=2e-3)

    # 2) default bf16 matmul operands (f32 accumulate, f32 embs/residual): loose check.
    new_ub, new_ib, dnorm_b = fwd(params, user_embs, item_embs, feat_tuple,
                                  i2u, u2i)
    jax.block_until_ready((new_ub, new_ib, dnorm_b))
    assert jnp.allclose(new_ub, ref_u, atol=1e-1, rtol=3e-2)
    assert jnp.allclose(new_ib, ref_i, atol=1e-1, rtol=3e-2)
    assert jnp.allclose(dnorm_b, ref_n, rtol=5e-2)

    print("KERNEL_OK")
</pallas_src>

<mosaic_0001>
module attributes {stable_mosaic.version = 11 : i64} {
  func.func @_update_side_kernel(%arg0: i32, %arg1: i32, %arg2: memref<128x128xf32, #tpu.memory_space<vmem>>, %arg3: memref<128x128xf32, #tpu.memory_space<vmem>>, %arg4: memref<128x128xf32, #tpu.memory_space<vmem>>, %arg5: memref<128x128xf32, #tpu.memory_space<vmem>>, %arg6: memref<128x128xf32, #tpu.memory_space<vmem>>, %arg7: memref<128x128xf32, #tpu.memory_space<vmem>>, %arg8: memref<1x128xf32, #tpu.memory_space<vmem>>, %arg9: memref<128x128xf32, #tpu.memory_space<vmem>>, %arg10: memref<1x1x128xf32, #tpu.memory_space<vmem>>, %arg11: memref<1x1x128xf32, #tpu.memory_space<vmem>>, %arg12: memref<128x128xf32, #tpu.memory_space<vmem>>, %arg13: memref<128x1xf32, #tpu.memory_space<vmem>>) attributes {dimension_semantics = [#tpu.dimension_semantics<parallel>, #tpu.dimension_semantics<arbitrary>], iteration_bounds = array<i64: 2, 3>, scalar_prefetch = 0 : i64, scratch_operands = 2 : i64, tpu.core_type = #tpu.core_type<tc>, window_params = [{transform_indices = @transform_0, window_bounds = array<i64: 128, 128>}, {transform_indices = @transform_1, window_bounds = array<i64: 128, 128>}, {transform_indices = @transform_2, window_bounds = array<i64: 128, 128>}, {pipeline_mode = #tpu.pipeline_mode<synchronous>, transform_indices = @transform_3, window_bounds = array<i64: 128, 128>}, {transform_indices = @transform_4, window_bounds = array<i64: 128, 128>}, {pipeline_mode = #tpu.pipeline_mode<synchronous>, transform_indices = @transform_5, window_bounds = array<i64: 128, 128>}, {pipeline_mode = #tpu.pipeline_mode<synchronous>, transform_indices = @transform_6, window_bounds = array<i64: 1, 128>}, {transform_indices = @transform_7, window_bounds = array<i64: 128, 128>}, {transform_indices = @transform_8, window_bounds = array<i64: 1, 1, 128>}, {transform_indices = @transform_9, window_bounds = array<i64: 1, 1, 128>}]} {
    %c0_i32 = arith.constant 0 : i32
    %0 = arith.cmpi eq, %arg1, %c0_i32 : i32
    %1 = arith.extui %0 : i1 to i32
    %c0_i32_0 = arith.constant 0 : i32
    %2 = arith.cmpi ne, %1, %c0_i32_0 : i32
    scf.if %2 {
      %c0_14 = arith.constant 0 : index
      %c0_15 = arith.constant 0 : index
      %17 = vector.load %arg2[%c0_14, %c0_15] : memref<128x128xf32, #tpu.memory_space<vmem>>, vector<128x128xf32>
      %c0_16 = arith.constant 0 : index
      %c0_17 = arith.constant 0 : index
      %18 = vector.load %arg5[%c0_16, %c0_17] : memref<128x128xf32, #tpu.memory_space<vmem>>, vector<128x128xf32>
      %cst_18 = arith.constant dense<0.000000e+00> : vector<128x128xf32>
      %19 = tpu.matmul %17, %18, %cst_18 {dimension_numbers = #tpu.dot_dimension_numbers<[1], [0], [0], [1], [0, 0, 1, 1], [], []>} : vector<128x128xf32>, vector<128x128xf32>, vector<128x128xf32> -> vector<128x128xf32>
      %c0_19 = arith.constant 0 : index
      %c0_20 = arith.constant 0 : index
      %20 = vector.load %arg4[%c0_19, %c0_20] : memref<128x128xf32, #tpu.memory_space<vmem>>, vector<128x128xf32>
      %c0_21 = arith.constant 0 : index
      %c0_22 = arith.constant 0 : index
      %21 = vector.load %arg7[%c0_21, %c0_22] : memref<128x128xf32, #tpu.memory_space<vmem>>, vector<128x128xf32>
      %cst_23 = arith.constant dense<0.000000e+00> : vector<128x128xf32>
      %22 = tpu.matmul %20, %21, %cst_23 {dimension_numbers = #tpu.dot_dimension_numbers<[1], [0], [0], [1], [0, 0, 1, 1], [], []>} : vector<128x128xf32>, vector<128x128xf32>, vector<128x128xf32> -> vector<128x128xf32>
      %23 = arith.addf %19, %22 : vector<128x128xf32>
      %c0_24 = arith.constant 0 : index
      %c0_25 = arith.constant 0 : index
      %24 = vector.load %arg8[%c0_24, %c0_25] : memref<1x128xf32, #tpu.memory_space<vmem>>, vector<1x128xf32>
      %25 = vector.broadcast %24 : vector<1x128xf32> to vector<128x128xf32>
      %26 = arith.addf %23, %25 : vector<128x128xf32>
      %c0_26 = arith.constant 0 : index
      %c0_27 = arith.constant 0 : index
      %27 = vector.load %arg12[%c0_26, %c0_27] : memref<128x128xf32, #tpu.memory_space<vmem>>, vector<128x128xf32>
      tpu.vector_store %arg12[%c0_26, %c0_27], %26 {strides = array<i32>} : memref<128x128xf32, #tpu.memory_space<vmem>>, vector<128x128xf32>,
      %cst_28 = arith.constant 0.000000e+00 : f32
      %28 = vector.broadcast %cst_28 : f32 to vector<128x1xf32>
      %c0_29 = arith.constant 0 : index
      %c0_30 = arith.constant 0 : index
      %29 = vector.load %arg13[%c0_29, %c0_30] : memref<128x1xf32, #tpu.memory_space<vmem>>, vector<128x1xf32>
      tpu.vector_store %arg13[%c0_29, %c0_30], %28 {strides = array<i32>} : memref<128x1xf32, #tpu.memory_space<vmem>>, vector<128x1xf32>,
    } else {
    }
    %c0 = arith.constant 0 : index
    %c0_1 = arith.constant 0 : index
    %3 = vector.load %arg3[%c0, %c0_1] : memref<128x128xf32, #tpu.memory_space<vmem>>, vector<128x128xf32>
    %c0_2 = arith.constant 0 : index
    %c0_3 = arith.constant 0 : index
    %4 = vector.load %arg12[%c0_2, %c0_3] : memref<128x128xf32, #tpu.memory_space<vmem>>, vector<128x128xf32>
    %c0_4 = arith.constant 0 : index
    %c0_5 = arith.constant 0 : index
    %5 = vector.load %arg6[%c0_4, %c0_5] : memref<128x128xf32, #tpu.memory_space<vmem>>, vector<128x128xf32>
    %cst = arith.constant dense<0.000000e+00> : vector<128x128xf32>
    %6 = tpu.matmul %3, %5, %cst {dimension_numbers = #tpu.dot_dimension_numbers<[1], [0], [0], [1], [0, 0, 1, 1], [], []>} : vector<128x128xf32>, vector<128x128xf32>, vector<128x128xf32> -> vector<128x128xf32>
    %7 = arith.addf %4, %6 : vector<128x128xf32>
    %c0_6 = arith.constant 0 : index
    %c0_7 = arith.constant 0 : index
    %8 = vector.load %arg12[%c0_6, %c0_7] : memref<128x128xf32, #tpu.memory_space<vmem>>, vector<128x128xf32>
    tpu.vector_store %arg12[%c0_6, %c0_7], %7 {strides = array<i32>} : memref<128x128xf32, #tpu.memory_space<vmem>>, vector<128x128xf32>,
    %c0_8 = arith.constant 0 : index
    %c0_9 = arith.constant 0 : index
    %9 = vector.load %arg13[%c0_8, %c0_9] : memref<128x1xf32, #tpu.memory_space<vmem>>, vector<128x1xf32>
    %cst_10 = arith.constant dense<0.000000e+00> : vector<128xf32>
    %10 = vector.multi_reduction <add>, %3, %cst_10 [1] : vector<128x128xf32> to vector<128xf32>
    %11 = vector.shape_cast %10 : vector<128xf32> to vector<128x1xf32>
    %12 = arith.addf %9, %11 : vector<128x1xf32>
    %c0_11 = arith.constant 0 : index
    %c0_12 = arith.constant 0 : index
    %13 = vector.load %arg13[%c0_11, %c0_12] : memref<128x1xf32, #tpu.memory_space<vmem>>, vector<128x1xf32>
    tpu.vector_store %arg13[%c0_11, %c0_12], %12 {strides = array<i32>} : memref<128x1xf32, #tpu.memory_space<vmem>>, vector<128x1xf32>,
    %c2_i32 = arith.constant 2 : i32
    %14 = arith.cmpi eq, %arg1, %c2_i32 : i32
    %15 = arith.extui %14 : i1 to i32
    %c0_i32_13 = arith.constant 0 : i32
    %16 = arith.cmpi ne, %15, %c0_i32_13 : i32
    scf.if %16 {
      %c0_14 = arith.constant 0 : index
      %c0_15 = arith.constant 0 : index
      %17 = vector.load %arg13[%c0_14, %c0_15] : memref<128x1xf32, #tpu.memory_space<vmem>>, vector<128x1xf32>
      %cst_16 = arith.constant 0.000000e+00 : f32
      %18 = vector.broadcast %cst_16 : f32 to vector<128x1xf32>
      %19 = arith.cmpf ogt, %17, %18 : vector<128x1xf32>
      %20 = arith.extui %19 : vector<128x1xi1> to vector<128x1xi32>
      %21 = arith.sitofp %20 : vector<128x1xi32> to vector<128x1xf32>
      %c0_17 = arith.constant 0 : index
      %c0_18 = arith.constant 0 : index
      %22 = vector.load %arg12[%c0_17, %c0_18] : memref<128x128xf32, #tpu.memory_space<vmem>>, vector<128x128xf32>
      %cst_19 = arith.constant 0.000000e+00 : f32
      %23 = vector.broadcast %cst_19 : f32 to vector<128x128xf32>
      %24 = arith.maximumf %22, %23 : vector<128x128xf32>
      %25 = vector.broadcast %21 : vector<128x1xf32> to vector<128x128xf32>
      %26 = arith.mulf %24, %25 : vector<128x128xf32>
      %c0_20 = arith.constant 0 : index
      %c0_21 = arith.constant 0 : index
      %27 = vector.load %arg2[%c0_20, %c0_21] : memref<128x128xf32, #tpu.memory_space<vmem>>, vector<128x128xf32>
      %28 = arith.addf %27, %26 : vector<128x128xf32>
      %c0_22 = arith.constant 0 : index
      %c0_23 = arith.constant 0 : index
      %29 = vector.load %arg9[%c0_22, %c0_23] : memref<128x128xf32, #tpu.memory_space<vmem>>, vector<128x128xf32>
      tpu.vector_store %arg9[%c0_22, %c0_23], %28 {strides = array<i32>} : memref<128x128xf32, #tpu.memory_space<vmem>>, vector<128x128xf32>,
      %30 = arith.mulf %26, %26 : vector<128x128xf32>
      %31 = vector.shape_cast %30 : vector<128x128xf32> to vector<1x128x128xf32>
      %cst_24 = arith.constant dense<0.000000e+00> : vector<1xf32>
      %32 = vector.multi_reduction <add>, %31, %cst_24 [1, 2] : vector<1x128x128xf32> to vector<1xf32>
      %33 = vector.shape_cast %32 : vector<1xf32> to vector<1x1x1xf32>
      %34 = vector.extract %33[0, 0, 0] : f32 from vector<1x1x1xf32>
      %35 = vector.broadcast %34 : f32 to vector<1x1x128xf32>
      %c0_25 = arith.constant 0 : index
      %c0_26 = arith.constant 0 : index
      %c0_27 = arith.constant 0 : index
      %36 = vector.load %arg10[%c0_25, %c0_26, %c0_27] : memref<1x1x128xf32, #tpu.memory_space<vmem>>, vector<1x1x128xf32>
      tpu.vector_store %arg10[%c0_25, %c0_26, %c0_27], %35 {strides = array<i32>} : memref<1x1x128xf32, #tpu.memory_space<vmem>>, vector<1x1x128xf32>,
      %37 = vector.shape_cast %21 : vector<128x1xf32> to vector<1x128x1xf32>
      %cst_28 = arith.constant dense<0.000000e+00> : vector<1xf32>
      %38 = vector.multi_reduction <add>, %37, %cst_28 [1, 2] : vector<1x128x1xf32> to vector<1xf32>
      %39 = vector.shape_cast %38 : vector<1xf32> to vector<1x1x1xf32>
      %40 = vector.extract %39[0, 0, 0] : f32 from vector<1x1x1xf32>
      %41 = vector.broadcast %40 : f32 to vector<1x1x128xf32>
      %c0_29 = arith.constant 0 : index
      %c0_30 = arith.constant 0 : index
      %c0_31 = arith.constant 0 : index
      %42 = vector.load %arg11[%c0_29, %c0_30, %c0_31] : memref<1x1x128xf32, #tpu.memory_space<vmem>>, vector<1x1x128xf32>
      tpu.vector_store %arg11[%c0_29, %c0_30, %c0_31], %41 {strides = array<i32>} : memref<1x1x128xf32, #tpu.memory_space<vmem>>, vector<1x1x128xf32>,
    } else {
    }
    return
  }
  func.func @transform_0(%arg0: i32, %arg1: i32) -> (i32, i32) {
    %c0_i32 = arith.constant 0 : i32
    %c0_i32_0 = arith.constant 0 : i32
    return %arg0, %c0_i32 : i32, i32
  }
  func.func @transform_1(%arg0: i32, %arg1: i32) -> (i32, i32) {
    %c0_i32 = arith.constant 0 : i32
    return %arg0, %arg1 : i32, i32
  }
  func.func @transform_2(%arg0: i32, %arg1: i32) -> (i32, i32) {
    %c0_i32 = arith.constant 0 : i32
    %c0_i32_0 = arith.constant 0 : i32
    return %arg0, %c0_i32 : i32, i32
  }
  func.func @transform_3(%arg0: i32, %arg1: i32) -> (i32, i32) {
    %c0_i32 = arith.constant 0 : i32
    %c0_i32_0 = arith.constant 0 : i32
    %c0_i32_1 = arith.constant 0 : i32
    return %c0_i32, %c0_i32_0 : i32, i32
  }
  func.func @transform_4(%arg0: i32, %arg1: i32) -> (i32, i32) {
    %c0_i32 = arith.constant 0 : i32
    %c0_i32_0 = arith.constant 0 : i32
    return %arg1, %c0_i32 : i32, i32
  }
  func.func @transform_5(%arg0: i32, %arg1: i32) -> (i32, i32) {
    %c0_i32 = arith.constant 0 : i32
    %c0_i32_0 = arith.constant 0 : i32
    %c0_i32_1 = arith.constant 0 : i32
    return %c0_i32, %c0_i32_0 : i32, i32
  }
  func.func @transform_6(%arg0: i32, %arg1: i32) -> (i32, i32) {
    %c0_i32 = arith.constant 0 : i32
    %c0_i32_0 = arith.constant 0 : i32
    %c0_i32_1 = arith.constant 0 : i32
    return %c0_i32, %c0_i32_0 : i32, i32
  }
  func.func @transform_7(%arg0: i32, %arg1: i32) -> (i32, i32) {
    %c0_i32 = arith.constant 0 : i32
    %c0_i32_0 = arith.constant 0 : i32
    return %arg0, %c0_i32 : i32, i32
  }
  func.func @transform_8(%arg0: i32, %arg1: i32) -> (i32, i32, i32) {
    %c0_i32 = arith.constant 0 : i32
    %c0_i32_0 = arith.constant 0 : i32
    %c0_i32_1 = arith.constant 0 : i32
    return %arg0, %c0_i32, %c0_i32_0 : i32, i32, i32
  }
  func.func @transform_9(%arg0: i32, %arg1: i32) -> (i32, i32, i32) {
    %c0_i32 = arith.constant 0 : i32
    %c0_i32_0 = arith.constant 0 : i32
    %c0_i32_1 = arith.constant 0 : i32
    return %arg0, %c0_i32, %c0_i32_0 : i32, i32, i32
  }
}

module attributes {stable_mosaic.version = 11 : i64} {
  func.func @_update_side_kernel(%arg0: i32, %arg1: i32, %arg2: memref<128x128xf32, #tpu.memory_space<vmem>>, %arg3: memref<128x128xf32, #tpu.memory_space<vmem>>, %arg4: memref<128x128xf32, #tpu.memory_space<vmem>>, %arg5: memref<128x128xf32, #tpu.memory_space<vmem>>, %arg6: memref<128x128xf32, #tpu.memory_space<vmem>>, %arg7: memref<128x128xf32, #tpu.memory_space<vmem>>, %arg8: memref<1x128xf32, #tpu.memory_space<vmem>>, %arg9: memref<128x128xf32, #tpu.memory_space<vmem>>, %arg10: memref<1x1x128xf32, #tpu.memory_space<vmem>>, %arg11: memref<1x1x128xf32, #tpu.memory_space<vmem>>, %arg12: memref<128x128xf32, #tpu.memory_space<vmem>>, %arg13: memref<128x1xf32, #tpu.memory_space<vmem>>) attributes {dimension_semantics = [#tpu.dimension_semantics<parallel>, #tpu.dimension_semantics<arbitrary>], iteration_bounds = array<i64: 3, 2>, scalar_prefetch = 0 : i64, scratch_operands = 2 : i64, tpu.core_type = #tpu.core_type<tc>, window_params = [{transform_indices = @transform_0, window_bounds = array<i64: 128, 128>}, {transform_indices = @transform_1, window_bounds = array<i64: 128, 128>}, {transform_indices = @transform_2, window_bounds = array<i64: 128, 128>}, {pipeline_mode = #tpu.pipeline_mode<synchronous>, transform_indices = @transform_3, window_bounds = array<i64: 128, 128>}, {transform_indices = @transform_4, window_bounds = array<i64: 128, 128>}, {pipeline_mode = #tpu.pipeline_mode<synchronous>, transform_indices = @transform_5, window_bounds = array<i64: 128, 128>}, {pipeline_mode = #tpu.pipeline_mode<synchronous>, transform_indices = @transform_6, window_bounds = array<i64: 1, 128>}, {transform_indices = @transform_7, window_bounds = array<i64: 128, 128>}, {transform_indices = @transform_8, window_bounds = array<i64: 1, 1, 128>}, {transform_indices = @transform_9, window_bounds = array<i64: 1, 1, 128>}]} {
    %c0_i32 = arith.constant 0 : i32
    %0 = arith.cmpi eq, %arg1, %c0_i32 : i32
    %1 = arith.extui %0 : i1 to i32
    %c0_i32_0 = arith.constant 0 : i32
    %2 = arith.cmpi ne, %1, %c0_i32_0 : i32
    scf.if %2 {
      %c0_14 = arith.constant 0 : index
      %c0_15 = arith.constant 0 : index
      %17 = vector.load %arg2[%c0_14, %c0_15] : memref<128x128xf32, #tpu.memory_space<vmem>>, vector<128x128xf32>
      %c0_16 = arith.constant 0 : index
      %c0_17 = arith.constant 0 : index
      %18 = vector.load %arg5[%c0_16, %c0_17] : memref<128x128xf32, #tpu.memory_space<vmem>>, vector<128x128xf32>
      %cst_18 = arith.constant dense<0.000000e+00> : vector<128x128xf32>
      %19 = tpu.matmul %17, %18, %cst_18 {dimension_numbers = #tpu.dot_dimension_numbers<[1], [0], [0], [1], [0, 0, 1, 1], [], []>} : vector<128x128xf32>, vector<128x128xf32>, vector<128x128xf32> -> vector<128x128xf32>
      %c0_19 = arith.constant 0 : index
      %c0_20 = arith.constant 0 : index
      %20 = vector.load %arg4[%c0_19, %c0_20] : memref<128x128xf32, #tpu.memory_space<vmem>>, vector<128x128xf32>
      %c0_21 = arith.constant 0 : index
      %c0_22 = arith.constant 0 : index
      %21 = vector.load %arg7[%c0_21, %c0_22] : memref<128x128xf32, #tpu.memory_space<vmem>>, vector<128x128xf32>
      %cst_23 = arith.constant dense<0.000000e+00> : vector<128x128xf32>
      %22 = tpu.matmul %20, %21, %cst_23 {dimension_numbers = #tpu.dot_dimension_numbers<[1], [0], [0], [1], [0, 0, 1, 1], [], []>} : vector<128x128xf32>, vector<128x128xf32>, vector<128x128xf32> -> vector<128x128xf32>
      %23 = arith.addf %19, %22 : vector<128x128xf32>
      %c0_24 = arith.constant 0 : index
      %c0_25 = arith.constant 0 : index
      %24 = vector.load %arg8[%c0_24, %c0_25] : memref<1x128xf32, #tpu.memory_space<vmem>>, vector<1x128xf32>
      %25 = vector.broadcast %24 : vector<1x128xf32> to vector<128x128xf32>
      %26 = arith.addf %23, %25 : vector<128x128xf32>
      %c0_26 = arith.constant 0 : index
      %c0_27 = arith.constant 0 : index
      %27 = vector.load %arg12[%c0_26, %c0_27] : memref<128x128xf32, #tpu.memory_space<vmem>>, vector<128x128xf32>
      tpu.vector_store %arg12[%c0_26, %c0_27], %26 {strides = array<i32>} : memref<128x128xf32, #tpu.memory_space<vmem>>, vector<128x128xf32>,
      %cst_28 = arith.constant 0.000000e+00 : f32
      %28 = vector.broadcast %cst_28 : f32 to vector<128x1xf32>
      %c0_29 = arith.constant 0 : index
      %c0_30 = arith.constant 0 : index
      %29 = vector.load %arg13[%c0_29, %c0_30] : memref<128x1xf32, #tpu.memory_space<vmem>>, vector<128x1xf32>
      tpu.vector_store %arg13[%c0_29, %c0_30], %28 {strides = array<i32>} : memref<128x1xf32, #tpu.memory_space<vmem>>, vector<128x1xf32>,
    } else {
    }
    %c0 = arith.constant 0 : index
    %c0_1 = arith.constant 0 : index
    %3 = vector.load %arg3[%c0, %c0_1] : memref<128x128xf32, #tpu.memory_space<vmem>>, vector<128x128xf32>
    %c0_2 = arith.constant 0 : index
    %c0_3 = arith.constant 0 : index
    %4 = vector.load %arg12[%c0_2, %c0_3] : memref<128x128xf32, #tpu.memory_space<vmem>>, vector<128x128xf32>
    %c0_4 = arith.constant 0 : index
    %c0_5 = arith.constant 0 : index
    %5 = vector.load %arg6[%c0_4, %c0_5] : memref<128x128xf32, #tpu.memory_space<vmem>>, vector<128x128xf32>
    %cst = arith.constant dense<0.000000e+00> : vector<128x128xf32>
    %6 = tpu.matmul %3, %5, %cst {dimension_numbers = #tpu.dot_dimension_numbers<[1], [0], [0], [1], [0, 0, 1, 1], [], []>} : vector<128x128xf32>, vector<128x128xf32>, vector<128x128xf32> -> vector<128x128xf32>
    %7 = arith.addf %4, %6 : vector<128x128xf32>
    %c0_6 = arith.constant 0 : index
    %c0_7 = arith.constant 0 : index
    %8 = vector.load %arg12[%c0_6, %c0_7] : memref<128x128xf32, #tpu.memory_space<vmem>>, vector<128x128xf32>
    tpu.vector_store %arg12[%c0_6, %c0_7], %7 {strides = array<i32>} : memref<128x128xf32, #tpu.memory_space<vmem>>, vector<128x128xf32>,
    %c0_8 = arith.constant 0 : index
    %c0_9 = arith.constant 0 : index
    %9 = vector.load %arg13[%c0_8, %c0_9] : memref<128x1xf32, #tpu.memory_space<vmem>>, vector<128x1xf32>
    %cst_10 = arith.constant dense<0.000000e+00> : vector<128xf32>
    %10 = vector.multi_reduction <add>, %3, %cst_10 [1] : vector<128x128xf32> to vector<128xf32>
    %11 = vector.shape_cast %10 : vector<128xf32> to vector<128x1xf32>
    %12 = arith.addf %9, %11 : vector<128x1xf32>
    %c0_11 = arith.constant 0 : index
    %c0_12 = arith.constant 0 : index
    %13 = vector.load %arg13[%c0_11, %c0_12] : memref<128x1xf32, #tpu.memory_space<vmem>>, vector<128x1xf32>
    tpu.vector_store %arg13[%c0_11, %c0_12], %12 {strides = array<i32>} : memref<128x1xf32, #tpu.memory_space<vmem>>, vector<128x1xf32>,
    %c1_i32 = arith.constant 1 : i32
    %14 = arith.cmpi eq, %arg1, %c1_i32 : i32
    %15 = arith.extui %14 : i1 to i32
    %c0_i32_13 = arith.constant 0 : i32
    %16 = arith.cmpi ne, %15, %c0_i32_13 : i32
    scf.if %16 {
      %c0_14 = arith.constant 0 : index
      %c0_15 = arith.constant 0 : index
      %17 = vector.load %arg13[%c0_14, %c0_15] : memref<128x1xf32, #tpu.memory_space<vmem>>, vector<128x1xf32>
      %cst_16 = arith.constant 0.000000e+00 : f32
      %18 = vector.broadcast %cst_16 : f32 to vector<128x1xf32>
      %19 = arith.cmpf ogt, %17, %18 : vector<128x1xf32>
      %20 = arith.extui %19 : vector<128x1xi1> to vector<128x1xi32>
      %21 = arith.sitofp %20 : vector<128x1xi32> to vector<128x1xf32>
      %c0_17 = arith.constant 0 : index
      %c0_18 = arith.constant 0 : index
      %22 = vector.load %arg12[%c0_17, %c0_18] : memref<128x128xf32, #tpu.memory_space<vmem>>, vector<128x128xf32>
      %cst_19 = arith.constant 0.000000e+00 : f32
      %23 = vector.broadcast %cst_19 : f32 to vector<128x128xf32>
      %24 = arith.maximumf %22, %23 : vector<128x128xf32>
      %25 = vector.broadcast %21 : vector<128x1xf32> to vector<128x128xf32>
      %26 = arith.mulf %24, %25 : vector<128x128xf32>
      %c0_20 = arith.constant 0 : index
      %c0_21 = arith.constant 0 : index
      %27 = vector.load %arg2[%c0_20, %c0_21] : memref<128x128xf32, #tpu.memory_space<vmem>>, vector<128x128xf32>
      %28 = arith.addf %27, %26 : vector<128x128xf32>
      %c0_22 = arith.constant 0 : index
      %c0_23 = arith.constant 0 : index
      %29 = vector.load %arg9[%c0_22, %c0_23] : memref<128x128xf32, #tpu.memory_space<vmem>>, vector<128x128xf32>
      tpu.vector_store %arg9[%c0_22, %c0_23], %28 {strides = array<i32>} : memref<128x128xf32, #tpu.memory_space<vmem>>, vector<128x128xf32>,
      %30 = arith.mulf %26, %26 : vector<128x128xf32>
      %31 = vector.shape_cast %30 : vector<128x128xf32> to vector<1x128x128xf32>
      %cst_24 = arith.constant dense<0.000000e+00> : vector<1xf32>
      %32 = vector.multi_reduction <add>, %31, %cst_24 [1, 2] : vector<1x128x128xf32> to vector<1xf32>
      %33 = vector.shape_cast %32 : vector<1xf32> to vector<1x1x1xf32>
      %34 = vector.extract %33[0, 0, 0] : f32 from vector<1x1x1xf32>
      %35 = vector.broadcast %34 : f32 to vector<1x1x128xf32>
      %c0_25 = arith.constant 0 : index
      %c0_26 = arith.constant 0 : index
      %c0_27 = arith.constant 0 : index
      %36 = vector.load %arg10[%c0_25, %c0_26, %c0_27] : memref<1x1x128xf32, #tpu.memory_space<vmem>>, vector<1x1x128xf32>
      tpu.vector_store %arg10[%c0_25, %c0_26, %c0_27], %35 {strides = array<i32>} : memref<1x1x128xf32, #tpu.memory_space<vmem>>, vector<1x1x128xf32>,
      %37 = vector.shape_cast %21 : vector<128x1xf32> to vector<1x128x1xf32>
      %cst_28 = arith.constant dense<0.000000e+00> : vector<1xf32>
      %38 = vector.multi_reduction <add>, %37, %cst_28 [1, 2] : vector<1x128x1xf32> to vector<1xf32>
      %39 = vector.shape_cast %38 : vector<1xf32> to vector<1x1x1xf32>
      %40 = vector.extract %39[0, 0, 0] : f32 from vector<1x1x1xf32>
      %41 = vector.broadcast %40 : f32 to vector<1x1x128xf32>
      %c0_29 = arith.constant 0 : index
      %c0_30 = arith.constant 0 : index
      %c0_31 = arith.constant 0 : index
      %42 = vector.load %arg11[%c0_29, %c0_30, %c0_31] : memref<1x1x128xf32, #tpu.memory_space<vmem>>, vector<1x1x128xf32>
      tpu.vector_store %arg11[%c0_29, %c0_30, %c0_31], %41 {strides = array<i32>} : memref<1x1x128xf32, #tpu.memory_space<vmem>>, vector<1x1x128xf32>,
    } else {
    }
    return
  }
  func.func @transform_0(%arg0: i32, %arg1: i32) -> (i32, i32) {
    %c0_i32 = arith.constant 0 : i32
    %c0_i32_0 = arith.constant 0 : i32
    return %arg0, %c0_i32 : i32, i32
  }
  func.func @transform_1(%arg0: i32, %arg1: i32) -> (i32, i32) {
    %c0_i32 = arith.constant 0 : i32
    return %arg0, %arg1 : i32, i32
  }
  func.func @transform_2(%arg0: i32, %arg1: i32) -> (i32, i32) {
    %c0_i32 = arith.constant 0 : i32
    %c0_i32_0 = arith.constant 0 : i32
    return %arg0, %c0_i32 : i32, i32
  }
  func.func @transform_3(%arg0: i32, %arg1: i32) -> (i32, i32) {
    %c0_i32 = arith.constant 0 : i32
    %c0_i32_0 = arith.constant 0 : i32
    %c0_i32_1 = arith.constant 0 : i32
    return %c0_i32, %c0_i32_0 : i32, i32
  }
  func.func @transform_4(%arg0: i32, %arg1: i32) -> (i32, i32) {
    %c0_i32 = arith.constant 0 : i32
    %c0_i32_0 = arith.constant 0 : i32
    return %arg1, %c0_i32 : i32, i32
  }
  func.func @transform_5(%arg0: i32, %arg1: i32) -> (i32, i32) {
    %c0_i32 = arith.constant 0 : i32
    %c0_i32_0 = arith.constant 0 : i32
    %c0_i32_1 = arith.constant 0 : i32
    return %c0_i32, %c0_i32_0 : i32, i32
  }
  func.func @transform_6(%arg0: i32, %arg1: i32) -> (i32, i32) {
    %c0_i32 = arith.constant 0 : i32
    %c0_i32_0 = arith.constant 0 : i32
    %c0_i32_1 = arith.constant 0 : i32
    return %c0_i32, %c0_i32_0 : i32, i32
  }
  func.func @transform_7(%arg0: i32, %arg1: i32) -> (i32, i32) {
    %c0_i32 = arith.constant 0 : i32
    %c0_i32_0 = arith.constant 0 : i32
    return %arg0, %c0_i32 : i32, i32
  }
  func.func @transform_8(%arg0: i32, %arg1: i32) -> (i32, i32, i32) {
    %c0_i32 = arith.constant 0 : i32
    %c0_i32_0 = arith.constant 0 : i32
    %c0_i32_1 = arith.constant 0 : i32
    return %arg0, %c0_i32, %c0_i32_0 : i32, i32, i32
  }
  func.func @transform_9(%arg0: i32, %arg1: i32) -> (i32, i32, i32) {
    %c0_i32 = arith.constant 0 : i32
    %c0_i32_0 = arith.constant 0 : i32
    %c0_i32_1 = arith.constant 0 : i32
    return %arg0, %c0_i32, %c0_i32_0 : i32, i32, i32
  }
}

</mosaic_0001>

<llo_original>
// kernel: update_unit_forward.3
$region0: #{update_unit_forward.3}
  #allocation0 [shape = 'u32[]', space=smem, size = 0x4, offset = 0x4, fixed_abs, tag = 'smem constant byte address 0x4 - core index']
  #allocation1 [shape = 'u32[144,128]{1,0:T(1,128)}', space=vmem, size = 0x12000, scoped, tag = 'internal scratch']
  #allocation2 [shape = 'f32[128,128]{1,0:T(8,128)}', space=vmem, size = 0x10000, scoped, tag = 'scratch operand']
  #allocation3 [shape = 'f32[128,1]{1,0:T(8,128)}', space=vmem, size = 0x10000, scoped, tag = 'scratch operand']
  %s0 = inlined_call_operand.vmem [shape: f32[256,128], index: 0, kind: input, shape index: {}]
  %s1 = inlined_call_operand.vmem [shape: f32[256,384], index: 1, kind: input, shape index: {}]
  %s2 = inlined_call_operand.vmem [shape: f32[256,128], index: 2, kind: input, shape index: {}]
  %s3 = inlined_call_operand.vmem [shape: f32[128,128], index: 3, kind: input, shape index: {}]
  %s4 = inlined_call_operand.vmem [shape: f32[384,128], index: 4, kind: input, shape index: {}]
  %s5 = inlined_call_operand.vmem [shape: f32[128,128], index: 5, kind: input, shape index: {}]
  %s6 = inlined_call_operand.vmem [shape: f32[1,128], index: 6, kind: input, shape index: {}]
  %s7 = inlined_call_operand.hbm [shape: f32[256,128], index: 7, kind: output, shape index: {0}]
  %s8 = inlined_call_operand.vmem [shape: f32[2,1,128], index: 8, kind: output, shape index: {1}]
  %s9 = inlined_call_operand.vmem [shape: f32[2,1,128], index: 9, kind: output, shape index: {2}]
  %10 = xla_tuple %s7, %s8, %s9
  %s11 = sld [smem:[#allocation0]]
  $region123: #{update_unit_forward.3} parent=0
    _
  %s13 = ssub.s32 1, %s11
  %s14 = scalar_select 0, %s13, %s11
  $region1: #{update_unit_forward.3} parent=0
    #allocation4 [shape = 'u8[131072]{0}', space=vmem, size = 0x20000, scoped, tag = 'input window, operand 1']
    #allocation5 [shape = 'u8[131072]{0}', space=vmem, size = 0x20000, scoped, tag = 'output window, operand 0']
    #allocation6 [shape = 's32[2]{0}', space=sflag, size = 0x8, scoped, tag = 'scoped memory for update_unit_forward.3']
    %15 = vsyncpa [#allocation6], 0
    %s16 = scalar_lea.sflag [#allocation6], 1
    %17 = vsyncpa %s16, 0
    loop: start=0, step=1, limit=8
    $region2: #{update_unit_forward.3} parent=1 // loop_pre_header
      _
    $region3: #{update_unit_forward.3} parent=1 // loop_header
      %s19 = sphi 0, %s23
      %p20 = scmp.ge.s32.totalorder %s19, 8
      %s26 = sphi 0, %s38
      %s27 = sphi 0, %s34
      %s28 = sphi 0, %s26
      %s29 = sphi 0, %s27
      %s30 = sphi 0, %s28
      %s31 = sphi 0, %s29
      %s41 = sphi 0, %s43
      %s44 = sphi 0, %s41
      %s45 = sphi 0, %s44
      %s61 = sphi 0, %s45
      %s69 = sphi 0, %s71
      %s72 = sphi 0, %s69
      %s73 = sphi 0, %s72
      %s89 = sphi 0, %s73
      %s95 = sphi 0, %s97
      %s98 = sphi 0, %s95
      %s99 = sphi 0, %s98
      %s115 = sphi 0, %s99
      %s119 = sphi 0, %s119
      %s121 = sphi 0, %s119
      %s122 = sphi 0, %s121
      %s136 = sphi 0, %s122
      %s142 = sphi 0, %s144
      %s145 = sphi 0, %s142
      %s146 = sphi 0, %s145
      %s162 = sphi 0, %s146
      %s166 = sphi 0, %s166
      %s168 = sphi 0, %s166
      %s169 = sphi 0, %s168
      %s183 = sphi 0, %s169
      %s187 = sphi 0, %s187
      %s189 = sphi 0, %s187
      %s190 = sphi 0, %s189
      %s204 = sphi 0, %s190
      %s210 = sphi 0, %s212
      %s213 = sphi 0, %s210
      %s214 = sphi 0, %s213
      %s230 = sphi 0, %s214
      %s236 = sphi 0, %s238
      %s239 = sphi 0, %s236
      %s240 = sphi 0, %s239
      %s256 = sphi 0, %s240
      %s262 = sphi 0, %s264
      %s265 = sphi 0, %s262
      %s266 = sphi 0, %s265
      %s282 = sphi 0, %s266
    $region4: #{update_unit_forward.3} parent=1 // loop_header_branch
      %22 = sbr.rel (%p20) target = $region8
    $region5: #{update_unit_forward.3} parent=1 // loop_body
      %s24 = ssub.s32 %s19, 1
      %s25 = ssub.s32 %s19, 2
      %s32 = sadd.s32 1, %s27
      %p33 = scmp.ge.s32.totalorder %s32, 3
      %s34 = scalar_select %p33, 0, %s32
      %s35 = sadd.s32 1, %s26
      %s36 = scalar_select %p33, %s35, %s26
      %p37 = scmp.ge.s32.totalorder %s36, 2
      %s38 = scalar_select %p37, 0, %s36
      %s39 = ssub.s32 %s26, %s38
      %p40 = scmp.eq.s32.totalorder %s39, 0
      %s42 = sadd.s32 %s41, 1
      %s43 = scalar_select %p40, %s41, %s42
      %p46 = pneg %p40
      %p47 = scmp.eq.s32.totalorder %s19, 5
      %p48 = por %p46, %p47
      %p49 = scmp.ne.s32.totalorder %s41, %s44
      %p50 = scmp.eq.s32.totalorder %s19, 0
      %p51 = por %p49, %p50
      %p52 = scmp.ne.s32.totalorder %s41, %s44
      %p53 = scmp.eq.s32.totalorder %s24, 5
      %p54 = por %p52, %p53
      %p55 = scmp.ne.s32.totalorder %s44, %s45
      %p56 = scmp.eq.s32.totalorder %s24, 0
      %p57 = por %p55, %p56
      %p58 = scmp.ne.s32.totalorder %s44, %s45
      %p59 = scmp.eq.s32.totalorder %s25, 5
      %p60 = por %p58, %p59
      %p62 = scmp.ne.s32.totalorder %s45, %s61
      %p63 = scmp.eq.s32.totalorder %s25, 0
      %p64 = por %p62, %p63
      %s65 = ssub.s32 %s26, %s38
      %s66 = ssub.s32 %s27, %s34
      %s67 = sor.u32 %s65, %s66
      %p68 = scmp.eq.s32.totalorder %s67, 0
      %s70 = sadd.s32 %s69, 1
      %s71 = scalar_select %p68, %s69, %s70
      %p74 = pneg %p68
      %p75 = scmp.eq.s32.totalorder %s19, 5
      %p76 = por %p74, %p75
      %p77 = scmp.ne.s32.totalorder %s69, %s72
      %p78 = scmp.eq.s32.totalorder %s19, 0
      %p79 = por %p77, %p78
      %p80 = scmp.ne.s32.totalorder %s69, %s72
      %p81 = scmp.eq.s32.totalorder %s24, 5
      %p82 = por %p80, %p81
      %p83 = scmp.ne.s32.totalorder %s72, %s73
      %p84 = scmp.eq.s32.totalorder %s24, 0
      %p85 = por %p83, %p84
      %p86 = scmp.ne.s32.totalorder %s72, %s73
      %p87 = scmp.eq.s32.totalorder %s25, 5
      %p88 = por %p86, %p87
      %p90 = scmp.ne.s32.totalorder %s73, %s89
      %p91 = scmp.eq.s32.totalorder %s25, 0
      %p92 = por %p90, %p91
      %s93 = ssub.s32 %s26, %s38
      %p94 = scmp.eq.s32.totalorder %s93, 0
      %s96 = sadd.s32 %s95, 1
      %s97 = scalar_select %p94, %s95, %s96
      %p100 = pneg %p94
      %p101 = scmp.eq.s32.totalorder %s19, 5
      %p102 = por %p100, %p101
      %p103 = scmp.ne.s32.totalorder %s95, %s98
      %p104 = scmp.eq.s32.totalorder %s19, 0
      %p105 = por %p103, %p104
      %p106 = scmp.ne.s32.totalorder %s95, %s98
      %p107 = scmp.eq.s32.totalorder %s24, 5
      %p108 = por %p106, %p107
      %p109 = scmp.ne.s32.totalorder %s98, %s99
      %p110 = scmp.eq.s32.totalorder %s24, 0
      %p111 = por %p109, %p110
      %p112 = scmp.ne.s32.totalorder %s98, %s99
      %p113 = scmp.eq.s32.totalorder %s25, 5
      %p114 = por %p112, %p113
      %p116 = scmp.ne.s32.totalorder %s99, %s115
      %p117 = scmp.eq.s32.totalorder %s25, 0
      %p118 = por %p116, %p117
      %s120 = sadd.s32 %s119, 1
      %p123 = scmp.eq.s32.totalorder %s19, 5
      %p124 = scmp.ne.s32.totalorder %s119, %s121
      %p125 = scmp.eq.s32.totalorder %s19, 0
      %p126 = por %p124, %p125
      %p127 = scmp.ne.s32.totalorder %s119, %s121
      %p128 = scmp.eq.s32.totalorder %s24, 5
      %p129 = por %p127, %p128
      %p130 = scmp.ne.s32.totalorder %s121, %s122
      %p131 = scmp.eq.s32.totalorder %s24, 0
      %p132 = por %p130, %p131
      %p133 = scmp.ne.s32.totalorder %s121, %s122
      %p134 = scmp.eq.s32.totalorder %s25, 5
      %p135 = por %p133, %p134
      %p137 = scmp.ne.s32.totalorder %s122, %s136
      %p138 = scmp.eq.s32.totalorder %s25, 0
      %p139 = por %p137, %p138
      %s140 = ssub.s32 %s27, %s34
      %p141 = scmp.eq.s32.totalorder %s140, 0
      %s143 = sadd.s32 %s142, 1
      %s144 = scalar_select %p141, %s142, %s143
      %p147 = pneg %p141
      %p148 = scmp.eq.s32.totalorder %s19, 5
      %p149 = por %p147, %p148
      %p150 = scmp.ne.s32.totalorder %s142, %s145
      %p151 = scmp.eq.s32.totalorder %s19, 0
      %p152 = por %p150, %p151
      %p153 = scmp.ne.s32.totalorder %s142, %s145
      %p154 = scmp.eq.s32.totalorder %s24, 5
      %p155 = por %p153, %p154
      %p156 = scmp.ne.s32.totalorder %s145, %s146
      %p157 = scmp.eq.s32.totalorder %s24, 0
      %p158 = por %p156, %p157
      %p159 = scmp.ne.s32.totalorder %s145, %s146
      %p160 = scmp.eq.s32.totalorder %s25, 5
      %p161 = por %p159, %p160
      %p163 = scmp.ne.s32.totalorder %s146, %s162
      %p164 = scmp.eq.s32.totalorder %s25, 0
      %p165 = por %p163, %p164
      %s167 = sadd.s32 %s166, 1
      %p170 = scmp.eq.s32.totalorder %s19, 5
      %p171 = scmp.ne.s32.totalorder %s166, %s168
      %p172 = scmp.eq.s32.totalorder %s19, 0
      %p173 = por %p171, %p172
      %p174 = scmp.ne.s32.totalorder %s166, %s168
      %p175 = scmp.eq.s32.totalorder %s24, 5
      %p176 = por %p174, %p175
      %p177 = scmp.ne.s32.totalorder %s168, %s169
      %p178 = scmp.eq.s32.totalorder %s24, 0
      %p179 = por %p177, %p178
      %p180 = scmp.ne.s32.totalorder %s168, %s169
      %p181 = scmp.eq.s32.totalorder %s25, 5
      %p182 = por %p180, %p181
      %p184 = scmp.ne.s32.totalorder %s169, %s183
      %p185 = scmp.eq.s32.totalorder %s25, 0
      %p186 = por %p184, %p185
      %s188 = sadd.s32 %s187, 1
      %p191 = scmp.eq.s32.totalorder %s19, 5
      %p192 = scmp.ne.s32.totalorder %s187, %s189
      %p193 = scmp.eq.s32.totalorder %s19, 0
      %p194 = por %p192, %p193
      %p195 = scmp.ne.s32.totalorder %s187, %s189
      %p196 = scmp.eq.s32.totalorder %s24, 5
      %p197 = por %p195, %p196
      %p198 = scmp.ne.s32.totalorder %s189, %s190
      %p199 = scmp.eq.s32.totalorder %s24, 0
      %p200 = por %p198, %p199
      %p201 = scmp.ne.s32.totalorder %s189, %s190
      %p202 = scmp.eq.s32.totalorder %s25, 5
      %p203 = por %p201, %p202
      %p205 = scmp.ne.s32.totalorder %s190, %s204
      %p206 = scmp.eq.s32.totalorder %s25, 0
      %p207 = por %p205, %p206
      %s208 = ssub.s32 %s26, %s38
      %p209 = scmp.eq.s32.totalorder %s208, 0
      %s211 = sadd.s32 %s210, 1
      %s212 = scalar_select %p209, %s210, %s211
      %p215 = pneg %p209
      %p216 = scmp.eq.s32.totalorder %s19, 5
      %p217 = por %p215, %p216
      %p218 = scmp.ne.s32.totalorder %s210, %s213
      %p219 = scmp.eq.s32.totalorder %s19, 0
      %p220 = por %p218, %p219
      %p221 = scmp.ne.s32.totalorder %s210, %s213
      %p222 = scmp.eq.s32.totalorder %s24, 5
      %p223 = por %p221, %p222
      %p224 = scmp.ne.s32.totalorder %s213, %s214
      %p225 = scmp.eq.s32.totalorder %s24, 0
      %p226 = por %p224, %p225
      %p227 = scmp.ne.s32.totalorder %s213, %s214
      %p228 = scmp.eq.s32.totalorder %s25, 5
      %p229 = por %p227, %p228
      %p231 = scmp.ne.s32.totalorder %s214, %s230
      %p232 = scmp.eq.s32.totalorder %s25, 0
      %p233 = por %p231, %p232
      %s234 = ssub.s32 %s26, %s38
      %p235 = scmp.eq.s32.totalorder %s234, 0
      %s237 = sadd.s32 %s236, 1
      %s238 = scalar_select %p235, %s236, %s237
      %p241 = pneg %p235
      %p242 = scmp.eq.s32.totalorder %s19, 5
      %p243 = por %p241, %p242
      %p244 = scmp.ne.s32.totalorder %s236, %s239
      %p245 = scmp.eq.s32.totalorder %s19, 0
      %p246 = por %p244, %p245
      %p247 = scmp.ne.s32.totalorder %s236, %s239
      %p248 = scmp.eq.s32.totalorder %s24, 5
      %p249 = por %p247, %p248
      %p250 = scmp.ne.s32.totalorder %s239, %s240
      %p251 = scmp.eq.s32.totalorder %s24, 0
      %p252 = por %p250, %p251
      %p253 = scmp.ne.s32.totalorder %s239, %s240
      %p254 = scmp.eq.s32.totalorder %s25, 5
      %p255 = por %p253, %p254
      %p257 = scmp.ne.s32.totalorder %s240, %s256
      %p258 = scmp.eq.s32.totalorder %s25, 0
      %p259 = por %p257, %p258
      %s260 = ssub.s32 %s26, %s38
      %p261 = scmp.eq.s32.totalorder %s260, 0
      %s263 = sadd.s32 %s262, 1
      %s264 = scalar_select %p261, %s262, %s263
      %p267 = pneg %p261
      %p268 = scmp.eq.s32.totalorder %s19, 5
      %p269 = por %p267, %p268
      %p270 = scmp.ne.s32.totalorder %s262, %s265
      %p271 = scmp.eq.s32.totalorder %s19, 0
      %p272 = por %p270, %p271
      %p273 = scmp.ne.s32.totalorder %s262, %s265
      %p274 = scmp.eq.s32.totalorder %s24, 5
      %p275 = por %p273, %p274
      %p276 = scmp.ne.s32.totalorder %s265, %s266
      %p277 = scmp.eq.s32.totalorder %s24, 0
      %p278 = por %p276, %p277
      %p279 = scmp.ne.s32.totalorder %s265, %s266
      %p280 = scmp.eq.s32.totalorder %s25, 5
      %p281 = por %p279, %p280
      %p283 = scmp.ne.s32.totalorder %s266, %s282
      %p284 = scmp.eq.s32.totalorder %s25, 0
      %p285 = por %p283, %p284
      %p286 = scmp.le.s32.totalorder 1, %s19
      %p287 = scmp.lt.s32.totalorder %s19, 7
      %p288 = pnand %p286, %p287
      %p289 = pneg %p288
      // Predicated region
      $region9: #{update_unit_forward.3} parent=5 // pred_check
        _
      $region10: #{update_unit_forward.3} parent=5 // pred_check_branch
        %291 = sbr.rel (%p288) target = $region12
      $region11: #{update_unit_forward.3} parent=5 // pred_region
        %s292 = ssub.s32 %s19, 1
        // Predicated region
        $region13: #{update_unit_forward.3} parent=11 // pred_check
          %p293 = pneg %p132
        $region14: #{update_unit_forward.3} parent=11 // pred_check_branch
          %295 = sbr.rel (%p293) target = $region16
        $region15: #{update_unit_forward.3} parent=11 // pred_region
          _
        $region16: #{update_unit_forward.3} parent=11 // pred_fallthru
          _
        // Predicated region
        $region17: #{update_unit_forward.3} parent=11 // pred_check
          %p296 = pneg %p179
        $region18: #{update_unit_forward.3} parent=11 // pred_check_branch
          %298 = sbr.rel (%p296) target = $region20
        $region19: #{update_unit_forward.3} parent=11 // pred_region
          _
        $region20: #{update_unit_forward.3} parent=11 // pred_fallthru
          _
        // Predicated region
        $region21: #{update_unit_forward.3} parent=11 // pred_check
          %p299 = pneg %p200
        $region22: #{update_unit_forward.3} parent=11 // pred_check_branch
          %301 = sbr.rel (%p299) target = $region24
        $region23: #{update_unit_forward.3} parent=11 // pred_region
          _
        $region24: #{update_unit_forward.3} parent=11 // pred_fallthru
          _
      $region12: #{update_unit_forward.3} parent=5 // pred_fallthru
        _
      %p302 = scmp.lt.s32.totalorder %s19, 6
      // Predicated region
      $region25: #{update_unit_forward.3} parent=5 // pred_check
        %p303 = pneg %p302
      $region26: #{update_unit_forward.3} parent=5 // pred_check_branch
        %305 = sbr.rel (%p303) target = $region28
      $region27: #{update_unit_forward.3} parent=5 // pred_region
        // Predicated region
        $region29: #{update_unit_forward.3} parent=27 // pred_check
          %p306 = pneg %p51
        $region30: #{update_unit_forward.3} parent=27 // pred_check_branch
          %308 = sbr.rel (%p306) target = $region32
        $region31: #{update_unit_forward.3} parent=27 // pred_region
          %s309 = smul.u32 16, %s26
          %p310 = scmp.lt.s32.totalorder %s309, 31
          %s311 = scalar_select %p310, %s309, 31
          %s312 = smul.addr %s311, 8
          %s313 = scalar_lea.vmem %s0, %s312
          %s314 = smul.u32 16, %s26
        $region32: #{update_unit_forward.3} parent=27 // pred_fallthru
          _
        // Predicated region
        $region33: #{update_unit_forward.3} parent=27 // pred_check
          %p315 = pneg %p79
        $region34: #{update_unit_forward.3} parent=27 // pred_check_branch
          %317 = sbr.rel (%p315) target = $region36
        $region35: #{update_unit_forward.3} parent=27 // pred_region
          %s318 = sand.u32 %s69, 1
          %s319 = sand.u32 %s69, 1
          %s320 = smul.addr %s319, 128
          %s321 = scalar_lea.vmem [#allocation4], %s320
          %s322 = smul.u32 16, %s26
          %s323 = smul.addr %s322, 3
          %s324 = sadd.s32 %s27, %s323
          %s325 = smul.addr %s324, 8
          %s326 = scalar_lea.vmem %s1, %s325
          // Predicated region
          $region37: #{update_unit_forward.3} parent=35 // pred_check
            _
          $region38: #{update_unit_forward.3} parent=35 // pred_check_branch
            %328 = sbr.rel (0) target = $region40
          $region39: #{update_unit_forward.3} parent=35 // pred_region
            // Predicated region
            $region41: #{update_unit_forward.3} parent=39 // pred_check
              _
            $region42: #{update_unit_forward.3} parent=39 // pred_check_branch
              %330 = sbr.rel (0) target = $region44
            $region43: #{update_unit_forward.3} parent=39 // pred_region
              // Predicated region
              $region56: #{update_unit_forward.3} parent=43 // pred_check
                _
              $region57: #{update_unit_forward.3} parent=43 // pred_check_branch
                %375 = sbr.rel (0) target = $region59
              $region58: #{update_unit_forward.3} parent=43 // pred_region
                loop: start=0, step=1, limit=1
                $region60: #{update_unit_forward.3} parent=58 // loop_pre_header
                  _
                $region61: #{update_unit_forward.3} parent=58 // loop_header
                  %s377 = sphi 0, %s381
                  %p378 = scmp.ge.s32.totalorder %s377, 1
                  %s382 = sphi %s326, %s326
                  %s383 = sphi %s321, %s321
                $region62: #{update_unit_forward.3} parent=58 // loop_header_branch
                  %380 = sbr.rel (%p378) target = $region66
                $region63: #{update_unit_forward.3} parent=58 // loop_body
                  %v384 = vld [vmem:[%s382] sm:$0xff]
                  %385 = vst [vmem:[%s383] sm:$0xff] %v384
                  %v386 = vld [vmem:[%s382 + $0x18] sm:$0xff]
                  %387 = vst [vmem:[%s383 + $0x8] sm:$0xff] %v386
                  %v388 = vld [vmem:[%s382 + $0x30] sm:$0xff]
                  %389 = vst [vmem:[%s383 + $0x10] sm:$0xff] %v388
                  %v390 = vld [vmem:[%s382 + $0x48] sm:$0xff]
                  %391 = vst [vmem:[%s383 + $0x18] sm:$0xff] %v390
                  %v392 = vld [vmem:[%s382 + $0x60] sm:$0xff]
                  %393 = vst [vmem:[%s383 + $0x20] sm:$0xff] %v392
                  %v394 = vld [vmem:[%s382 + $0x78] sm:$0xff]
                  %395 = vst [vmem:[%s383 + $0x28] sm:$0xff] %v394
                  %v396 = vld [vmem:[%s382 + $0x90] sm:$0xff]
                  %397 = vst [vmem:[%s383 + $0x30] sm:$0xff] %v396
                  %v398 = vld [vmem:[%s382 + $0xa8] sm:$0xff]
                  %399 = vst [vmem:[%s383 + $0x38] sm:$0xff] %v398
                  %v400 = vld [vmem:[%s382 + $0xc0] sm:$0xff]
                  %401 = vst [vmem:[%s383 + $0x40] sm:$0xff] %v400
                  %v402 = vld [vmem:[%s382 + $0xd8] sm:$0xff]
                  %403 = vst [vmem:[%s383 + $0x48] sm:$0xff] %v402
                  %v404 = vld [vmem:[%s382 + $0xf0] sm:$0xff]
                  %405 = vst [vmem:[%s383 + $0x50] sm:$0xff] %v404
                  %v406 = vld [vmem:[%s382 + $0x108] sm:$0xff]
                  %407 = vst [vmem:[%s383 + $0x58] sm:$0xff] %v406
                  %v408 = vld [vmem:[%s382 + $0x120] sm:$0xff]
                  %409 = vst [vmem:[%s383 + $0x60] sm:$0xff] %v408
                  %v410 = vld [vmem:[%s382 + $0x138] sm:$0xff]
                  %411 = vst [vmem:[%s383 + $0x68] sm:$0xff] %v410
                  %v412 = vld [vmem:[%s382 + $0x150] sm:$0xff]
                  %413 = vst [vmem:[%s383 + $0x70] sm:$0xff] %v412
                  %v414 = vld [vmem:[%s382 + $0x168] sm:$0xff]
                  %415 = vst [vmem:[%s383 + $0x78] sm:$0xff] %v414
                $region64: #{update_unit_forward.3} parent=58 // loop_footer
                  %s381 = sadd.s32 1, %s377
                $region65: #{update_unit_forward.3} parent=58 // loop_footer_branch
                  %376 = sbr.rel target = $region61
                $region66: #{update_unit_forward.3} parent=58 // loop_exit
                  _
              $region59: #{update_unit_forward.3} parent=43 // pred_fallthru
                _
              // Predicated region
              $region67: #{update_unit_forward.3} parent=43 // pred_check
                _
              $region68: #{update_unit_forward.3} parent=43 // pred_check_branch
                %417 = sbr.rel target = $region70
              $region69: #{update_unit_forward.3} parent=43 // pred_region
                _
              $region70: #{update_unit_forward.3} parent=43 // pred_fallthru
                _
            $region44: #{update_unit_forward.3} parent=39 // pred_fallthru
              _
            // Predicated region
            $region45: #{update_unit_forward.3} parent=39 // pred_check
              _
            $region46: #{update_unit_forward.3} parent=39 // pred_check_branch
              %332 = sbr.rel target = $region48
            $region47: #{update_unit_forward.3} parent=39 // pred_region
              loop: start=0, step=1, limit=1
              $region49: #{update_unit_forward.3} parent=47 // loop_pre_header
                _
              $region50: #{update_unit_forward.3} parent=47 // loop_header
                %s335 = sphi 0, %s339
                %p336 = scmp.ge.s32.totalorder %s335, 1
                %s340 = sphi %s326, %s326
                %s341 = sphi %s321, %s321
              $region51: #{update_unit_forward.3} parent=47 // loop_header_branch
                %338 = sbr.rel (%p336) target = $region55
              $region52: #{update_unit_forward.3} parent=47 // loop_body
                %v342 = vld [vmem:[%s340] sm:$0xff]
                %343 = vst [vmem:[%s341] sm:$0xff] %v342
                %v344 = vld [vmem:[%s340 + $0x18] sm:$0xff]
                %345 = vst [vmem:[%s341 + $0x8] sm:$0xff] %v344
                %v346 = vld [vmem:[%s340 + $0x30] sm:$0xff]
                %347 = vst [vmem:[%s341 + $0x10] sm:$0xff] %v346
                %v348 = vld [vmem:[%s340 + $0x48] sm:$0xff]
                %349 = vst [vmem:[%s341 + $0x18] sm:$0xff] %v348
                %v350 = vld [vmem:[%s340 + $0x60] sm:$0xff]
                %351 = vst [vmem:[%s341 + $0x20] sm:$0xff] %v350
                %v352 = vld [vmem:[%s340 + $0x78] sm:$0xff]
                %353 = vst [vmem:[%s341 + $0x28] sm:$0xff] %v352
                %v354 = vld [vmem:[%s340 + $0x90] sm:$0xff]
                %355 = vst [vmem:[%s341 + $0x30] sm:$0xff] %v354
                %v356 = vld [vmem:[%s340 + $0xa8] sm:$0xff]
                %357 = vst [vmem:[%s341 + $0x38] sm:$0xff] %v356
                %v358 = vld [vmem:[%s340 + $0xc0] sm:$0xff]
                %359 = vst [vmem:[%s341 + $0x40] sm:$0xff] %v358
                %v360 = vld [vmem:[%s340 + $0xd8] sm:$0xff]
                %361 = vst [vmem:[%s341 + $0x48] sm:$0xff] %v360
                %v362 = vld [vmem:[%s340 + $0xf0] sm:$0xff]
                %363 = vst [vmem:[%s341 + $0x50] sm:$0xff] %v362
                %v364 = vld [vmem:[%s340 + $0x108] sm:$0xff]
                %365 = vst [vmem:[%s341 + $0x58] sm:$0xff] %v364
                %v366 = vld [vmem:[%s340 + $0x120] sm:$0xff]
                %367 = vst [vmem:[%s341 + $0x60] sm:$0xff] %v366
                %v368 = vld [vmem:[%s340 + $0x138] sm:$0xff]
                %369 = vst [vmem:[%s341 + $0x68] sm:$0xff] %v368
                %v370 = vld [vmem:[%s340 + $0x150] sm:$0xff]
                %371 = vst [vmem:[%s341 + $0x70] sm:$0xff] %v370
                %v372 = vld [vmem:[%s340 + $0x168] sm:$0xff]
                %373 = vst [vmem:[%s341 + $0x78] sm:$0xff] %v372
              $region53: #{update_unit_forward.3} parent=47 // loop_footer
                %s339 = sadd.s32 1, %s335
              $region54: #{update_unit_forward.3} parent=47 // loop_footer_branch
                %334 = sbr.rel target = $region50
              $region55: #{update_unit_forward.3} parent=47 // loop_exit
                _
            $region48: #{update_unit_forward.3} parent=39 // pred_fallthru
              _
          $region40: #{update_unit_forward.3} parent=35 // pred_fallthru
            _
          %418 = vnop
        $region36: #{update_unit_forward.3} parent=27 // pred_fallthru
          _
        // Predicated region
        $region71: #{update_unit_forward.3} parent=27 // pred_check
          %p419 = pneg %p105
        $region72: #{update_unit_forward.3} parent=27 // pred_check_branch
          %421 = sbr.rel (%p419) target = $region74
        $region73: #{update_unit_forward.3} parent=27 // pred_region
          %s422 = smul.u32 16, %s26
          %p423 = scmp.lt.s32.totalorder %s422, 31
          %s424 = scalar_select %p423, %s422, 31
          %s425 = smul.addr %s424, 8
          %s426 = scalar_lea.vmem %s2, %s425
          %s427 = smul.u32 16, %s26
        $region74: #{update_unit_forward.3} parent=27 // pred_fallthru
          _
        // Predicated region
        $region75: #{update_unit_forward.3} parent=27 // pred_check
          %p428 = pneg %p152
        $region76: #{update_unit_forward.3} parent=27 // pred_check_branch
          %430 = sbr.rel (%p428) target = $region78
        $region77: #{update_unit_forward.3} parent=27 // pred_region
          %s431 = smul.u32 16, %s27
          %p432 = scmp.lt.s32.totalorder %s431, 47
          %s433 = scalar_select %p432, %s431, 47
          %s434 = smul.addr %s433, 8
          %s435 = scalar_lea.vmem %s4, %s434
          %s436 = smul.u32 16, %s27
        $region78: #{update_unit_forward.3} parent=27 // pred_fallthru
          _
      $region28: #{update_unit_forward.3} parent=5 // pred_fallthru
        _
      %p437 = scmp.le.s32.totalorder 1, %s19
      %p438 = scmp.lt.s32.totalorder %s19, 7
      %p439 = pnand %p437, %p438
      %p440 = pneg %p439
      // Predicated region
      $region79: #{update_unit_forward.3} parent=5 // pred_check
        _
      $region80: #{update_unit_forward.3} parent=5 // pred_check_branch
        %442 = sbr.rel (%p439) target = $region82
      $region81: #{update_unit_forward.3} parent=5 // pred_region
        %s443 = ssub.s32 %s19, 1
        %s444 = sand.u32 %s72, 1
        %s445 = sand.u32 %s72, 1
        %s446 = smul.addr %s445, 128
        %s447 = scalar_lea.vmem [#allocation4], %s446
        // Predicated region
        $region83: #{update_unit_forward.3} parent=81 // pred_check
          %p448 = pneg %p85
        $region84: #{update_unit_forward.3} parent=81 // pred_check_branch
          %450 = sbr.rel (%p448) target = $region86
        $region85: #{update_unit_forward.3} parent=81 // pred_region
          _
        $region86: #{update_unit_forward.3} parent=81 // pred_fallthru
          _
        %s451 = smul.u32 16, %s28
        %p452 = scmp.lt.s32.totalorder %s451, 31
        %s453 = scalar_select %p452, %s451, 31
        %s454 = smul.addr %s453, 8
        %s455 = scalar_lea.vmem %s0, %s454
        %p456 = pneg %p57
        %p457 = pneg %p54
        %s458 = sand.u32 %s72, 1
        %s459 = sand.u32 %s72, 1
        %s460 = smul.addr %s459, 128
        %s461 = scalar_lea.vmem [#allocation4], %s460
        %p462 = pneg %p85
        %p463 = pneg %p82
        %s464 = smul.u32 16, %s28
        %p465 = scmp.lt.s32.totalorder %s464, 31
        %s466 = scalar_select %p465, %s464, 31
        %s467 = smul.addr %s466, 8
        %s468 = scalar_lea.vmem %s2, %s467
        %p469 = pneg %p111
        %p470 = pneg %p108
        %p471 = pneg %p132
        %p472 = pneg %p129
        %s473 = smul.u32 16, %s29
        %p474 = scmp.lt.s32.totalorder %s473, 47
        %s475 = scalar_select %p474, %s473, 47
        %s476 = smul.addr %s475, 8
        %s477 = scalar_lea.vmem %s4, %s476
        %p478 = pneg %p158
        %p479 = pneg %p155
        %p480 = pneg %p179
        %p481 = pneg %p176
        %p482 = pneg %p200
        %p483 = pneg %p197
        %p484 = pneg %p226
        %p485 = pneg %p223
        %s486 = sand.u32 %s213, 1
        %s487 = scalar_lea.sflag [#allocation6], %s486
        %s488 = sand.u32 %s213, 1
        %s489 = smul.addr %s488, 128
        %s490 = scalar_lea.vmem [#allocation5], %s489
        %p491 = pneg %p252
        %p492 = pneg %p249
        %p493 = scmp.lt.s32.totalorder %s28, 1
        %s494 = scalar_select %p493, %s28, 1
        %s495 = scalar_lea.vmem %s8, %s494
        %p496 = pneg %p278
        %p497 = pneg %p275
        %p498 = scmp.lt.s32.totalorder %s28, 1
        %s499 = scalar_select %p498, %s28, 1
        %s500 = scalar_lea.vmem %s9, %s499
        %s501 = smul.u32 16, %s28
        %p502 = scmp.lt.s32.totalorder %s501, 31
        %s503 = scalar_select %p502, %s501, 31
        %s504 = smul.addr %s503, 8
        %s505 = scalar_lea.vmem %s0, %s504
        %s506 = smul.u32 16, %s28
        %s507 = smul.u32 16, %s28
        %s508 = smul.u32 16, %s28
        %p509 = scmp.lt.s32.totalorder %s508, 31
        %s510 = scalar_select %p509, %s508, 31
        %s511 = smul.addr %s510, 8
        %s512 = scalar_lea.vmem %s2, %s511
        %s513 = smul.u32 16, %s28
        %s514 = smul.u32 16, %s29
        %p515 = scmp.lt.s32.totalorder %s514, 47
        %s516 = scalar_select %p515, %s514, 47
        %s517 = smul.addr %s516, 8
        %s518 = scalar_lea.vmem %s4, %s517
        %s519 = smul.u32 16, %s29
        %s520 = smul.u32 16, %s28
        %p521 = scmp.lt.s32.totalorder %s28, 1
        %s522 = scalar_select %p521, %s28, 1
        %s523 = scalar_lea.vmem %s8, %s522
        %p524 = scmp.lt.s32.totalorder %s28, 1
        %s525 = scalar_select %p524, %s28, 1
        %s526 = scalar_lea.vmem %s9, %s525
        %p527 = scmp.eq.s32.totalorder %s29, 0
        // Predicated region
        $region87: #{update_unit_forward.3} parent=81 // pred_check
          %p528 = pneg %p527
        $region88: #{update_unit_forward.3} parent=81 // pred_check_branch
          %530 = sbr.rel (%p528) target = $region90
        $region89: #{update_unit_forward.3} parent=81 // pred_region
          %v531 = vld [vmem:[%s505] sm:$0xff]
          %v532 = vld [vmem:[%s505 + $0x8] sm:$0xff]
          %v533 = vld [vmem:[%s505 + $0x10] sm:$0xff]
          %v534 = vld [vmem:[%s505 + $0x18] sm:$0xff]
          %v535 = vld [vmem:[%s505 + $0x20] sm:$0xff]
          %v536 = vld [vmem:[%s505 + $0x28] sm:$0xff]
          %v537 = vld [vmem:[%s505 + $0x30] sm:$0xff]
          %v538 = vld [vmem:[%s505 + $0x38] sm:$0xff]
          %v539 = vld [vmem:[%s505 + $0x40] sm:$0xff]
          %v540 = vld [vmem:[%s505 + $0x48] sm:$0xff]
          %v541 = vld [vmem:[%s505 + $0x50] sm:$0xff]
          %v542 = vld [vmem:[%s505 + $0x58] sm:$0xff]
          %v543 = vld [vmem:[%s505 + $0x60] sm:$0xff]
          %v544 = vld [vmem:[%s505 + $0x68] sm:$0xff]
          %v545 = vld [vmem:[%s505 + $0x70] sm:$0xff]
          %v546 = vld [vmem:[%s505 + $0x78] sm:$0xff]
          %v547 = vld [vmem:[%s3] sm:$0xff]
          %v548 = vld [vmem:[%s3 + $0x8] sm:$0xff]
          %v549 = vld [vmem:[%s3 + $0x10] sm:$0xff]
          %v550 = vld [vmem:[%s3 + $0x18] sm:$0xff]
          %v551 = vld [vmem:[%s3 + $0x20] sm:$0xff]
          %v552 = vld [vmem:[%s3 + $0x28] sm:$0xff]
          %v553 = vld [vmem:[%s3 + $0x30] sm:$0xff]
          %v554 = vld [vmem:[%s3 + $0x38] sm:$0xff]
          %v555 = vld [vmem:[%s3 + $0x40] sm:$0xff]
          %v556 = vld [vmem:[%s3 + $0x48] sm:$0xff]
          %v557 = vld [vmem:[%s3 + $0x50] sm:$0xff]
          %v558 = vld [vmem:[%s3 + $0x58] sm:$0xff]
          %v559 = vld [vmem:[%s3 + $0x60] sm:$0xff]
          %v560 = vld [vmem:[%s3 + $0x68] sm:$0xff]
          %v561 = vld [vmem:[%s3 + $0x70] sm:$0xff]
          %v562 = vld [vmem:[%s3 + $0x78] sm:$0xff]
          %v563 = vld [vmem:[%s512] sm:$0xff]
          %v564 = vld [vmem:[%s512 + $0x8] sm:$0xff]
          %v565 = vld [vmem:[%s512 + $0x10] sm:$0xff]
          %v566 = vld [vmem:[%s512 + $0x18] sm:$0xff]
          %v567 = vld [vmem:[%s512 + $0x20] sm:$0xff]
          %v568 = vld [vmem:[%s512 + $0x28] sm:$0xff]
          %v569 = vld [vmem:[%s512 + $0x30] sm:$0xff]
          %v570 = vld [vmem:[%s512 + $0x38] sm:$0xff]
          %v571 = vld [vmem:[%s512 + $0x40] sm:$0xff]
          %v572 = vld [vmem:[%s512 + $0x48] sm:$0xff]
          %v573 = vld [vmem:[%s512 + $0x50] sm:$0xff]
          %v574 = vld [vmem:[%s512 + $0x58] sm:$0xff]
          %v575 = vld [vmem:[%s512 + $0x60] sm:$0xff]
          %v576 = vld [vmem:[%s512 + $0x68] sm:$0xff]
          %v577 = vld [vmem:[%s512 + $0x70] sm:$0xff]
          %v578 = vld [vmem:[%s512 + $0x78] sm:$0xff]
          %v579 = vld [vmem:[%s5] sm:$0xff]
          %v580 = vld [vmem:[%s5 + $0x8] sm:$0xff]
          %v581 = vld [vmem:[%s5 + $0x10] sm:$0xff]
          %v582 = vld [vmem:[%s5 + $0x18] sm:$0xff]
          %v583 = vld [vmem:[%s5 + $0x20] sm:$0xff]
          %v584 = vld [vmem:[%s5 + $0x28] sm:$0xff]
          %v585 = vld [vmem:[%s5 + $0x30] sm:$0xff]
          %v586 = vld [vmem:[%s5 + $0x38] sm:$0xff]
          %v587 = vld [vmem:[%s5 + $0x40] sm:$0xff]
          %v588 = vld [vmem:[%s5 + $0x48] sm:$0xff]
          %v589 = vld [vmem:[%s5 + $0x50] sm:$0xff]
          %v590 = vld [vmem:[%s5 + $0x58] sm:$0xff]
          %v591 = vld [vmem:[%s5 + $0x60] sm:$0xff]
          %v592 = vld [vmem:[%s5 + $0x68] sm:$0xff]
          %v593 = vld [vmem:[%s5 + $0x70] sm:$0xff]
          %v594 = vld [vmem:[%s5 + $0x78] sm:$0xff]
          %595 = vmatprep.subr.mxu0 0.0
          %596 = vmatpush1.msra.mxu0 %v579
          %597 = vmatprep.subr.mxu0 0.0
          %598 = vmatpush1.msra.mxu0 %v580
          %599 = vmatprep.subr.mxu0 0.0
          %600 = vmatpush1.msra.mxu0 %v581
          %601 = vmatprep.subr.mxu0 0.0
          %602 = vmatpush1.msra.mxu0 %v582
          %603 = vmatprep.subr.mxu0 0.0
          %604 = vmatpush1.msra.mxu0 %v583
          %605 = vmatprep.subr.mxu0 0.0
          %606 = vmatpush1.msra.mxu0 %v584
          %607 = vmatprep.subr.mxu0 0.0
          %608 = vmatpush1.msra.mxu0 %v585
          %609 = vmatprep.subr.mxu0 0.0
          %610 = vmatpush1.msra.mxu0 %v586
          %611 = vmatprep.subr.mxu0 0.0
          %612 = vmatpush1.msra.mxu0 %v587
          %613 = vmatprep.subr.mxu0 0.0
          %614 = vmatpush1.msra.mxu0 %v588
          %615 = vmatprep.subr.mxu0 0.0
          %616 = vmatpush1.msra.mxu0 %v589
          %617 = vmatprep.subr.mxu0 0.0
          %618 = vmatpush1.msra.mxu0 %v590
          %619 = vmatprep.subr.mxu0 0.0
          %620 = vmatpush1.msra.mxu0 %v591
          %621 = vmatprep.subr.mxu0 0.0
          %622 = vmatpush1.msra.mxu0 %v592
          %623 = vmatprep.subr.mxu0 0.0
          %624 = vmatpush1.msra.mxu0 %v593
          %625 = vmatprep.subr.mxu0 0.0
          %626 = vmatpush1.msra.mxu0 %v594
          %627 = vmatprep.subr.mxu0 0.0
          %628 = vmatpush1.msra.mxu0 0.0
          %629 = vmatprep.subr.mxu0 0.0
          %630 = vmatpush1.msra.mxu0 0.0
          %631 = vmatprep.subr.mxu0 0.0
          %632 = vmatpush1.msra.mxu0 0.0
          %633 = vmatprep.subr.mxu0 0.0
          %634 = vmatpush1.msra.mxu0 0.0
          %635 = vmatprep.subr.mxu0 0.0
          %636 = vmatpush1.msra.mxu0 0.0
          %637 = vmatprep.subr.mxu0 0.0
          %638 = vmatpush1.msra.mxu0 0.0
          %639 = vmatprep.subr.mxu0 0.0
          %640 = vmatpush1.msra.mxu0 0.0
          %641 = vmatprep.subr.mxu0 0.0
          %642 = vmatpush1.msra.mxu0 0.0
          %643 = vmatprep.subr.mxu0 0.0
          %644 = vmatpush1.msra.mxu0 0.0
          %645 = vmatprep.subr.mxu0 0.0
          %646 = vmatpush1.msra.mxu0 0.0
          %647 = vmatprep.subr.mxu0 0.0
          %648 = vmatpush1.msra.mxu0 0.0
          %649 = vmatprep.subr.mxu0 0.0
          %650 = vmatpush1.msra.mxu0 0.0
          %651 = vmatprep.subr.mxu0 0.0
          %652 = vmatpush1.msra.mxu0 0.0
          %653 = vmatprep.subr.mxu0 0.0
          %654 = vmatpush1.msra.mxu0 0.0
          %655 = vmatprep.subr.mxu0 0.0
          %656 = vmatpush1.msra.mxu0 0.0
          %657 = vmatprep.subr.mxu0 0.0
          %658 = vmatpush1.msra.mxu0 0.0
          %659 = vmatprep.mubr.f32.mxu0 0.0
          %660 = vmatmul.mubr.f32.gmra.mrb[0].mxu0 %v563
          %v661 = vpop.f32.mrb[0].mxu0
          %v662 = vadd.f32 0.0, %v661
          %v663 = vpop.f32.mrb[0].mxu0
          %664 = vmatprep.mubr.f32.mxu0 0.0
          %665 = vmatmul.mubr.f32.gmra.mrb[0].mxu0 %v564
          %v666 = vpop.f32.mrb[0].mxu0
          %v667 = vadd.f32 0.0, %v666
          %v668 = vpop.f32.mrb[0].mxu0
          %669 = vmatprep.mubr.f32.mxu0 0.0
          %670 = vmatmul.mubr.f32.gmra.mrb[0].mxu0 %v565
          %v671 = vpop.f32.mrb[0].mxu0
          %v672 = vadd.f32 0.0, %v671
          %v673 = vpop.f32.mrb[0].mxu0
          %674 = vmatprep.mubr.f32.mxu0 0.0
          %675 = vmatmul.mubr.f32.gmra.mrb[0].mxu0 %v566
          %v676 = vpop.f32.mrb[0].mxu0
          %v677 = vadd.f32 0.0, %v676
          %v678 = vpop.f32.mrb[0].mxu0
          %679 = vmatprep.mubr.f32.mxu0 0.0
          %680 = vmatmul.mubr.f32.gmra.mrb[0].mxu0 %v567
          %v681 = vpop.f32.mrb[0].mxu0
          %v682 = vadd.f32 0.0, %v681
          %v683 = vpop.f32.mrb[0].mxu0
          %684 = vmatprep.mubr.f32.mxu0 0.0
          %685 = vmatmul.mubr.f32.gmra.mrb[0].mxu0 %v568
          %v686 = vpop.f32.mrb[0].mxu0
          %v687 = vadd.f32 0.0, %v686
          %v688 = vpop.f32.mrb[0].mxu0
          %689 = vmatprep.mubr.f32.mxu0 0.0
          %690 = vmatmul.mubr.f32.gmra.mrb[0].mxu0 %v569
          %v691 = vpop.f32.mrb[0].mxu0
          %v692 = vadd.f32 0.0, %v691
          %v693 = vpop.f32.mrb[0].mxu0
          %694 = vmatprep.mubr.f32.mxu0 0.0
          %695 = vmatmul.mubr.f32.gmra.mrb[0].mxu0 %v570
          %v696 = vpop.f32.mrb[0].mxu0
          %v697 = vadd.f32 0.0, %v696
          %v698 = vpop.f32.mrb[0].mxu0
          %699 = vmatprep.mubr.f32.mxu0 0.0
          %700 = vmatmul.mubr.f32.gmra.mrb[0].mxu0 %v571
          %v701 = vpop.f32.mrb[0].mxu0
          %v702 = vadd.f32 0.0, %v701
          %v703 = vpop.f32.mrb[0].mxu0
          %704 = vmatprep.mubr.f32.mxu0 0.0
          %705 = vmatmul.mubr.f32.gmra.mrb[0].mxu0 %v572
          %v706 = vpop.f32.mrb[0].mxu0
          %v707 = vadd.f32 0.0, %v706
          %v708 = vpop.f32.mrb[0].mxu0
          %709 = vmatprep.mubr.f32.mxu0 0.0
          %710 = vmatmul.mubr.f32.gmra.mrb[0].mxu0 %v573
          %v711 = vpop.f32.mrb[0].mxu0
          %v712 = vadd.f32 0.0, %v711
          %v713 = vpop.f32.mrb[0].mxu0
          %714 = vmatprep.mubr.f32.mxu0 0.0
          %715 = vmatmul.mubr.f32.gmra.mrb[0].mxu0 %v574
          %v716 = vpop.f32.mrb[0].mxu0
          %v717 = vadd.f32 0.0, %v716
          %v718 = vpop.f32.mrb[0].mxu0
          %719 = vmatprep.mubr.f32.mxu0 0.0
          %720 = vmatmul.mubr.f32.gmra.mrb[0].mxu0 %v575
          %v721 = vpop.f32.mrb[0].mxu0
          %v722 = vadd.f32 0.0, %v721
          %v723 = vpop.f32.mrb[0].mxu0
          %724 = vmatprep.mubr.f32.mxu0 0.0
          %725 = vmatmul.mubr.f32.gmra.mrb[0].mxu0 %v576
          %v726 = vpop.f32.mrb[0].mxu0
          %v727 = vadd.f32 0.0, %v726
          %v728 = vpop.f32.mrb[0].mxu0
          %729 = vmatprep.mubr.f32.mxu0 0.0
          %730 = vmatmul.mubr.f32.gmra.mrb[0].mxu0 %v577
          %v731 = vpop.f32.mrb[0].mxu0
          %v732 = vadd.f32 0.0, %v731
          %v733 = vpop.f32.mrb[0].mxu0
          %734 = vmatprep.mubr.f32.mxu0 0.0
          %735 = vmatmul.mubr.f32.gmra.mrb[0].mxu0 %v578
          %v736 = vpop.f32.mrb[0].mxu0
          %v737 = vadd.f32 0.0, %v736
          %v738 = vpop.f32.mrb[0].mxu0
          %739 = vdwg.mxu0
          %740 = vmatprep.subr.mxu0 0.0
          %741 = vmatpush1.msra.mxu0 %v547
          %742 = vmatprep.subr.mxu0 0.0
          %743 = vmatpush1.msra.mxu0 %v548
          %744 = vmatprep.subr.mxu0 0.0
          %745 = vmatpush1.msra.mxu0 %v549
          %746 = vmatprep.subr.mxu0 0.0
          %747 = vmatpush1.msra.mxu0 %v550
          %748 = vmatprep.subr.mxu0 0.0
          %749 = vmatpush1.msra.mxu0 %v551
          %750 = vmatprep.subr.mxu0 0.0
          %751 = vmatpush1.msra.mxu0 %v552
          %752 = vmatprep.subr.mxu0 0.0
          %753 = vmatpush1.msra.mxu0 %v553
          %754 = vmatprep.subr.mxu0 0.0
          %755 = vmatpush1.msra.mxu0 %v554
          %756 = vmatprep.subr.mxu0 0.0
          %757 = vmatpush1.msra.mxu0 %v555
          %758 = vmatprep.subr.mxu0 0.0
          %759 = vmatpush1.msra.mxu0 %v556
          %760 = vmatprep.subr.mxu0 0.0
          %761 = vmatpush1.msra.mxu0 %v557
          %762 = vmatprep.subr.mxu0 0.0
          %763 = vmatpush1.msra.mxu0 %v558
          %764 = vmatprep.subr.mxu0 0.0
          %765 = vmatpush1.msra.mxu0 %v559
          %766 = vmatprep.subr.mxu0 0.0
          %767 = vmatpush1.msra.mxu0 %v560
          %768 = vmatprep.subr.mxu0 0.0
          %769 = vmatpush1.msra.mxu0 %v561
          %770 = vmatprep.subr.mxu0 0.0
          %771 = vmatpush1.msra.mxu0 %v562
          %772 = vmatprep.subr.mxu0 0.0
          %773 = vmatpush1.msra.mxu0 0.0
          %774 = vmatprep.subr.mxu0 0.0
          %775 = vmatpush1.msra.mxu0 0.0
          %776 = vmatprep.subr.mxu0 0.0
          %777 = vmatpush1.msra.mxu0 0.0
          %778 = vmatprep.subr.mxu0 0.0
          %779 = vmatpush1.msra.mxu0 0.0
          %780 = vmatprep.subr.mxu0 0.0
          %781 = vmatpush1.msra.mxu0 0.0
          %782 = vmatprep.subr.mxu0 0.0
          %783 = vmatpush1.msra.mxu0 0.0
          %784 = vmatprep.subr.mxu0 0.0
          %785 = vmatpush1.msra.mxu0 0.0
          %786 = vmatprep.subr.mxu0 0.0
          %787 = vmatpush1.msra.mxu0 0.0
          %788 = vmatprep.subr.mxu0 0.0
          %789 = vmatpush1.msra.mxu0 0.0
          %790 = vmatprep.subr.mxu0 0.0
          %791 = vmatpush1.msra.mxu0 0.0
          %792 = vmatprep.subr.mxu0 0.0
          %793 = vmatpush1.msra.mxu0 0.0
          %794 = vmatprep.subr.mxu0 0.0
          %795 = vmatpush1.msra.mxu0 0.0
          %796 = vmatprep.subr.mxu0 0.0
          %797 = vmatpush1.msra.mxu0 0.0
          %798 = vmatprep.subr.mxu0 0.0
          %799 = vmatpush1.msra.mxu0 0.0
          %800 = vmatprep.subr.mxu0 0.0
          %801 = vmatpush1.msra.mxu0 0.0
          %802 = vmatprep.subr.mxu0 0.0
          %803 = vmatpush1.msra.mxu0 0.0
          %804 = vmatprep.mubr.f32.mxu0 0.0
          %805 = vmatmul.mubr.f32.gmra.mrb[0].mxu0 %v531
          %v806 = vpop.f32.mrb[0].mxu0
          %v807 = vadd.f32 %v662, %v806
          %v808 = vpop.f32.mrb[0].mxu0
          %809 = vmatprep.mubr.f32.mxu0 0.0
          %810 = vmatmul.mubr.f32.gmra.mrb[0].mxu0 %v532
          %v811 = vpop.f32.mrb[0].mxu0
          %v812 = vadd.f32 %v667, %v811
          %v813 = vpop.f32.mrb[0].mxu0
          %814 = vmatprep.mubr.f32.mxu0 0.0
          %815 = vmatmul.mubr.f32.gmra.mrb[0].mxu0 %v533
          %v816 = vpop.f32.mrb[0].mxu0
          %v817 = vadd.f32 %v672, %v816
          %v818 = vpop.f32.mrb[0].mxu0
          %819 = vmatprep.mubr.f32.mxu0 0.0
          %820 = vmatmul.mubr.f32.gmra.mrb[0].mxu0 %v534
          %v821 = vpop.f32.mrb[0].mxu0
          %v822 = vadd.f32 %v677, %v821
          %v823 = vpop.f32.mrb[0].mxu0
          %824 = vmatprep.mubr.f32.mxu0 0.0
          %825 = vmatmul.mubr.f32.gmra.mrb[0].mxu0 %v535
          %v826 = vpop.f32.mrb[0].mxu0
          %v827 = vadd.f32 %v682, %v826
          %v828 = vpop.f32.mrb[0].mxu0
          %829 = vmatprep.mubr.f32.mxu0 0.0
          %830 = vmatmul.mubr.f32.gmra.mrb[0].mxu0 %v536
          %v831 = vpop.f32.mrb[0].mxu0
          %v832 = vadd.f32 %v687, %v831
          %v833 = vpop.f32.mrb[0].mxu0
          %834 = vmatprep.mubr.f32.mxu0 0.0
          %835 = vmatmul.mubr.f32.gmra.mrb[0].mxu0 %v537
          %v836 = vpop.f32.mrb[0].mxu0
          %v837 = vadd.f32 %v692, %v836
          %v838 = vpop.f32.mrb[0].mxu0
          %839 = vmatprep.mubr.f32.mxu0 0.0
          %840 = vmatmul.mubr.f32.gmra.mrb[0].mxu0 %v538
          %v841 = vpop.f32.mrb[0].mxu0
          %v842 = vadd.f32 %v697, %v841
          %v843 = vpop.f32.mrb[0].mxu0
          %844 = vmatprep.mubr.f32.mxu0 0.0
          %845 = vmatmul.mubr.f32.gmra.mrb[0].mxu0 %v539
          %v846 = vpop.f32.mrb[0].mxu0
          %v847 = vadd.f32 %v702, %v846
          %v848 = vpop.f32.mrb[0].mxu0
          %849 = vmatprep.mubr.f32.mxu0 0.0
          %850 = vmatmul.mubr.f32.gmra.mrb[0].mxu0 %v540
          %v851 = vpop.f32.mrb[0].mxu0
          %v852 = vadd.f32 %v707, %v851
          %v853 = vpop.f32.mrb[0].mxu0
          %854 = vmatprep.mubr.f32.mxu0 0.0
          %855 = vmatmul.mubr.f32.gmra.mrb[0].mxu0 %v541
          %v856 = vpop.f32.mrb[0].mxu0
          %v857 = vadd.f32 %v712, %v856
          %v858 = vpop.f32.mrb[0].mxu0
          %859 = vmatprep.mubr.f32.mxu0 0.0
          %860 = vmatmul.mubr.f32.gmra.mrb[0].mxu0 %v542
          %v861 = vpop.f32.mrb[0].mxu0
          %v862 = vadd.f32 %v717, %v861
          %v863 = vpop.f32.mrb[0].mxu0
          %864 = vmatprep.mubr.f32.mxu0 0.0
          %865 = vmatmul.mubr.f32.gmra.mrb[0].mxu0 %v543
          %v866 = vpop.f32.mrb[0].mxu0
          %v867 = vadd.f32 %v722, %v866
          %v868 = vpop.f32.mrb[0].mxu0
          %869 = vmatprep.mubr.f32.mxu0 0.0
          %870 = vmatmul.mubr.f32.gmra.mrb[0].mxu0 %v544
          %v871 = vpop.f32.mrb[0].mxu0
          %v872 = vadd.f32 %v727, %v871
          %v873 = vpop.f32.mrb[0].mxu0
          %874 = vmatprep.mubr.f32.mxu0 0.0
          %875 = vmatmul.mubr.f32.gmra.mrb[0].mxu0 %v545
          %v876 = vpop.f32.mrb[0].mxu0
          %v877 = vadd.f32 %v732, %v876
          %v878 = vpop.f32.mrb[0].mxu0
          %879 = vmatprep.mubr.f32.mxu0 0.0
          %880 = vmatmul.mubr.f32.gmra.mrb[0].mxu0 %v546
          %v881 = vpop.f32.mrb[0].mxu0
          %v882 = vadd.f32 %v737, %v881
          %v883 = vpop.f32.mrb[0].mxu0
          %884 = vdwg.mxu0
          %v885 = vld [vmem:[%s6] sm:$0x1]
          %v887 = vlaneseq
          %v888 = vshrl.u32 %v887, 7
          %v889 = vsub.s32 0, %v888
          %v890 = vrot.slane %v885, %v889
          %v892 = vadd.f32 %v807, %v890
          %v893 = vadd.f32 %v812, %v890
          %v894 = vadd.f32 %v817, %v890
          %v895 = vadd.f32 %v822, %v890
          %v896 = vadd.f32 %v827, %v890
          %v897 = vadd.f32 %v832, %v890
          %v898 = vadd.f32 %v837, %v890
          %v899 = vadd.f32 %v842, %v890
          %v900 = vadd.f32 %v847, %v890
          %v901 = vadd.f32 %v852, %v890
          %v902 = vadd.f32 %v857, %v890
          %v903 = vadd.f32 %v862, %v890
          %v904 = vadd.f32 %v867, %v890
          %v905 = vadd.f32 %v872, %v890
          %v906 = vadd.f32 %v877, %v890
          %v907 = vadd.f32 %v882, %v890
          %908 = vst [vmem:[#allocation2] sm:$0xff] %v892
          %909 = vst [vmem:[#allocation2 + $0x8] sm:$0xff] %v893
          %910 = vst [vmem:[#allocation2 + $0x10] sm:$0xff] %v894
          %911 = vst [vmem:[#allocation2 + $0x18] sm:$0xff] %v895
          %912 = vst [vmem:[#allocation2 + $0x20] sm:$0xff] %v896
          %913 = vst [vmem:[#allocation2 + $0x28] sm:$0xff] %v897
          %914 = vst [vmem:[#allocation2 + $0x30] sm:$0xff] %v898
          %915 = vst [vmem:[#allocation2 + $0x38] sm:$0xff] %v899
          %916 = vst [vmem:[#allocation2 + $0x40] sm:$0xff] %v900
          %917 = vst [vmem:[#allocation2 + $0x48] sm:$0xff] %v901
          %918 = vst [vmem:[#allocation2 + $0x50] sm:$0xff] %v902
          %919 = vst [vmem:[#allocation2 + $0x58] sm:$0xff] %v903
          %920 = vst [vmem:[#allocation2 + $0x60] sm:$0xff] %v904
          %921 = vst [vmem:[#allocation2 + $0x68] sm:$0xff] %v905
          %922 = vst [vmem:[#allocation2 + $0x70] sm:$0xff] %v906
          %923 = vst [vmem:[#allocation2 + $0x78] sm:$0xff] %v907
          %vm924 = vcmask 7168
          %925 = vst.msk [vmem:[#allocation3] sm:$0xff] %vm924, 0.0
          %926 = vst.msk [vmem:[#allocation3 + $0x8] sm:$0xff] %vm924, 0.0
          %927 = vst.msk [vmem:[#allocation3 + $0x10] sm:$0xff] %vm924, 0.0
          %928 = vst.msk [vmem:[#allocation3 + $0x18] sm:$0xff] %vm924, 0.0
          %929 = vst.msk [vmem:[#allocation3 + $0x20] sm:$0xff] %vm924, 0.0
          %930 = vst.msk [vmem:[#allocation3 + $0x28] sm:$0xff] %vm924, 0.0
          %931 = vst.msk [vmem:[#allocation3 + $0x30] sm:$0xff] %vm924, 0.0
          %932 = vst.msk [vmem:[#allocation3 + $0x38] sm:$0xff] %vm924, 0.0
          %933 = vst.msk [vmem:[#allocation3 + $0x40] sm:$0xff] %vm924, 0.0
          %934 = vst.msk [vmem:[#allocation3 + $0x48] sm:$0xff] %vm924, 0.0
          %935 = vst.msk [vmem:[#allocation3 + $0x50] sm:$0xff] %vm924, 0.0
          %936 = vst.msk [vmem:[#allocation3 + $0x58] sm:$0xff] %vm924, 0.0
          %937 = vst.msk [vmem:[#allocation3 + $0x60] sm:$0xff] %vm924, 0.0
          %938 = vst.msk [vmem:[#allocation3 + $0x68] sm:$0xff] %vm924, 0.0
          %939 = vst.msk [vmem:[#allocation3 + $0x70] sm:$0xff] %vm924, 0.0
          %940 = vst.msk [vmem:[#allocation3 + $0x78] sm:$0xff] %vm924, 0.0
        $region90: #{update_unit_forward.3} parent=81 // pred_fallthru
          _
        %v941 = vld [vmem:[%s447] sm:$0xff]
        %v942 = vld [vmem:[%s447 + $0x8] sm:$0xff]
        %v943 = vld [vmem:[%s447 + $0x10] sm:$0xff]
        %v944 = vld [vmem:[%s447 + $0x18] sm:$0xff]
        %v945 = vld [vmem:[%s447 + $0x20] sm:$0xff]
        %v946 = vld [vmem:[%s447 + $0x28] sm:$0xff]
        %v947 = vld [vmem:[%s447 + $0x30] sm:$0xff]
        %v948 = vld [vmem:[%s447 + $0x38] sm:$0xff]
        %v949 = vld [vmem:[%s447 + $0x40] sm:$0xff]
        %v950 = vld [vmem:[%s447 + $0x48] sm:$0xff]
        %v951 = vld [vmem:[%s447 + $0x50] sm:$0xff]
        %v952 = vld [vmem:[%s447 + $0x58] sm:$0xff]
        %v953 = vld [vmem:[%s447 + $0x60] sm:$0xff]
        %v954 = vld [vmem:[%s447 + $0x68] sm:$0xff]
        %v955 = vld [vmem:[%s447 + $0x70] sm:$0xff]
        %v956 = vld [vmem:[%s447 + $0x78] sm:$0xff]
        %v957 = vld [vmem:[#allocation2] sm:$0xff]
        %v958 = vld [vmem:[#allocation2 + $0x8] sm:$0xff]
        %v959 = vld [vmem:[#allocation2 + $0x10] sm:$0xff]
        %v960 = vld [vmem:[#allocation2 + $0x18] sm:$0xff]
        %v961 = vld [vmem:[#allocation2 + $0x20] sm:$0xff]
        %v962 = vld [vmem:[#allocation2 + $0x28] sm:$0xff]
        %v963 = vld [vmem:[#allocation2 + $0x30] sm:$0xff]
        %v964 = vld [vmem:[#allocation2 + $0x38] sm:$0xff]
        %v965 = vld [vmem:[#allocation2 + $0x40] sm:$0xff]
        %v966 = vld [vmem:[#allocation2 + $0x48] sm:$0xff]
        %v967 = vld [vmem:[#allocation2 + $0x50] sm:$0xff]
        %v968 = vld [vmem:[#allocation2 + $0x58] sm:$0xff]
        %v969 = vld [vmem:[#allocation2 + $0x60] sm:$0xff]
        %v970 = vld [vmem:[#allocation2 + $0x68] sm:$0xff]
        %v971 = vld [vmem:[#allocation2 + $0x70] sm:$0xff]
        %v972 = vld [vmem:[#allocation2 + $0x78] sm:$0xff]
        %v973 = vld [vmem:[%s518] sm:$0xff]
        %v974 = vld [vmem:[%s518 + $0x8] sm:$0xff]
        %v975 = vld [vmem:[%s518 + $0x10] sm:$0xff]
        %v976 = vld [vmem:[%s518 + $0x18] sm:$0xff]
        %v977 = vld [vmem:[%s518 + $0x20] sm:$0xff]
        %v978 = vld [vmem:[%s518 + $0x28] sm:$0xff]
        %v979 = vld [vmem:[%s518 + $0x30] sm:$0xff]
        %v980 = vld [vmem:[%s518 + $0x38] sm:$0xff]
        %v981 = vld [vmem:[%s518 + $0x40] sm:$0xff]
        %v982 = vld [vmem:[%s518 + $0x48] sm:$0xff]
        %v983 = vld [vmem:[%s518 + $0x50] sm:$0xff]
        %v984 = vld [vmem:[%s518 + $0x58] sm:$0xff]
        %v985 = vld [vmem:[%s518 + $0x60] sm:$0xff]
        %v986 = vld [vmem:[%s518 + $0x68] sm:$0xff]
        %v987 = vld [vmem:[%s518 + $0x70] sm:$0xff]
        %v988 = vld [vmem:[%s518 + $0x78] sm:$0xff]
        %989 = vmatprep.subr.mxu0 0.0
        %990 = vmatpush1.msra.mxu0 %v973
        %991 = vmatprep.subr.mxu0 0.0
        %992 = vmatpush1.msra.mxu0 %v974
        %993 = vmatprep.subr.mxu0 0.0
        %994 = vmatpush1.msra.mxu0 %v975
        %995 = vmatprep.subr.mxu0 0.0
        %996 = vmatpush1.msra.mxu0 %v976
        %997 = vmatprep.subr.mxu0 0.0
        %998 = vmatpush1.msra.mxu0 %v977
        %999 = vmatprep.subr.mxu0 0.0
        %1000 = vmatpush1.msra.mxu0 %v978
        %1001 = vmatprep.subr.mxu0 0.0
        %1002 = vmatpush1.msra.mxu0 %v979
        %1003 = vmatprep.subr.mxu0 0.0
        %1004 = vmatpush1.msra.mxu0 %v980
        %1005 = vmatprep.subr.mxu0 0.0
        %1006 = vmatpush1.msra.mxu0 %v981
        %1007 = vmatprep.subr.mxu0 0.0
        %1008 = vmatpush1.msra.mxu0 %v982
        %1009 = vmatprep.subr.mxu0 0.0
        %1010 = vmatpush1.msra.mxu0 %v983
        %1011 = vmatprep.subr.mxu0 0.0
        %1012 = vmatpush1.msra.mxu0 %v984
        %1013 = vmatprep.subr.mxu0 0.0
        %1014 = vmatpush1.msra.mxu0 %v985
        %1015 = vmatprep.subr.mxu0 0.0
        %1016 = vmatpush1.msra.mxu0 %v986
        %1017 = vmatprep.subr.mxu0 0.0
        %1018 = vmatpush1.msra.mxu0 %v987
        %1019 = vmatprep.subr.mxu0 0.0
        %1020 = vmatpush1.msra.mxu0 %v988
        %1021 = vmatprep.subr.mxu0 0.0
        %1022 = vmatpush1.msra.mxu0 0.0
        %1023 = vmatprep.subr.mxu0 0.0
        %1024 = vmatpush1.msra.mxu0 0.0
        %1025 = vmatprep.subr.mxu0 0.0
        %1026 = vmatpush1.msra.mxu0 0.0
        %1027 = vmatprep.subr.mxu0 0.0
        %1028 = vmatpush1.msra.mxu0 0.0
        %1029 = vmatprep.subr.mxu0 0.0
        %1030 = vmatpush1.msra.mxu0 0.0
        %1031 = vmatprep.subr.mxu0 0.0
        %1032 = vmatpush1.msra.mxu0 0.0
        %1033 = vmatprep.subr.mxu0 0.0
        %1034 = vmatpush1.msra.mxu0 0.0
        %1035 = vmatprep.subr.mxu0 0.0
        %1036 = vmatpush1.msra.mxu0 0.0
        %1037 = vmatprep.subr.mxu0 0.0
        %1038 = vmatpush1.msra.mxu0 0.0
        %1039 = vmatprep.subr.mxu0 0.0
        %1040 = vmatpush1.msra.mxu0 0.0
        %1041 = vmatprep.subr.mxu0 0.0
        %1042 = vmatpush1.msra.mxu0 0.0
        %1043 = vmatprep.subr.mxu0 0.0
        %1044 = vmatpush1.msra.mxu0 0.0
        %1045 = vmatprep.subr.mxu0 0.0
        %1046 = vmatpush1.msra.mxu0 0.0
        %1047 = vmatprep.subr.mxu0 0.0
        %1048 = vmatpush1.msra.mxu0 0.0
        %1049 = vmatprep.subr.mxu0 0.0
        %1050 = vmatpush1.msra.mxu0 0.0
        %1051 = vmatprep.subr.mxu0 0.0
        %1052 = vmatpush1.msra.mxu0 0.0
        %1053 = vmatprep.mubr.f32.mxu0 0.0
        %1054 = vmatmul.mubr.f32.gmra.mrb[0].mxu0 %v941
        %v1055 = vpop.f32.mrb[0].mxu0
        %v1056 = vadd.f32 0.0, %v1055
        %v1057 = vpop.f32.mrb[0].mxu0
        %1058 = vmatprep.mubr.f32.mxu0 0.0
        %1059 = vmatmul.mubr.f32.gmra.mrb[0].mxu0 %v942
        %v1060 = vpop.f32.mrb[0].mxu0
        %v1061 = vadd.f32 0.0, %v1060
        %v1062 = vpop.f32.mrb[0].mxu0
        %1063 = vmatprep.mubr.f32.mxu0 0.0
        %1064 = vmatmul.mubr.f32.gmra.mrb[0].mxu0 %v943
        %v1065 = vpop.f32.mrb[0].mxu0
        %v1066 = vadd.f32 0.0, %v1065
        %v1067 = vpop.f32.mrb[0].mxu0
        %1068 = vmatprep.mubr.f32.mxu0 0.0
        %1069 = vmatmul.mubr.f32.gmra.mrb[0].mxu0 %v944
        %v1070 = vpop.f32.mrb[0].mxu0
        %v1071 = vadd.f32 0.0, %v1070
        %v1072 = vpop.f32.mrb[0].mxu0
        %1073 = vmatprep.mubr.f32.mxu0 0.0
        %1074 = vmatmul.mubr.f32.gmra.mrb[0].mxu0 %v945
        %v1075 = vpop.f32.mrb[0].mxu0
        %v1076 = vadd.f32 0.0, %v1075
        %v1077 = vpop.f32.mrb[0].mxu0
        %1078 = vmatprep.mubr.f32.mxu0 0.0
        %1079 = vmatmul.mubr.f32.gmra.mrb[0].mxu0 %v946
        %v1080 = vpop.f32.mrb[0].mxu0
        %v1081 = vadd.f32 0.0, %v1080
        %v1082 = vpop.f32.mrb[0].mxu0
        %1083 = vmatprep.mubr.f32.mxu0 0.0
        %1084 = vmatmul.mubr.f32.gmra.mrb[0].mxu0 %v947
        %v1085 = vpop.f32.mrb[0].mxu0
        %v1086 = vadd.f32 0.0, %v1085
        %v1087 = vpop.f32.mrb[0].mxu0
        %1088 = vmatprep.mubr.f32.mxu0 0.0
        %1089 = vmatmul.mubr.f32.gmra.mrb[0].mxu0 %v948
        %v1090 = vpop.f32.mrb[0].mxu0
        %v1091 = vadd.f32 0.0, %v1090
        %v1092 = vpop.f32.mrb[0].mxu0
        %1093 = vmatprep.mubr.f32.mxu0 0.0
        %1094 = vmatmul.mubr.f32.gmra.mrb[0].mxu0 %v949
        %v1095 = vpop.f32.mrb[0].mxu0
        %v1096 = vadd.f32 0.0, %v1095
        %v1097 = vpop.f32.mrb[0].mxu0
        %1098 = vmatprep.mubr.f32.mxu0 0.0
        %1099 = vmatmul.mubr.f32.gmra.mrb[0].mxu0 %v950
        %v1100 = vpop.f32.mrb[0].mxu0
        %v1101 = vadd.f32 0.0, %v1100
        %v1102 = vpop.f32.mrb[0].mxu0
        %1103 = vmatprep.mubr.f32.mxu0 0.0
        %1104 = vmatmul.mubr.f32.gmra.mrb[0].mxu0 %v951
        %v1105 = vpop.f32.mrb[0].mxu0
        %v1106 = vadd.f32 0.0, %v1105
        %v1107 = vpop.f32.mrb[0].mxu0
        %1108 = vmatprep.mubr.f32.mxu0 0.0
        %1109 = vmatmul.mubr.f32.gmra.mrb[0].mxu0 %v952
        %v1110 = vpop.f32.mrb[0].mxu0
        %v1111 = vadd.f32 0.0, %v1110
        %v1112 = vpop.f32.mrb[0].mxu0
        %1113 = vmatprep.mubr.f32.mxu0 0.0
        %1114 = vmatmul.mubr.f32.gmra.mrb[0].mxu0 %v953
        %v1115 = vpop.f32.mrb[0].mxu0
        %v1116 = vadd.f32 0.0, %v1115
        %v1117 = vpop.f32.mrb[0].mxu0
        %1118 = vmatprep.mubr.f32.mxu0 0.0
        %1119 = vmatmul.mubr.f32.gmra.mrb[0].mxu0 %v954
        %v1120 = vpop.f32.mrb[0].mxu0
        %v1121 = vadd.f32 0.0, %v1120
        %v1122 = vpop.f32.mrb[0].mxu0
        %1123 = vmatprep.mubr.f32.mxu0 0.0
        %1124 = vmatmul.mubr.f32.gmra.mrb[0].mxu0 %v955
        %v1125 = vpop.f32.mrb[0].mxu0
        %v1126 = vadd.f32 0.0, %v1125
        %v1127 = vpop.f32.mrb[0].mxu0
        %1128 = vmatprep.mubr.f32.mxu0 0.0
        %1129 = vmatmul.mubr.f32.gmra.mrb[0].mxu0 %v956
        %v1130 = vpop.f32.mrb[0].mxu0
        %v1131 = vadd.f32 0.0, %v1130
        %v1132 = vpop.f32.mrb[0].mxu0
        %1133 = vdwg.mxu0
        %v1134 = vadd.f32 %v957, %v1056
        %v1135 = vadd.f32 %v958, %v1061
        %v1136 = vadd.f32 %v959, %v1066
        %v1137 = vadd.f32 %v960, %v1071
        %v1138 = vadd.f32 %v961, %v1076
        %v1139 = vadd.f32 %v962, %v1081
        %v1140 = vadd.f32 %v963, %v1086
        %v1141 = vadd.f32 %v964, %v1091
        %v1142 = vadd.f32 %v965, %v1096
        %v1143 = vadd.f32 %v966, %v1101
        %v1144 = vadd.f32 %v967, %v1106
        %v1145 = vadd.f32 %v968, %v1111
        %v1146 = vadd.f32 %v969, %v1116
        %v1147 = vadd.f32 %v970, %v1121
        %v1148 = vadd.f32 %v971, %v1126
        %v1149 = vadd.f32 %v972, %v1131
        %1150 = vst [vmem:[#allocation2] sm:$0xff] %v1134
        %1151 = vst [vmem:[#allocation2 + $0x8] sm:$0xff] %v1135
        %1152 = vst [vmem:[#allocation2 + $0x10] sm:$0xff] %v1136
        %1153 = vst [vmem:[#allocation2 + $0x18] sm:$0xff] %v1137
        %1154 = vst [vmem:[#allocation2 + $0x20] sm:$0xff] %v1138
        %1155 = vst [vmem:[#allocation2 + $0x28] sm:$0xff] %v1139
        %1156 = vst [vmem:[#allocation2 + $0x30] sm:$0xff] %v1140
        %1157 = vst [vmem:[#allocation2 + $0x38] sm:$0xff] %v1141
        %1158 = vst [vmem:[#allocation2 + $0x40] sm:$0xff] %v1142
        %1159 = vst [vmem:[#allocation2 + $0x48] sm:$0xff] %v1143
        %1160 = vst [vmem:[#allocation2 + $0x50] sm:$0xff] %v1144
        %1161 = vst [vmem:[#allocation2 + $0x58] sm:$0xff] %v1145
        %1162 = vst [vmem:[#allocation2 + $0x60] sm:$0xff] %v1146
        %1163 = vst [vmem:[#allocation2 + $0x68] sm:$0xff] %v1147
        %1164 = vst [vmem:[#allocation2 + $0x70] sm:$0xff] %v1148
        %1165 = vst [vmem:[#allocation2 + $0x78] sm:$0xff] %v1149
        %v1166 = vld [vmem:[#allocation3] sm:$0xff]
        %v1167 = vld [vmem:[#allocation3 + $0x8] sm:$0xff]
        %v1168 = vld [vmem:[#allocation3 + $0x10] sm:$0xff]
        %v1169 = vld [vmem:[#allocation3 + $0x18] sm:$0xff]
        %v1170 = vld [vmem:[#allocation3 + $0x20] sm:$0xff]
        %v1171 = vld [vmem:[#allocation3 + $0x28] sm:$0xff]
        %v1172 = vld [vmem:[#allocation3 + $0x30] sm:$0xff]
        %v1173 = vld [vmem:[#allocation3 + $0x38] sm:$0xff]
        %v1174 = vld [vmem:[#allocation3 + $0x40] sm:$0xff]
        %v1175 = vld [vmem:[#allocation3 + $0x48] sm:$0xff]
        %v1176 = vld [vmem:[#allocation3 + $0x50] sm:$0xff]
        %v1177 = vld [vmem:[#allocation3 + $0x58] sm:$0xff]
        %v1178 = vld [vmem:[#allocation3 + $0x60] sm:$0xff]
        %v1179 = vld [vmem:[#allocation3 + $0x68] sm:$0xff]
        %v1180 = vld [vmem:[#allocation3 + $0x70] sm:$0xff]
        %v1181 = vld [vmem:[#allocation3 + $0x78] sm:$0xff]
        %1182 = vadd.xlane.f32.xlu0 %v941
        %v1183 = vpop.xlane.xlu0 %1182
        %1184 = vadd.xlane.f32.xlu0 %v942
        %v1185 = vpop.xlane.xlu0 %1184
        %1186 = vadd.xlane.f32.xlu0 %v943
        %v1187 = vpop.xlane.xlu0 %1186
        %1188 = vadd.xlane.f32.xlu0 %v944
        %v1189 = vpop.xlane.xlu0 %1188
        %1190 = vadd.xlane.f32.xlu0 %v945
        %v1191 = vpop.xlane.xlu0 %1190
        %1192 = vadd.xlane.f32.xlu0 %v946
        %v1193 = vpop.xlane.xlu0 %1192
        %1194 = vadd.xlane.f32.xlu0 %v947
        %v1195 = vpop.xlane.xlu0 %1194
        %1196 = vadd.xlane.f32.xlu0 %v948
        %v1197 = vpop.xlane.xlu0 %1196
        %1198 = vadd.xlane.f32.xlu0 %v949
        %v1199 = vpop.xlane.xlu0 %1198
        %1200 = vadd.xlane.f32.xlu0 %v950
        %v1201 = vpop.xlane.xlu0 %1200
        %1202 = vadd.xlane.f32.xlu0 %v951
        %v1203 = vpop.xlane.xlu0 %1202
        %1204 = vadd.xlane.f32.xlu0 %v952
        %v1205 = vpop.xlane.xlu0 %1204
        %1206 = vadd.xlane.f32.xlu0 %v953
        %v1207 = vpop.xlane.xlu0 %1206
        %1208 = vadd.xlane.f32.xlu0 %v954
        %v1209 = vpop.xlane.xlu0 %1208
        %1210 = vadd.xlane.f32.xlu0 %v955
        %v1211 = vpop.xlane.xlu0 %1210
        %1212 = vadd.xlane.f32.xlu0 %v956
        %v1213 = vpop.xlane.xlu0 %1212
        %v1214 = vadd.f32 %v1166, %v1183
        %v1215 = vadd.f32 %v1167, %v1185
        %v1216 = vadd.f32 %v1168, %v1187
        %v1217 = vadd.f32 %v1169, %v1189
        %v1218 = vadd.f32 %v1170, %v1191
        %v1219 = vadd.f32 %v1171, %v1193
        %v1220 = vadd.f32 %v1172, %v1195
        %v1221 = vadd.f32 %v1173, %v1197
        %v1222 = vadd.f32 %v1174, %v1199
        %v1223 = vadd.f32 %v1175, %v1201
        %v1224 = vadd.f32 %v1176, %v1203
        %v1225 = vadd.f32 %v1177, %v1205
        %v1226 = vadd.f32 %v1178, %v1207
        %v1227 = vadd.f32 %v1179, %v1209
        %v1228 = vadd.f32 %v1180, %v1211
        %v1229 = vadd.f32 %v1181, %v1213
        %vm1230 = vcmask 7168
        %1231 = vst.msk [vmem:[#allocation3] sm:$0xff] %vm1230, %v1214
        %1232 = vst.msk [vmem:[#allocation3 + $0x8] sm:$0xff] %vm1230, %v1215
        %1233 = vst.msk [vmem:[#allocation3 + $0x10] sm:$0xff] %vm1230, %v1216
        %1234 = vst.msk [vmem:[#allocation3 + $0x18] sm:$0xff] %vm1230, %v1217
        %1235 = vst.msk [vmem:[#allocation3 + $0x20] sm:$0xff] %vm1230, %v1218
        %1236 = vst.msk [vmem:[#allocation3 + $0x28] sm:$0xff] %vm1230, %v1219
        %1237 = vst.msk [vmem:[#allocation3 + $0x30] sm:$0xff] %vm1230, %v1220
        %1238 = vst.msk [vmem:[#allocation3 + $0x38] sm:$0xff] %vm1230, %v1221
        %1239 = vst.msk [vmem:[#allocation3 + $0x40] sm:$0xff] %vm1230, %v1222
        %1240 = vst.msk [vmem:[#allocation3 + $0x48] sm:$0xff] %vm1230, %v1223
        %1241 = vst.msk [vmem:[#allocation3 + $0x50] sm:$0xff] %vm1230, %v1224
        %1242 = vst.msk [vmem:[#allocation3 + $0x58] sm:$0xff] %vm1230, %v1225
        %1243 = vst.msk [vmem:[#allocation3 + $0x60] sm:$0xff] %vm1230, %v1226
        %1244 = vst.msk [vmem:[#allocation3 + $0x68] sm:$0xff] %vm1230, %v1227
        %1245 = vst.msk [vmem:[#allocation3 + $0x70] sm:$0xff] %vm1230, %v1228
        %1246 = vst.msk [vmem:[#allocation3 + $0x78] sm:$0xff] %vm1230, %v1229
        %p1247 = scmp.eq.s32.totalorder %s29, 2
        // Predicated region
        $region91: #{update_unit_forward.3} parent=81 // pred_check
          %p1248 = pneg %p1247
        $region92: #{update_unit_forward.3} parent=81 // pred_check_branch
          %1250 = sbr.rel (%p1248) target = $region94
        $region93: #{update_unit_forward.3} parent=81 // pred_region
          %v1251 = vld [vmem:[#allocation3] sm:$0xff]
          %v1252 = vld [vmem:[#allocation3 + $0x8] sm:$0xff]
          %v1253 = vld [vmem:[#allocation3 + $0x10] sm:$0xff]
          %v1254 = vld [vmem:[#allocation3 + $0x18] sm:$0xff]
          %v1255 = vld [vmem:[#allocation3 + $0x20] sm:$0xff]
          %v1256 = vld [vmem:[#allocation3 + $0x28] sm:$0xff]
          %v1257 = vld [vmem:[#allocation3 + $0x30] sm:$0xff]
          %v1258 = vld [vmem:[#allocation3 + $0x38] sm:$0xff]
          %v1259 = vld [vmem:[#allocation3 + $0x40] sm:$0xff]
          %v1260 = vld [vmem:[#allocation3 + $0x48] sm:$0xff]
          %v1261 = vld [vmem:[#allocation3 + $0x50] sm:$0xff]
          %v1262 = vld [vmem:[#allocation3 + $0x58] sm:$0xff]
          %v1263 = vld [vmem:[#allocation3 + $0x60] sm:$0xff]
          %v1264 = vld [vmem:[#allocation3 + $0x68] sm:$0xff]
          %v1265 = vld [vmem:[#allocation3 + $0x70] sm:$0xff]
          %v1266 = vld [vmem:[#allocation3 + $0x78] sm:$0xff]
          %vm1267 = vcmp.gt.f32.partialorder %v1251, 0.0
          %vm1268 = vcmp.gt.f32.partialorder %v1252, 0.0
          %vm1269 = vcmp.gt.f32.partialorder %v1253, 0.0
          %vm1270 = vcmp.gt.f32.partialorder %v1254, 0.0
          %vm1271 = vcmp.gt.f32.partialorder %v1255, 0.0
          %vm1272 = vcmp.gt.f32.partialorder %v1256, 0.0
          %vm1273 = vcmp.gt.f32.partialorder %v1257, 0.0
          %vm1274 = vcmp.gt.f32.partialorder %v1258, 0.0
          %vm1275 = vcmp.gt.f32.partialorder %v1259, 0.0
          %vm1276 = vcmp.gt.f32.partialorder %v1260, 0.0
          %vm1277 = vcmp.gt.f32.partialorder %v1261, 0.0
          %vm1278 = vcmp.gt.f32.partialorder %v1262, 0.0
          %vm1279 = vcmp.gt.f32.partialorder %v1263, 0.0
          %vm1280 = vcmp.gt.f32.partialorder %v1264, 0.0
          %vm1281 = vcmp.gt.f32.partialorder %v1265, 0.0
          %vm1282 = vcmp.gt.f32.partialorder %v1266, 0.0
          %v1283 = vsel %vm1267, 1, 0
          %v1284 = vsel %vm1268, 1, 0
          %v1285 = vsel %vm1269, 1, 0
          %v1286 = vsel %vm1270, 1, 0
          %v1287 = vsel %vm1271, 1, 0
          %v1288 = vsel %vm1272, 1, 0
          %v1289 = vsel %vm1273, 1, 0
          %v1290 = vsel %vm1274, 1, 0
          %v1291 = vsel %vm1275, 1, 0
          %v1292 = vsel %vm1276, 1, 0
          %v1293 = vsel %vm1277, 1, 0
          %v1294 = vsel %vm1278, 1, 0
          %v1295 = vsel %vm1279, 1, 0
          %v1296 = vsel %vm1280, 1, 0
          %v1297 = vsel %vm1281, 1, 0
          %v1298 = vsel %vm1282, 1, 0
          %v1299 = vcvt.s32.f32 %v1283
          %v1300 = vcvt.s32.f32 %v1284
          %v1301 = vcvt.s32.f32 %v1285
          %v1302 = vcvt.s32.f32 %v1286
          %v1303 = vcvt.s32.f32 %v1287
          %v1304 = vcvt.s32.f32 %v1288
          %v1305 = vcvt.s32.f32 %v1289
          %v1306 = vcvt.s32.f32 %v1290
          %v1307 = vcvt.s32.f32 %v1291
          %v1308 = vcvt.s32.f32 %v1292
          %v1309 = vcvt.s32.f32 %v1293
          %v1310 = vcvt.s32.f32 %v1294
          %v1311 = vcvt.s32.f32 %v1295
          %v1312 = vcvt.s32.f32 %v1296
          %v1313 = vcvt.s32.f32 %v1297
          %v1314 = vcvt.s32.f32 %v1298
          %v1315 = vld [vmem:[#allocation2] sm:$0xff]
          %v1316 = vld [vmem:[#allocation2 + $0x8] sm:$0xff]
          %v1317 = vld [vmem:[#allocation2 + $0x10] sm:$0xff]
          %v1318 = vld [vmem:[#allocation2 + $0x18] sm:$0xff]
          %v1319 = vld [vmem:[#allocation2 + $0x20] sm:$0xff]
          %v1320 = vld [vmem:[#allocation2 + $0x28] sm:$0xff]
          %v1321 = vld [vmem:[#allocation2 + $0x30] sm:$0xff]
          %v1322 = vld [vmem:[#allocation2 + $0x38] sm:$0xff]
          %v1323 = vld [vmem:[#allocation2 + $0x40] sm:$0xff]
          %v1324 = vld [vmem:[#allocation2 + $0x48] sm:$0xff]
          %v1325 = vld [vmem:[#allocation2 + $0x50] sm:$0xff]
          %v1326 = vld [vmem:[#allocation2 + $0x58] sm:$0xff]
          %v1327 = vld [vmem:[#allocation2 + $0x60] sm:$0xff]
          %v1328 = vld [vmem:[#allocation2 + $0x68] sm:$0xff]
          %v1329 = vld [vmem:[#allocation2 + $0x70] sm:$0xff]
          %v1330 = vld [vmem:[#allocation2 + $0x78] sm:$0xff]
          %v1331 = vmax.f32 %v1315, 0.0
          %v1332 = vmax.f32 %v1316, 0.0
          %v1333 = vmax.f32 %v1317, 0.0
          %v1334 = vmax.f32 %v1318, 0.0
          %v1335 = vmax.f32 %v1319, 0.0
          %v1336 = vmax.f32 %v1320, 0.0
          %v1337 = vmax.f32 %v1321, 0.0
          %v1338 = vmax.f32 %v1322, 0.0
          %v1339 = vmax.f32 %v1323, 0.0
          %v1340 = vmax.f32 %v1324, 0.0
          %v1341 = vmax.f32 %v1325, 0.0
          %v1342 = vmax.f32 %v1326, 0.0
          %v1343 = vmax.f32 %v1327, 0.0
          %v1344 = vmax.f32 %v1328, 0.0
          %v1345 = vmax.f32 %v1329, 0.0
          %v1346 = vmax.f32 %v1330, 0.0
          %1348 = vset.pattern.permute.xlu0 0
          %1349 = vperm.xlu0 %1348, %v1299
          %v1350 = vpop.permute.xlu0 %1349
          %1353 = vset.pattern.permute.xlu0 0
          %1354 = vperm.xlu0 %1353, %v1300
          %v1355 = vpop.permute.xlu0 %1354
          %1358 = vset.pattern.permute.xlu0 0
          %1359 = vperm.xlu0 %1358, %v1301
          %v1360 = vpop.permute.xlu0 %1359
          %1363 = vset.pattern.permute.xlu0 0
          %1364 = vperm.xlu0 %1363, %v1302
          %v1365 = vpop.permute.xlu0 %1364
          %1368 = vset.pattern.permute.xlu0 0
          %1369 = vperm.xlu0 %1368, %v1303
          %v1370 = vpop.permute.xlu0 %1369
          %1373 = vset.pattern.permute.xlu0 0
          %1374 = vperm.xlu0 %1373, %v1304
          %v1375 = vpop.permute.xlu0 %1374
          %1378 = vset.pattern.permute.xlu0 0
          %1379 = vperm.xlu0 %1378, %v1305
          %v1380 = vpop.permute.xlu0 %1379
          %1383 = vset.pattern.permute.xlu0 0
          %1384 = vperm.xlu0 %1383, %v1306
          %v1385 = vpop.permute.xlu0 %1384
          %1388 = vset.pattern.permute.xlu0 0
          %1389 = vperm.xlu0 %1388, %v1307
          %v1390 = vpop.permute.xlu0 %1389
          %1393 = vset.pattern.permute.xlu0 0
          %1394 = vperm.xlu0 %1393, %v1308
          %v1395 = vpop.permute.xlu0 %1394
          %1398 = vset.pattern.permute.xlu0 0
          %1399 = vperm.xlu0 %1398, %v1309
          %v1400 = vpop.permute.xlu0 %1399
          %1403 = vset.pattern.permute.xlu0 0
          %1404 = vperm.xlu0 %1403, %v1310
          %v1405 = vpop.permute.xlu0 %1404
          %1408 = vset.pattern.permute.xlu0 0
          %1409 = vperm.xlu0 %1408, %v1311
          %v1410 = vpop.permute.xlu0 %1409
          %1413 = vset.pattern.permute.xlu0 0
          %1414 = vperm.xlu0 %1413, %v1312
          %v1415 = vpop.permute.xlu0 %1414
          %1418 = vset.pattern.permute.xlu0 0
          %1419 = vperm.xlu0 %1418, %v1313
          %v1420 = vpop.permute.xlu0 %1419
          %1423 = vset.pattern.permute.xlu0 0
          %1424 = vperm.xlu0 %1423, %v1314
          %v1425 = vpop.permute.xlu0 %1424
          %v1427 = vmul.f32 %v1331, %v1350
          %v1428 = vmul.f32 %v1332, %v1355
          %v1429 = vmul.f32 %v1333, %v1360
          %v1430 = vmul.f32 %v1334, %v1365
          %v1431 = vmul.f32 %v1335, %v1370
          %v1432 = vmul.f32 %v1336, %v1375
          %v1433 = vmul.f32 %v1337, %v1380
          %v1434 = vmul.f32 %v1338, %v1385
          %v1435 = vmul.f32 %v1339, %v1390
          %v1436 = vmul.f32 %v1340, %v1395
          %v1437 = vmul.f32 %v1341, %v1400
          %v1438 = vmul.f32 %v1342, %v1405
          %v1439 = vmul.f32 %v1343, %v1410
          %v1440 = vmul.f32 %v1344, %v1415
          %v1441 = vmul.f32 %v1345, %v1420
          %v1442 = vmul.f32 %v1346, %v1425
          %v1443 = vld [vmem:[%s505] sm:$0xff]
          %v1444 = vld [vmem:[%s505 + $0x8] sm:$0xff]
          %v1445 = vld [vmem:[%s505 + $0x10] sm:$0xff]
          %v1446 = vld [vmem:[%s505 + $0x18] sm:$0xff]
          %v1447 = vld [vmem:[%s505 + $0x20] sm:$0xff]
          %v1448 = vld [vmem:[%s505 + $0x28] sm:$0xff]
          %v1449 = vld [vmem:[%s505 + $0x30] sm:$0xff]
          %v1450 = vld [vmem:[%s505 + $0x38] sm:$0xff]
          %v1451 = vld [vmem:[%s505 + $0x40] sm:$0xff]
          %v1452 = vld [vmem:[%s505 + $0x48] sm:$0xff]
          %v1453 = vld [vmem:[%s505 + $0x50] sm:$0xff]
          %v1454 = vld [vmem:[%s505 + $0x58] sm:$0xff]
          %v1455 = vld [vmem:[%s505 + $0x60] sm:$0xff]
          %v1456 = vld [vmem:[%s505 + $0x68] sm:$0xff]
          %v1457 = vld [vmem:[%s505 + $0x70] sm:$0xff]
          %v1458 = vld [vmem:[%s505 + $0x78] sm:$0xff]
          %v1459 = vadd.f32 %v1443, %v1427
          %v1460 = vadd.f32 %v1444, %v1428
          %v1461 = vadd.f32 %v1445, %v1429
          %v1462 = vadd.f32 %v1446, %v1430
          %v1463 = vadd.f32 %v1447, %v1431
          %v1464 = vadd.f32 %v1448, %v1432
          %v1465 = vadd.f32 %v1449, %v1433
          %v1466 = vadd.f32 %v1450, %v1434
          %v1467 = vadd.f32 %v1451, %v1435
          %v1468 = vadd.f32 %v1452, %v1436
          %v1469 = vadd.f32 %v1453, %v1437
          %v1470 = vadd.f32 %v1454, %v1438
          %v1471 = vadd.f32 %v1455, %v1439
          %v1472 = vadd.f32 %v1456, %v1440
          %v1473 = vadd.f32 %v1457, %v1441
          %v1474 = vadd.f32 %v1458, %v1442
          %1475 = vst [vmem:[%s490] sm:$0xff] %v1459
          %1476 = vst [vmem:[%s490 + $0x8] sm:$0xff] %v1460
          %1477 = vst [vmem:[%s490 + $0x10] sm:$0xff] %v1461
          %1478 = vst [vmem:[%s490 + $0x18] sm:$0xff] %v1462
          %1479 = vst [vmem:[%s490 + $0x20] sm:$0xff] %v1463
          %1480 = vst [vmem:[%s490 + $0x28] sm:$0xff] %v1464
          %1481 = vst [vmem:[%s490 + $0x30] sm:$0xff] %v1465
          %1482 = vst [vmem:[%s490 + $0x38] sm:$0xff] %v1466
          %1483 = vst [vmem:[%s490 + $0x40] sm:$0xff] %v1467
          %1484 = vst [vmem:[%s490 + $0x48] sm:$0xff] %v1468
          %1485 = vst [vmem:[%s490 + $0x50] sm:$0xff] %v1469
          %1486 = vst [vmem:[%s490 + $0x58] sm:$0xff] %v1470
          %1487 = vst [vmem:[%s490 + $0x60] sm:$0xff] %v1471
          %1488 = vst [vmem:[%s490 + $0x68] sm:$0xff] %v1472
          %1489 = vst [vmem:[%s490 + $0x70] sm:$0xff] %v1473
          %1490 = vst [vmem:[%s490 + $0x78] sm:$0xff] %v1474
          %v1491 = vmul.f32 %v1427, %v1427
          %v1492 = vmul.f32 %v1428, %v1428
          %v1493 = vmul.f32 %v1429, %v1429
          %v1494 = vmul.f32 %v1430, %v1430
          %v1495 = vmul.f32 %v1431, %v1431
          %v1496 = vmul.f32 %v1432, %v1432
          %v1497 = vmul.f32 %v1433, %v1433
          %v1498 = vmul.f32 %v1434, %v1434
          %v1499 = vmul.f32 %v1435, %v1435
          %v1500 = vmul.f32 %v1436, %v1436
          %v1501 = vmul.f32 %v1437, %v1437
          %v1502 = vmul.f32 %v1438, %v1438
          %v1503 = vmul.f32 %v1439, %v1439
          %v1504 = vmul.f32 %v1440, %v1440
          %v1505 = vmul.f32 %v1441, %v1441
          %v1506 = vmul.f32 %v1442, %v1442
          %v1507 = vadd.f32 %v1491, %v1492
          %v1508 = vadd.f32 %v1507, %v1493
          %v1509 = vadd.f32 %v1508, %v1494
          %v1510 = vadd.f32 %v1509, %v1495
          %v1511 = vadd.f32 %v1510, %v1496
          %v1512 = vadd.f32 %v1511, %v1497
          %v1513 = vadd.f32 %v1512, %v1498
          %v1514 = vadd.f32 %v1513, %v1499
          %v1515 = vadd.f32 %v1514, %v1500
          %v1516 = vadd.f32 %v1515, %v1501
          %v1517 = vadd.f32 %v1516, %v1502
          %v1518 = vadd.f32 %v1517, %v1503
          %v1519 = vadd.f32 %v1518, %v1504
          %v1520 = vadd.f32 %v1519, %v1505
          %v1521 = vadd.f32 %v1520, %v1506
          %1522 = vadd.xlane.f32.xlu0 %v1521
          %v1523 = vpop.xlane.xlu0 %1522
          %v1524 = vrot.slane %v1523, 4
          %v1525 = vadd.f32 %v1523, %v1524
          %v1526 = vrot.slane %v1525, 2
          %v1527 = vadd.f32 %v1525, %v1526
          %v1528 = vrot.slane %v1527, 1
          %v1529 = vadd.f32 %v1527, %v1528
          %s1530 = vtos %v1529
          %v1531 = vstv %s1530
          %1532 = vst [vmem:[%s523] sm:$0x1] %v1531
          %v1533 = vsel %vm1230, %v1299, 0.0
          %v1534 = vsel %vm1230, %v1300, 0.0
          %v1535 = vadd.f32 %v1533, %v1534
          %v1536 = vsel %vm1230, %v1301, 0.0
          %v1537 = vadd.f32 %v1535, %v1536
          %v1538 = vsel %vm1230, %v1302, 0.0
          %v1539 = vadd.f32 %v1537, %v1538
          %v1540 = vsel %vm1230, %v1303, 0.0
          %v1541 = vadd.f32 %v1539, %v1540
          %v1542 = vsel %vm1230, %v1304, 0.0
          %v1543 = vadd.f32 %v1541, %v1542
          %v1544 = vsel %vm1230, %v1305, 0.0
          %v1545 = vadd.f32 %v1543, %v1544
          %v1546 = vsel %vm1230, %v1306, 0.0
          %v1547 = vadd.f32 %v1545, %v1546
          %v1548 = vsel %vm1230, %v1307, 0.0
          %v1549 = vadd.f32 %v1547, %v1548
          %v1550 = vsel %vm1230, %v1308, 0.0
          %v1551 = vadd.f32 %v1549, %v1550
          %v1552 = vsel %vm1230, %v1309, 0.0
          %v1553 = vadd.f32 %v1551, %v1552
          %v1554 = vsel %vm1230, %v1310, 0.0
          %v1555 = vadd.f32 %v1553, %v1554
          %v1556 = vsel %vm1230, %v1311, 0.0
          %v1557 = vadd.f32 %v1555, %v1556
          %v1558 = vsel %vm1230, %v1312, 0.0
          %v1559 = vadd.f32 %v1557, %v1558
          %v1560 = vsel %vm1230, %v1313, 0.0
          %v1561 = vadd.f32 %v1559, %v1560
          %v1562 = vsel %vm1230, %v1314, 0.0
          %v1563 = vadd.f32 %v1561, %v1562
          %1564 = vadd.xlane.f32.xlu0 %v1563
          %v1565 = vpop.xlane.xlu0 %1564
          %v1566 = vrot.slane %v1565, 4
          %v1567 = vadd.f32 %v1565, %v1566
          %v1568 = vrot.slane %v1567, 2
          %v1569 = vadd.f32 %v1567, %v1568
          %v1570 = vrot.slane %v1569, 1
          %v1571 = vadd.f32 %v1569, %v1570
          %s1572 = vtos %v1571
          %v1573 = vstv %s1572
          %1574 = vst [vmem:[%s526] sm:$0x1] %v1573
        $region94: #{update_unit_forward.3} parent=81 // pred_fallthru
          _
        %s1575 = sand.u32 %s213, 1
        %s1576 = scalar_lea.sflag [#allocation6], %s1575
        %s1577 = sand.u32 %s213, 1
        %s1578 = smul.addr %s1577, 128
        %s1579 = scalar_lea.vmem [#allocation5], %s1578
        %p1580 = scmp.lt.s32.totalorder %s28, 1
        %s1581 = scalar_select %p1580, %s28, 1
        %s1582 = scalar_lea.vmem %s8, %s1581
        %p1583 = scmp.lt.s32.totalorder %s28, 1
        %s1584 = scalar_select %p1583, %s28, 1
        %s1585 = scalar_lea.vmem %s9, %s1584
        // Predicated region
        $region95: #{update_unit_forward.3} parent=81 // pred_check
          %p1586 = pneg %p223
        $region96: #{update_unit_forward.3} parent=81 // pred_check_branch
          %1588 = sbr.rel (%p1586) target = $region98
        $region97: #{update_unit_forward.3} parent=81 // pred_region
          %s1589 = smul.u32 16, %s28
          %s1591 = ssub.s32 2048, 2048
          %1592 = vsyncadd %s1576, %s1591
          %s1593 = smul.addr %s1589, 128
          %s1594 = scalar_lea.hbm %s7, %s1593
          %s1595 = sshll.u32 %s1579, 4
          %s1596 = int_to_ptr.vmem [resolvable:$true] %s1595
          %1601 = dma.vmem_to_hbm [thread:$0]  %s1596, 2048, %s1594, %s1576, 128, 128, 8
        $region98: #{update_unit_forward.3} parent=81 // pred_fallthru
          _
        // Predicated region
        $region99: #{update_unit_forward.3} parent=81 // pred_check
          %p1602 = pneg %p249
        $region100: #{update_unit_forward.3} parent=81 // pred_check_branch
          %1604 = sbr.rel (%p1602) target = $region102
        $region101: #{update_unit_forward.3} parent=81 // pred_region
          _
        $region102: #{update_unit_forward.3} parent=81 // pred_fallthru
          _
        // Predicated region
        $region103: #{update_unit_forward.3} parent=81 // pred_check
          %p1605 = pneg %p275
        $region104: #{update_unit_forward.3} parent=81 // pred_check_branch
          %1607 = sbr.rel (%p1605) target = $region106
        $region105: #{update_unit_forward.3} parent=81 // pred_region
          _
        $region106: #{update_unit_forward.3} parent=81 // pred_fallthru
          _
      $region82: #{update_unit_forward.3} parent=5 // pred_fallthru
        _
      %p1608 = scmp.le.s32.totalorder 2, %s19
      // Predicated region
      $region107: #{update_unit_forward.3} parent=5 // pred_check
        %p1609 = pneg %p1608
      $region108: #{update_unit_forward.3} parent=5 // pred_check_branch
        %1611 = sbr.rel (%p1609) target = $region110
      $region109: #{update_unit_forward.3} parent=5 // pred_region
        %s1612 = ssub.s32 %s19, 2
        // Predicated region
        $region111: #{update_unit_forward.3} parent=109 // pred_check
          %p1613 = pneg %p229
        $region112: #{update_unit_forward.3} parent=109 // pred_check_branch
          %1615 = sbr.rel (%p1613) target = $region114
        $region113: #{update_unit_forward.3} parent=109 // pred_region
          %s1616 = sand.u32 %s214, 1
          %s1617 = scalar_lea.sflag [#allocation6], %s1616
          %s1618 = sand.u32 %s214, 1
          %s1619 = smul.addr %s1618, 128
          %s1620 = scalar_lea.vmem [#allocation5], %s1619
          %1621 = dma.done %s1617, 2048
        $region114: #{update_unit_forward.3} parent=109 // pred_fallthru
          _
        // Predicated region
        $region115: #{update_unit_forward.3} parent=109 // pred_check
          %p1622 = pneg %p255
        $region116: #{update_unit_forward.3} parent=109 // pred_check_branch
          %1624 = sbr.rel (%p1622) target = $region118
        $region117: #{update_unit_forward.3} parent=109 // pred_region
          %p1625 = scmp.lt.s32.totalorder %s30, 1
          %s1626 = scalar_select %p1625, %s30, 1
          %s1627 = scalar_lea.vmem %s8, %s1626
        $region118: #{update_unit_forward.3} parent=109 // pred_fallthru
          _
        // Predicated region
        $region119: #{update_unit_forward.3} parent=109 // pred_check
          %p1628 = pneg %p281
        $region120: #{update_unit_forward.3} parent=109 // pred_check_branch
          %1630 = sbr.rel (%p1628) target = $region122
        $region121: #{update_unit_forward.3} parent=109 // pred_region
          %p1631 = scmp.lt.s32.totalorder %s30, 1
          %s1632 = scalar_select %p1631, %s30, 1
          %s1633 = scalar_lea.vmem %s9, %s1632
        $region122: #{update_unit_forward.3} parent=109 // pred_fallthru
          _
      $region110: #{update_unit_forward.3} parent=5 // pred_fallthru
        _
    $region6: #{update_unit_forward.3} parent=1 // loop_footer
      %s23 = sadd.s32 1, %s19
    $region7: #{update_unit_forward.3} parent=1 // loop_footer_branch
      %18 = sbr.rel target = $region3
    $region8: #{update_unit_forward.3} parent=1 // loop_exit
      _
    %1634 = vsyncpa [#allocation6], 1
    %s1635 = scalar_lea.sflag [#allocation6], 1
    %1636 = vsyncpa %s1635, 1

// kernel: update_unit_forward.2
$region0: #{update_unit_forward.2}
  #allocation0 [shape = 'u32[]', space=smem, size = 0x4, offset = 0x4, fixed_abs, tag = 'smem constant byte address 0x4 - core index']
  #allocation1 [shape = 'u32[144,128]{1,0:T(1,128)}', space=vmem, size = 0x12000, scoped, tag = 'internal scratch']
  #allocation2 [shape = 'f32[128,128]{1,0:T(8,128)}', space=vmem, size = 0x10000, scoped, tag = 'scratch operand']
  #allocation3 [shape = 'f32[128,1]{1,0:T(8,128)}', space=vmem, size = 0x10000, scoped, tag = 'scratch operand']
  %s0 = inlined_call_operand.vmem [shape: f32[384,128], index: 0, kind: input, shape index: {}]
  %s1 = inlined_call_operand.vmem [shape: f32[384,256], index: 1, kind: input, shape index: {}]
  %s2 = inlined_call_operand.vmem [shape: f32[384,128], index: 2, kind: input, shape index: {}]
  %s3 = inlined_call_operand.vmem [shape: f32[128,128], index: 3, kind: input, shape index: {}]
  %s4 = inlined_call_operand.vmem [shape: f32[256,128], index: 4, kind: input, shape index: {}]
  %s5 = inlined_call_operand.vmem [shape: f32[128,128], index: 5, kind: input, shape index: {}]
  %s6 = inlined_call_operand.vmem [shape: f32[1,128], index: 6, kind: input, shape index: {}]
  %s7 = inlined_call_operand.hbm [shape: f32[384,128], index: 7, kind: output, shape index: {0}]
  %s8 = inlined_call_operand.vmem [shape: f32[3,1,128], index: 8, kind: output, shape index: {1}]
  %s9 = inlined_call_operand.vmem [shape: f32[3,1,128], index: 9, kind: output, shape index: {2}]
  %10 = xla_tuple %s7, %s8, %s9
  %s11 = sld [smem:[#allocation0]]
  $region123: #{update_unit_forward.2} parent=0
    _
  %s13 = ssub.s32 1, %s11
  %s14 = scalar_select 0, %s13, %s11
  $region1: #{update_unit_forward.2} parent=0
    #allocation4 [shape = 'u8[131072]{0}', space=vmem, size = 0x20000, scoped, tag = 'input window, operand 1']
    #allocation5 [shape = 'u8[131072]{0}', space=vmem, size = 0x20000, scoped, tag = 'output window, operand 0']
    #allocation6 [shape = 's32[2]{0}', space=sflag, size = 0x8, scoped, tag = 'scoped memory for update_unit_forward.2']
    %15 = vsyncpa [#allocation6], 0
    %s16 = scalar_lea.sflag [#allocation6], 1
    %17 = vsyncpa %s16, 0
    loop: start=0, step=1, limit=8
    $region2: #{update_unit_forward.2} parent=1 // loop_pre_header
      _
    $region3: #{update_unit_forward.2} parent=1 // loop_header
      %s19 = sphi 0, %s23
      %p20 = scmp.ge.s32.totalorder %s19, 8
      %s26 = sphi 0, %s38
      %s27 = sphi 0, %s34
      %s28 = sphi 0, %s26
      %s29 = sphi 0, %s27
      %s30 = sphi 0, %s28
      %s31 = sphi 0, %s29
      %s41 = sphi 0, %s43
      %s44 = sphi 0, %s41
      %s45 = sphi 0, %s44
      %s61 = sphi 0, %s45
      %s69 = sphi 0, %s71
      %s72 = sphi 0, %s69
      %s73 = sphi 0, %s72
      %s89 = sphi 0, %s73
      %s95 = sphi 0, %s97
      %s98 = sphi 0, %s95
      %s99 = sphi 0, %s98
      %s115 = sphi 0, %s99
      %s119 = sphi 0, %s119
      %s121 = sphi 0, %s119
      %s122 = sphi 0, %s121
      %s136 = sphi 0, %s122
      %s142 = sphi 0, %s144
      %s145 = sphi 0, %s142
      %s146 = sphi 0, %s145
      %s162 = sphi 0, %s146
      %s166 = sphi 0, %s166
      %s168 = sphi 0, %s166
      %s169 = sphi 0, %s168
      %s183 = sphi 0, %s169
      %s187 = sphi 0, %s187
      %s189 = sphi 0, %s187
      %s190 = sphi 0, %s189
      %s204 = sphi 0, %s190
      %s210 = sphi 0, %s212
      %s213 = sphi 0, %s210
      %s214 = sphi 0, %s213
      %s230 = sphi 0, %s214
      %s236 = sphi 0, %s238
      %s239 = sphi 0, %s236
      %s240 = sphi 0, %s239
      %s256 = sphi 0, %s240
      %s262 = sphi 0, %s264
      %s265 = sphi 0, %s262
      %s266 = sphi 0, %s265
      %s282 = sphi 0, %s266
    $region4: #{update_unit_forward.2} parent=1 // loop_header_branch
      %22 = sbr.rel (%p20) target = $region8
    $region5: #{update_unit_forward.2} parent=1 // loop_body
      %s24 = ssub.s32 %s19, 1
      %s25 = ssub.s32 %s19, 2
      %s32 = sadd.s32 1, %s27
      %p33 = scmp.ge.s32.totalorder %s32, 2
      %s34 = scalar_select %p33, 0, %s32
      %s35 = sadd.s32 1, %s26
      %s36 = scalar_select %p33, %s35, %s26
      %p37 = scmp.ge.s32.totalorder %s36, 3
      %s38 = scalar_select %p37, 0, %s36
      %s39 = ssub.s32 %s26, %s38
      %p40 = scmp.eq.s32.totalorder %s39, 0
      %s42 = sadd.s32 %s41, 1
      %s43 = scalar_select %p40, %s41, %s42
      %p46 = pneg %p40
      %p47 = scmp.eq.s32.totalorder %s19, 5
      %p48 = por %p46, %p47
      %p49 = scmp.ne.s32.totalorder %s41, %s44
      %p50 = scmp.eq.s32.totalorder %s19, 0
      %p51 = por %p49, %p50
      %p52 = scmp.ne.s32.totalorder %s41, %s44
      %p53 = scmp.eq.s32.totalorder %s24, 5
      %p54 = por %p52, %p53
      %p55 = scmp.ne.s32.totalorder %s44, %s45
      %p56 = scmp.eq.s32.totalorder %s24, 0
      %p57 = por %p55, %p56
      %p58 = scmp.ne.s32.totalorder %s44, %s45
      %p59 = scmp.eq.s32.totalorder %s25, 5
      %p60 = por %p58, %p59
      %p62 = scmp.ne.s32.totalorder %s45, %s61
      %p63 = scmp.eq.s32.totalorder %s25, 0
      %p64 = por %p62, %p63
      %s65 = ssub.s32 %s26, %s38
      %s66 = ssub.s32 %s27, %s34
      %s67 = sor.u32 %s65, %s66
      %p68 = scmp.eq.s32.totalorder %s67, 0
      %s70 = sadd.s32 %s69, 1
      %s71 = scalar_select %p68, %s69, %s70
      %p74 = pneg %p68
      %p75 = scmp.eq.s32.totalorder %s19, 5
      %p76 = por %p74, %p75
      %p77 = scmp.ne.s32.totalorder %s69, %s72
      %p78 = scmp.eq.s32.totalorder %s19, 0
      %p79 = por %p77, %p78
      %p80 = scmp.ne.s32.totalorder %s69, %s72
      %p81 = scmp.eq.s32.totalorder %s24, 5
      %p82 = por %p80, %p81
      %p83 = scmp.ne.s32.totalorder %s72, %s73
      %p84 = scmp.eq.s32.totalorder %s24, 0
      %p85 = por %p83, %p84
      %p86 = scmp.ne.s32.totalorder %s72, %s73
      %p87 = scmp.eq.s32.totalorder %s25, 5
      %p88 = por %p86, %p87
      %p90 = scmp.ne.s32.totalorder %s73, %s89
      %p91 = scmp.eq.s32.totalorder %s25, 0
      %p92 = por %p90, %p91
      %s93 = ssub.s32 %s26, %s38
      %p94 = scmp.eq.s32.totalorder %s93, 0
      %s96 = sadd.s32 %s95, 1
      %s97 = scalar_select %p94, %s95, %s96
      %p100 = pneg %p94
      %p101 = scmp.eq.s32.totalorder %s19, 5
      %p102 = por %p100, %p101
      %p103 = scmp.ne.s32.totalorder %s95, %s98
      %p104 = scmp.eq.s32.totalorder %s19, 0
      %p105 = por %p103, %p104
      %p106 = scmp.ne.s32.totalorder %s95, %s98
      %p107 = scmp.eq.s32.totalorder %s24, 5
      %p108 = por %p106, %p107
      %p109 = scmp.ne.s32.totalorder %s98, %s99
      %p110 = scmp.eq.s32.totalorder %s24, 0
      %p111 = por %p109, %p110
      %p112 = scmp.ne.s32.totalorder %s98, %s99
      %p113 = scmp.eq.s32.totalorder %s25, 5
      %p114 = por %p112, %p113
      %p116 = scmp.ne.s32.totalorder %s99, %s115
      %p117 = scmp.eq.s32.totalorder %s25, 0
      %p118 = por %p116, %p117
      %s120 = sadd.s32 %s119, 1
      %p123 = scmp.eq.s32.totalorder %s19, 5
      %p124 = scmp.ne.s32.totalorder %s119, %s121
      %p125 = scmp.eq.s32.totalorder %s19, 0
      %p126 = por %p124, %p125
      %p127 = scmp.ne.s32.totalorder %s119, %s121
      %p128 = scmp.eq.s32.totalorder %s24, 5
      %p129 = por %p127, %p128
      %p130 = scmp.ne.s32.totalorder %s121, %s122
      %p131 = scmp.eq.s32.totalorder %s24, 0
      %p132 = por %p130, %p131
      %p133 = scmp.ne.s32.totalorder %s121, %s122
      %p134 = scmp.eq.s32.totalorder %s25, 5
      %p135 = por %p133, %p134
      %p137 = scmp.ne.s32.totalorder %s122, %s136
      %p138 = scmp.eq.s32.totalorder %s25, 0
      %p139 = por %p137, %p138
      %s140 = ssub.s32 %s27, %s34
      %p141 = scmp.eq.s32.totalorder %s140, 0
      %s143 = sadd.s32 %s142, 1
      %s144 = scalar_select %p141, %s142, %s143
      %p147 = pneg %p141
      %p148 = scmp.eq.s32.totalorder %s19, 5
      %p149 = por %p147, %p148
      %p150 = scmp.ne.s32.totalorder %s142, %s145
      %p151 = scmp.eq.s32.totalorder %s19, 0
      %p152 = por %p150, %p151
      %p153 = scmp.ne.s32.totalorder %s142, %s145
      %p154 = scmp.eq.s32.totalorder %s24, 5
      %p155 = por %p153, %p154
      %p156 = scmp.ne.s32.totalorder %s145, %s146
      %p157 = scmp.eq.s32.totalorder %s24, 0
      %p158 = por %p156, %p157
      %p159 = scmp.ne.s32.totalorder %s145, %s146
      %p160 = scmp.eq.s32.totalorder %s25, 5
      %p161 = por %p159, %p160
      %p163 = scmp.ne.s32.totalorder %s146, %s162
      %p164 = scmp.eq.s32.totalorder %s25, 0
      %p165 = por %p163, %p164
      %s167 = sadd.s32 %s166, 1
      %p170 = scmp.eq.s32.totalorder %s19, 5
      %p171 = scmp.ne.s32.totalorder %s166, %s168
      %p172 = scmp.eq.s32.totalorder %s19, 0
      %p173 = por %p171, %p172
      %p174 = scmp.ne.s32.totalorder %s166, %s168
      %p175 = scmp.eq.s32.totalorder %s24, 5
      %p176 = por %p174, %p175
      %p177 = scmp.ne.s32.totalorder %s168, %s169
      %p178 = scmp.eq.s32.totalorder %s24, 0
      %p179 = por %p177, %p178
      %p180 = scmp.ne.s32.totalorder %s168, %s169
      %p181 = scmp.eq.s32.totalorder %s25, 5
      %p182 = por %p180, %p181
      %p184 = scmp.ne.s32.totalorder %s169, %s183
      %p185 = scmp.eq.s32.totalorder %s25, 0
      %p186 = por %p184, %p185
      %s188 = sadd.s32 %s187, 1
      %p191 = scmp.eq.s32.totalorder %s19, 5
      %p192 = scmp.ne.s32.totalorder %s187, %s189
      %p193 = scmp.eq.s32.totalorder %s19, 0
      %p194 = por %p192, %p193
      %p195 = scmp.ne.s32.totalorder %s187, %s189
      %p196 = scmp.eq.s32.totalorder %s24, 5
      %p197 = por %p195, %p196
      %p198 = scmp.ne.s32.totalorder %s189, %s190
      %p199 = scmp.eq.s32.totalorder %s24, 0
      %p200 = por %p198, %p199
      %p201 = scmp.ne.s32.totalorder %s189, %s190
      %p202 = scmp.eq.s32.totalorder %s25, 5
      %p203 = por %p201, %p202
      %p205 = scmp.ne.s32.totalorder %s190, %s204
      %p206 = scmp.eq.s32.totalorder %s25, 0
      %p207 = por %p205, %p206
      %s208 = ssub.s32 %s26, %s38
      %p209 = scmp.eq.s32.totalorder %s208, 0
      %s211 = sadd.s32 %s210, 1
      %s212 = scalar_select %p209, %s210, %s211
      %p215 = pneg %p209
      %p216 = scmp.eq.s32.totalorder %s19, 5
      %p217 = por %p215, %p216
      %p218 = scmp.ne.s32.totalorder %s210, %s213
      %p219 = scmp.eq.s32.totalorder %s19, 0
      %p220 = por %p218, %p219
      %p221 = scmp.ne.s32.totalorder %s210, %s213
      %p222 = scmp.eq.s32.totalorder %s24, 5
      %p223 = por %p221, %p222
      %p224 = scmp.ne.s32.totalorder %s213, %s214
      %p225 = scmp.eq.s32.totalorder %s24, 0
      %p226 = por %p224, %p225
      %p227 = scmp.ne.s32.totalorder %s213, %s214
      %p228 = scmp.eq.s32.totalorder %s25, 5
      %p229 = por %p227, %p228
      %p231 = scmp.ne.s32.totalorder %s214, %s230
      %p232 = scmp.eq.s32.totalorder %s25, 0
      %p233 = por %p231, %p232
      %s234 = ssub.s32 %s26, %s38
      %p235 = scmp.eq.s32.totalorder %s234, 0
      %s237 = sadd.s32 %s236, 1
      %s238 = scalar_select %p235, %s236, %s237
      %p241 = pneg %p235
      %p242 = scmp.eq.s32.totalorder %s19, 5
      %p243 = por %p241, %p242
      %p244 = scmp.ne.s32.totalorder %s236, %s239
      %p245 = scmp.eq.s32.totalorder %s19, 0
      %p246 = por %p244, %p245
      %p247 = scmp.ne.s32.totalorder %s236, %s239
      %p248 = scmp.eq.s32.totalorder %s24, 5
      %p249 = por %p247, %p248
      %p250 = scmp.ne.s32.totalorder %s239, %s240
      %p251 = scmp.eq.s32.totalorder %s24, 0
      %p252 = por %p250, %p251
      %p253 = scmp.ne.s32.totalorder %s239, %s240
      %p254 = scmp.eq.s32.totalorder %s25, 5
      %p255 = por %p253, %p254
      %p257 = scmp.ne.s32.totalorder %s240, %s256
      %p258 = scmp.eq.s32.totalorder %s25, 0
      %p259 = por %p257, %p258
      %s260 = ssub.s32 %s26, %s38
      %p261 = scmp.eq.s32.totalorder %s260, 0
      %s263 = sadd.s32 %s262, 1
      %s264 = scalar_select %p261, %s262, %s263
      %p267 = pneg %p261
      %p268 = scmp.eq.s32.totalorder %s19, 5
      %p269 = por %p267, %p268
      %p270 = scmp.ne.s32.totalorder %s262, %s265
      %p271 = scmp.eq.s32.totalorder %s19, 0
      %p272 = por %p270, %p271
      %p273 = scmp.ne.s32.totalorder %s262, %s265
      %p274 = scmp.eq.s32.totalorder %s24, 5
      %p275 = por %p273, %p274
      %p276 = scmp.ne.s32.totalorder %s265, %s266
      %p277 = scmp.eq.s32.totalorder %s24, 0
      %p278 = por %p276, %p277
      %p279 = scmp.ne.s32.totalorder %s265, %s266
      %p280 = scmp.eq.s32.totalorder %s25, 5
      %p281 = por %p279, %p280
      %p283 = scmp.ne.s32.totalorder %s266, %s282
      %p284 = scmp.eq.s32.totalorder %s25, 0
      %p285 = por %p283, %p284
      %p286 = scmp.le.s32.totalorder 1, %s19
      %p287 = scmp.lt.s32.totalorder %s19, 7
      %p288 = pnand %p286, %p287
      %p289 = pneg %p288
      // Predicated region
      $region9: #{update_unit_forward.2} parent=5 // pred_check
        _
      $region10: #{update_unit_forward.2} parent=5 // pred_check_branch
        %291 = sbr.rel (%p288) target = $region12
      $region11: #{update_unit_forward.2} parent=5 // pred_region
        %s292 = ssub.s32 %s19, 1
        // Predicated region
        $region13: #{update_unit_forward.2} parent=11 // pred_check
          %p293 = pneg %p132
        $region14: #{update_unit_forward.2} parent=11 // pred_check_branch
          %295 = sbr.rel (%p293) target = $region16
        $region15: #{update_unit_forward.2} parent=11 // pred_region
          _
        $region16: #{update_unit_forward.2} parent=11 // pred_fallthru
          _
        // Predicated region
        $region17: #{update_unit_forward.2} parent=11 // pred_check
          %p296 = pneg %p179
        $region18: #{update_unit_forward.2} parent=11 // pred_check_branch
          %298 = sbr.rel (%p296) target = $region20
        $region19: #{update_unit_forward.2} parent=11 // pred_region
          _
        $region20: #{update_unit_forward.2} parent=11 // pred_fallthru
          _
        // Predicated region
        $region21: #{update_unit_forward.2} parent=11 // pred_check
          %p299 = pneg %p200
        $region22: #{update_unit_forward.2} parent=11 // pred_check_branch
          %301 = sbr.rel (%p299) target = $region24
        $region23: #{update_unit_forward.2} parent=11 // pred_region
          _
        $region24: #{update_unit_forward.2} parent=11 // pred_fallthru
          _
      $region12: #{update_unit_forward.2} parent=5 // pred_fallthru
        _
      %p302 = scmp.lt.s32.totalorder %s19, 6
      // Predicated region
      $region25: #{update_unit_forward.2} parent=5 // pred_check
        %p303 = pneg %p302
      $region26: #{update_unit_forward.2} parent=5 // pred_check_branch
        %305 = sbr.rel (%p303) target = $region28
      $region27: #{update_unit_forward.2} parent=5 // pred_region
        // Predicated region
        $region29: #{update_unit_forward.2} parent=27 // pred_check
          %p306 = pneg %p51
        $region30: #{update_unit_forward.2} parent=27 // pred_check_branch
          %308 = sbr.rel (%p306) target = $region32
        $region31: #{update_unit_forward.2} parent=27 // pred_region
          %s309 = smul.u32 16, %s26
          %p310 = scmp.lt.s32.totalorder %s309, 47
          %s311 = scalar_select %p310, %s309, 47
          %s312 = smul.addr %s311, 8
          %s313 = scalar_lea.vmem %s0, %s312
          %s314 = smul.u32 16, %s26
        $region32: #{update_unit_forward.2} parent=27 // pred_fallthru
          _
        // Predicated region
        $region33: #{update_unit_forward.2} parent=27 // pred_check
          %p315 = pneg %p79
        $region34: #{update_unit_forward.2} parent=27 // pred_check_branch
          %317 = sbr.rel (%p315) target = $region36
        $region35: #{update_unit_forward.2} parent=27 // pred_region
          %s318 = sand.u32 %s69, 1
          %s319 = sand.u32 %s69, 1
          %s320 = smul.addr %s319, 128
          %s321 = scalar_lea.vmem [#allocation4], %s320
          %s322 = smul.u32 16, %s26
          %s323 = smul.addr %s322, 2
          %s324 = sadd.s32 %s27, %s323
          %s325 = smul.addr %s324, 8
          %s326 = scalar_lea.vmem %s1, %s325
          // Predicated region
          $region37: #{update_unit_forward.2} parent=35 // pred_check
            _
          $region38: #{update_unit_forward.2} parent=35 // pred_check_branch
            %328 = sbr.rel (0) target = $region40
          $region39: #{update_unit_forward.2} parent=35 // pred_region
            // Predicated region
            $region41: #{update_unit_forward.2} parent=39 // pred_check
              _
            $region42: #{update_unit_forward.2} parent=39 // pred_check_branch
              %330 = sbr.rel (0) target = $region44
            $region43: #{update_unit_forward.2} parent=39 // pred_region
              // Predicated region
              $region56: #{update_unit_forward.2} parent=43 // pred_check
                _
              $region57: #{update_unit_forward.2} parent=43 // pred_check_branch
                %375 = sbr.rel (0) target = $region59
              $region58: #{update_unit_forward.2} parent=43 // pred_region
                loop: start=0, step=1, limit=1
                $region60: #{update_unit_forward.2} parent=58 // loop_pre_header
                  _
                $region61: #{update_unit_forward.2} parent=58 // loop_header
                  %s377 = sphi 0, %s381
                  %p378 = scmp.ge.s32.totalorder %s377, 1
                  %s382 = sphi %s326, %s326
                  %s383 = sphi %s321, %s321
                $region62: #{update_unit_forward.2} parent=58 // loop_header_branch
                  %380 = sbr.rel (%p378) target = $region66
                $region63: #{update_unit_forward.2} parent=58 // loop_body
                  %v384 = vld [vmem:[%s382] sm:$0xff]
                  %385 = vst [vmem:[%s383] sm:$0xff] %v384
                  %v386 = vld [vmem:[%s382 + $0x10] sm:$0xff]
                  %387 = vst [vmem:[%s383 + $0x8] sm:$0xff] %v386
                  %v388 = vld [vmem:[%s382 + $0x20] sm:$0xff]
                  %389 = vst [vmem:[%s383 + $0x10] sm:$0xff] %v388
                  %v390 = vld [vmem:[%s382 + $0x30] sm:$0xff]
                  %391 = vst [vmem:[%s383 + $0x18] sm:$0xff] %v390
                  %v392 = vld [vmem:[%s382 + $0x40] sm:$0xff]
                  %393 = vst [vmem:[%s383 + $0x20] sm:$0xff] %v392
                  %v394 = vld [vmem:[%s382 + $0x50] sm:$0xff]
                  %395 = vst [vmem:[%s383 + $0x28] sm:$0xff] %v394
                  %v396 = vld [vmem:[%s382 + $0x60] sm:$0xff]
                  %397 = vst [vmem:[%s383 + $0x30] sm:$0xff] %v396
                  %v398 = vld [vmem:[%s382 + $0x70] sm:$0xff]
                  %399 = vst [vmem:[%s383 + $0x38] sm:$0xff] %v398
                  %v400 = vld [vmem:[%s382 + $0x80] sm:$0xff]
                  %401 = vst [vmem:[%s383 + $0x40] sm:$0xff] %v400
                  %v402 = vld [vmem:[%s382 + $0x90] sm:$0xff]
                  %403 = vst [vmem:[%s383 + $0x48] sm:$0xff] %v402
                  %v404 = vld [vmem:[%s382 + $0xa0] sm:$0xff]
                  %405 = vst [vmem:[%s383 + $0x50] sm:$0xff] %v404
                  %v406 = vld [vmem:[%s382 + $0xb0] sm:$0xff]
                  %407 = vst [vmem:[%s383 + $0x58] sm:$0xff] %v406
                  %v408 = vld [vmem:[%s382 + $0xc0] sm:$0xff]
                  %409 = vst [vmem:[%s383 + $0x60] sm:$0xff] %v408
                  %v410 = vld [vmem:[%s382 + $0xd0] sm:$0xff]
                  %411 = vst [vmem:[%s383 + $0x68] sm:$0xff] %v410
                  %v412 = vld [vmem:[%s382 + $0xe0] sm:$0xff]
                  %413 = vst [vmem:[%s383 + $0x70] sm:$0xff] %v412
                  %v414 = vld [vmem:[%s382 + $0xf0] sm:$0xff]
                  %415 = vst [vmem:[%s383 + $0x78] sm:$0xff] %v414
                $region64: #{update_unit_forward.2} parent=58 // loop_footer
                  %s381 = sadd.s32 1, %s377
                $region65: #{update_unit_forward.2} parent=58 // loop_footer_branch
                  %376 = sbr.rel target = $region61
                $region66: #{update_unit_forward.2} parent=58 // loop_exit
                  _
              $region59: #{update_unit_forward.2} parent=43 // pred_fallthru
                _
              // Predicated region
              $region67: #{update_unit_forward.2} parent=43 // pred_check
                _
              $region68: #{update_unit_forward.2} parent=43 // pred_check_branch
                %417 = sbr.rel target = $region70
              $region69: #{update_unit_forward.2} parent=43 // pred_region
                _
              $region70: #{update_unit_forward.2} parent=43 // pred_fallthru
                _
            $region44: #{update_unit_forward.2} parent=39 // pred_fallthru
              _
            // Predicated region
            $region45: #{update_unit_forward.2} parent=39 // pred_check
              _
            $region46: #{update_unit_forward.2} parent=39 // pred_check_branch
              %332 = sbr.rel target = $region48
            $region47: #{update_unit_forward.2} parent=39 // pred_region
              loop: start=0, step=1, limit=1
              $region49: #{update_unit_forward.2} parent=47 // loop_pre_header
                _
              $region50: #{update_unit_forward.2} parent=47 // loop_header
                %s335 = sphi 0, %s339
                %p336 = scmp.ge.s32.totalorder %s335, 1
                %s340 = sphi %s326, %s326
                %s341 = sphi %s321, %s321
              $region51: #{update_unit_forward.2} parent=47 // loop_header_branch
                %338 = sbr.rel (%p336) target = $region55
              $region52: #{update_unit_forward.2} parent=47 // loop_body
                %v342 = vld [vmem:[%s340] sm:$0xff]
                %343 = vst [vmem:[%s341] sm:$0xff] %v342
                %v344 = vld [vmem:[%s340 + $0x10] sm:$0xff]
                %345 = vst [vmem:[%s341 + $0x8] sm:$0xff] %v344
                %v346 = vld [vmem:[%s340 + $0x20] sm:$0xff]
                %347 = vst [vmem:[%s341 + $0x10] sm:$0xff] %v346
                %v348 = vld [vmem:[%s340 + $0x30] sm:$0xff]
                %349 = vst [vmem:[%s341 + $0x18] sm:$0xff] %v348
                %v350 = vld [vmem:[%s340 + $0x40] sm:$0xff]
                %351 = vst [vmem:[%s341 + $0x20] sm:$0xff] %v350
                %v352 = vld [vmem:[%s340 + $0x50] sm:$0xff]
                %353 = vst [vmem:[%s341 + $0x28] sm:$0xff] %v352
                %v354 = vld [vmem:[%s340 + $0x60] sm:$0xff]
                %355 = vst [vmem:[%s341 + $0x30] sm:$0xff] %v354
                %v356 = vld [vmem:[%s340 + $0x70] sm:$0xff]
                %357 = vst [vmem:[%s341 + $0x38] sm:$0xff] %v356
                %v358 = vld [vmem:[%s340 + $0x80] sm:$0xff]
                %359 = vst [vmem:[%s341 + $0x40] sm:$0xff] %v358
                %v360 = vld [vmem:[%s340 + $0x90] sm:$0xff]
                %361 = vst [vmem:[%s341 + $0x48] sm:$0xff] %v360
                %v362 = vld [vmem:[%s340 + $0xa0] sm:$0xff]
                %363 = vst [vmem:[%s341 + $0x50] sm:$0xff] %v362
                %v364 = vld [vmem:[%s340 + $0xb0] sm:$0xff]
                %365 = vst [vmem:[%s341 + $0x58] sm:$0xff] %v364
                %v366 = vld [vmem:[%s340 + $0xc0] sm:$0xff]
                %367 = vst [vmem:[%s341 + $0x60] sm:$0xff] %v366
                %v368 = vld [vmem:[%s340 + $0xd0] sm:$0xff]
                %369 = vst [vmem:[%s341 + $0x68] sm:$0xff] %v368
                %v370 = vld [vmem:[%s340 + $0xe0] sm:$0xff]
                %371 = vst [vmem:[%s341 + $0x70] sm:$0xff] %v370
                %v372 = vld [vmem:[%s340 + $0xf0] sm:$0xff]
                %373 = vst [vmem:[%s341 + $0x78] sm:$0xff] %v372
              $region53: #{update_unit_forward.2} parent=47 // loop_footer
                %s339 = sadd.s32 1, %s335
              $region54: #{update_unit_forward.2} parent=47 // loop_footer_branch
                %334 = sbr.rel target = $region50
              $region55: #{update_unit_forward.2} parent=47 // loop_exit
                _
            $region48: #{update_unit_forward.2} parent=39 // pred_fallthru
              _
          $region40: #{update_unit_forward.2} parent=35 // pred_fallthru
            _
          %418 = vnop
        $region36: #{update_unit_forward.2} parent=27 // pred_fallthru
          _
        // Predicated region
        $region71: #{update_unit_forward.2} parent=27 // pred_check
          %p419 = pneg %p105
        $region72: #{update_unit_forward.2} parent=27 // pred_check_branch
          %421 = sbr.rel (%p419) target = $region74
        $region73: #{update_unit_forward.2} parent=27 // pred_region
          %s422 = smul.u32 16, %s26
          %p423 = scmp.lt.s32.totalorder %s422, 47
          %s424 = scalar_select %p423, %s422, 47
          %s425 = smul.addr %s424, 8
          %s426 = scalar_lea.vmem %s2, %s425
          %s427 = smul.u32 16, %s26
        $region74: #{update_unit_forward.2} parent=27 // pred_fallthru
          _
        // Predicated region
        $region75: #{update_unit_forward.2} parent=27 // pred_check
          %p428 = pneg %p152
        $region76: #{update_unit_forward.2} parent=27 // pred_check_branch
          %430 = sbr.rel (%p428) target = $region78
        $region77: #{update_unit_forward.2} parent=27 // pred_region
          %s431 = smul.u32 16, %s27
          %p432 = scmp.lt.s32.totalorder %s431, 31
          %s433 = scalar_select %p432, %s431, 31
          %s434 = smul.addr %s433, 8
          %s435 = scalar_lea.vmem %s4, %s434
          %s436 = smul.u32 16, %s27
        $region78: #{update_unit_forward.2} parent=27 // pred_fallthru
          _
      $region28: #{update_unit_forward.2} parent=5 // pred_fallthru
        _
      %p437 = scmp.le.s32.totalorder 1, %s19
      %p438 = scmp.lt.s32.totalorder %s19, 7
      %p439 = pnand %p437, %p438
      %p440 = pneg %p439
      // Predicated region
      $region79: #{update_unit_forward.2} parent=5 // pred_check
        _
      $region80: #{update_unit_forward.2} parent=5 // pred_check_branch
        %442 = sbr.rel (%p439) target = $region82
      $region81: #{update_unit_forward.2} parent=5 // pred_region
        %s443 = ssub.s32 %s19, 1
        %s444 = sand.u32 %s72, 1
        %s445 = sand.u32 %s72, 1
        %s446 = smul.addr %s445, 128
        %s447 = scalar_lea.vmem [#allocation4], %s446
        // Predicated region
        $region83: #{update_unit_forward.2} parent=81 // pred_check
          %p448 = pneg %p85
        $region84: #{update_unit_forward.2} parent=81 // pred_check_branch
          %450 = sbr.rel (%p448) target = $region86
        $region85: #{update_unit_forward.2} parent=81 // pred_region
          _
        $region86: #{update_unit_forward.2} parent=81 // pred_fallthru
          _
        %s451 = smul.u32 16, %s28
        %p452 = scmp.lt.s32.totalorder %s451, 47
        %s453 = scalar_select %p452, %s451, 47
        %s454 = smul.addr %s453, 8
        %s455 = scalar_lea.vmem %s0, %s454
        %p456 = pneg %p57
        %p457 = pneg %p54
        %s458 = sand.u32 %s72, 1
        %s459 = sand.u32 %s72, 1
        %s460 = smul.addr %s459, 128
        %s461 = scalar_lea.vmem [#allocation4], %s460
        %p462 = pneg %p85
        %p463 = pneg %p82
        %s464 = smul.u32 16, %s28
        %p465 = scmp.lt.s32.totalorder %s464, 47
        %s466 = scalar_select %p465, %s464, 47
        %s467 = smul.addr %s466, 8
        %s468 = scalar_lea.vmem %s2, %s467
        %p469 = pneg %p111
        %p470 = pneg %p108
        %p471 = pneg %p132
        %p472 = pneg %p129
        %s473 = smul.u32 16, %s29
        %p474 = scmp.lt.s32.totalorder %s473, 31
        %s475 = scalar_select %p474, %s473, 31
        %s476 = smul.addr %s475, 8
        %s477 = scalar_lea.vmem %s4, %s476
        %p478 = pneg %p158
        %p479 = pneg %p155
        %p480 = pneg %p179
        %p481 = pneg %p176
        %p482 = pneg %p200
        %p483 = pneg %p197
        %p484 = pneg %p226
        %p485 = pneg %p223
        %s486 = sand.u32 %s213, 1
        %s487 = scalar_lea.sflag [#allocation6], %s486
        %s488 = sand.u32 %s213, 1
        %s489 = smul.addr %s488, 128
        %s490 = scalar_lea.vmem [#allocation5], %s489
        %p491 = pneg %p252
        %p492 = pneg %p249
        %p493 = scmp.lt.s32.totalorder %s28, 2
        %s494 = scalar_select %p493, %s28, 2
        %s495 = scalar_lea.vmem %s8, %s494
        %p496 = pneg %p278
        %p497 = pneg %p275
        %p498 = scmp.lt.s32.totalorder %s28, 2
        %s499 = scalar_select %p498, %s28, 2
        %s500 = scalar_lea.vmem %s9, %s499
        %s501 = smul.u32 16, %s28
        %p502 = scmp.lt.s32.totalorder %s501, 47
        %s503 = scalar_select %p502, %s501, 47
        %s504 = smul.addr %s503, 8
        %s505 = scalar_lea.vmem %s0, %s504
        %s506 = smul.u32 16, %s28
        %s507 = smul.u32 16, %s28
        %s508 = smul.u32 16, %s28
        %p509 = scmp.lt.s32.totalorder %s508, 47
        %s510 = scalar_select %p509, %s508, 47
        %s511 = smul.addr %s510, 8
        %s512 = scalar_lea.vmem %s2, %s511
        %s513 = smul.u32 16, %s28
        %s514 = smul.u32 16, %s29
        %p515 = scmp.lt.s32.totalorder %s514, 31
        %s516 = scalar_select %p515, %s514, 31
        %s517 = smul.addr %s516, 8
        %s518 = scalar_lea.vmem %s4, %s517
        %s519 = smul.u32 16, %s29
        %s520 = smul.u32 16, %s28
        %p521 = scmp.lt.s32.totalorder %s28, 2
        %s522 = scalar_select %p521, %s28, 2
        %s523 = scalar_lea.vmem %s8, %s522
        %p524 = scmp.lt.s32.totalorder %s28, 2
        %s525 = scalar_select %p524, %s28, 2
        %s526 = scalar_lea.vmem %s9, %s525
        %p527 = scmp.eq.s32.totalorder %s29, 0
        // Predicated region
        $region87: #{update_unit_forward.2} parent=81 // pred_check
          %p528 = pneg %p527
        $region88: #{update_unit_forward.2} parent=81 // pred_check_branch
          %530 = sbr.rel (%p528) target = $region90
        $region89: #{update_unit_forward.2} parent=81 // pred_region
          %v531 = vld [vmem:[%s505] sm:$0xff]
          %v532 = vld [vmem:[%s505 + $0x8] sm:$0xff]
          %v533 = vld [vmem:[%s505 + $0x10] sm:$0xff]
          %v534 = vld [vmem:[%s505 + $0x18] sm:$0xff]
          %v535 = vld [vmem:[%s505 + $0x20] sm:$0xff]
          %v536 = vld [vmem:[%s505 + $0x28] sm:$0xff]
          %v537 = vld [vmem:[%s505 + $0x30] sm:$0xff]
          %v538 = vld [vmem:[%s505 + $0x38] sm:$0xff]
          %v539 = vld [vmem:[%s505 + $0x40] sm:$0xff]
          %v540 = vld [vmem:[%s505 + $0x48] sm:$0xff]
          %v541 = vld [vmem:[%s505 + $0x50] sm:$0xff]
          %v542 = vld [vmem:[%s505 + $0x58] sm:$0xff]
          %v543 = vld [vmem:[%s505 + $0x60] sm:$0xff]
          %v544 = vld [vmem:[%s505 + $0x68] sm:$0xff]
          %v545 = vld [vmem:[%s505 + $0x70] sm:$0xff]
          %v546 = vld [vmem:[%s505 + $0x78] sm:$0xff]
          %v547 = vld [vmem:[%s3] sm:$0xff]
          %v548 = vld [vmem:[%s3 + $0x8] sm:$0xff]
          %v549 = vld [vmem:[%s3 + $0x10] sm:$0xff]
          %v550 = vld [vmem:[%s3 + $0x18] sm:$0xff]
          %v551 = vld [vmem:[%s3 + $0x20] sm:$0xff]
          %v552 = vld [vmem:[%s3 + $0x28] sm:$0xff]
          %v553 = vld [vmem:[%s3 + $0x30] sm:$0xff]
          %v554 = vld [vmem:[%s3 + $0x38] sm:$0xff]
          %v555 = vld [vmem:[%s3 + $0x40] sm:$0xff]
          %v556 = vld [vmem:[%s3 + $0x48] sm:$0xff]
          %v557 = vld [vmem:[%s3 + $0x50] sm:$0xff]
          %v558 = vld [vmem:[%s3 + $0x58] sm:$0xff]
          %v559 = vld [vmem:[%s3 + $0x60] sm:$0xff]
          %v560 = vld [vmem:[%s3 + $0x68] sm:$0xff]
          %v561 = vld [vmem:[%s3 + $0x70] sm:$0xff]
          %v562 = vld [vmem:[%s3 + $0x78] sm:$0xff]
          %v563 = vld [vmem:[%s512] sm:$0xff]
          %v564 = vld [vmem:[%s512 + $0x8] sm:$0xff]
          %v565 = vld [vmem:[%s512 + $0x10] sm:$0xff]
          %v566 = vld [vmem:[%s512 + $0x18] sm:$0xff]
          %v567 = vld [vmem:[%s512 + $0x20] sm:$0xff]
          %v568 = vld [vmem:[%s512 + $0x28] sm:$0xff]
          %v569 = vld [vmem:[%s512 + $0x30] sm:$0xff]
          %v570 = vld [vmem:[%s512 + $0x38] sm:$0xff]
          %v571 = vld [vmem:[%s512 + $0x40] sm:$0xff]
          %v572 = vld [vmem:[%s512 + $0x48] sm:$0xff]
          %v573 = vld [vmem:[%s512 + $0x50] sm:$0xff]
          %v574 = vld [vmem:[%s512 + $0x58] sm:$0xff]
          %v575 = vld [vmem:[%s512 + $0x60] sm:$0xff]
          %v576 = vld [vmem:[%s512 + $0x68] sm:$0xff]
          %v577 = vld [vmem:[%s512 + $0x70] sm:$0xff]
          %v578 = vld [vmem:[%s512 + $0x78] sm:$0xff]
          %v579 = vld [vmem:[%s5] sm:$0xff]
          %v580 = vld [vmem:[%s5 + $0x8] sm:$0xff]
          %v581 = vld [vmem:[%s5 + $0x10] sm:$0xff]
          %v582 = vld [vmem:[%s5 + $0x18] sm:$0xff]
          %v583 = vld [vmem:[%s5 + $0x20] sm:$0xff]
          %v584 = vld [vmem:[%s5 + $0x28] sm:$0xff]
          %v585 = vld [vmem:[%s5 + $0x30] sm:$0xff]
          %v586 = vld [vmem:[%s5 + $0x38] sm:$0xff]
          %v587 = vld [vmem:[%s5 + $0x40] sm:$0xff]
          %v588 = vld [vmem:[%s5 + $0x48] sm:$0xff]
          %v589 = vld [vmem:[%s5 + $0x50] sm:$0xff]
          %v590 = vld [vmem:[%s5 + $0x58] sm:$0xff]
          %v591 = vld [vmem:[%s5 + $0x60] sm:$0xff]
          %v592 = vld [vmem:[%s5 + $0x68] sm:$0xff]
          %v593 = vld [vmem:[%s5 + $0x70] sm:$0xff]
          %v594 = vld [vmem:[%s5 + $0x78] sm:$0xff]
          %595 = vmatprep.subr.mxu0 0.0
          %596 = vmatpush1.msra.mxu0 %v579
          %597 = vmatprep.subr.mxu0 0.0
          %598 = vmatpush1.msra.mxu0 %v580
          %599 = vmatprep.subr.mxu0 0.0
          %600 = vmatpush1.msra.mxu0 %v581
          %601 = vmatprep.subr.mxu0 0.0
          %602 = vmatpush1.msra.mxu0 %v582
          %603 = vmatprep.subr.mxu0 0.0
          %604 = vmatpush1.msra.mxu0 %v583
          %605 = vmatprep.subr.mxu0 0.0
          %606 = vmatpush1.msra.mxu0 %v584
          %607 = vmatprep.subr.mxu0 0.0
          %608 = vmatpush1.msra.mxu0 %v585
          %609 = vmatprep.subr.mxu0 0.0
          %610 = vmatpush1.msra.mxu0 %v586
          %611 = vmatprep.subr.mxu0 0.0
          %612 = vmatpush1.msra.mxu0 %v587
          %613 = vmatprep.subr.mxu0 0.0
          %614 = vmatpush1.msra.mxu0 %v588
          %615 = vmatprep.subr.mxu0 0.0
          %616 = vmatpush1.msra.mxu0 %v589
          %617 = vmatprep.subr.mxu0 0.0
          %618 = vmatpush1.msra.mxu0 %v590
          %619 = vmatprep.subr.mxu0 0.0
          %620 = vmatpush1.msra.mxu0 %v591
          %621 = vmatprep.subr.mxu0 0.0
          %622 = vmatpush1.msra.mxu0 %v592
          %623 = vmatprep.subr.mxu0 0.0
          %624 = vmatpush1.msra.mxu0 %v593
          %625 = vmatprep.subr.mxu0 0.0
          %626 = vmatpush1.msra.mxu0 %v594
          %627 = vmatprep.subr.mxu0 0.0
          %628 = vmatpush1.msra.mxu0 0.0
          %629 = vmatprep.subr.mxu0 0.0
          %630 = vmatpush1.msra.mxu0 0.0
          %631 = vmatprep.subr.mxu0 0.0
          %632 = vmatpush1.msra.mxu0 0.0
          %633 = vmatprep.subr.mxu0 0.0
          %634 = vmatpush1.msra.mxu0 0.0
          %635 = vmatprep.subr.mxu0 0.0
          %636 = vmatpush1.msra.mxu0 0.0
          %637 = vmatprep.subr.mxu0 0.0
          %638 = vmatpush1.msra.mxu0 0.0
          %639 = vmatprep.subr.mxu0 0.0
          %640 = vmatpush1.msra.mxu0 0.0
          %641 = vmatprep.subr.mxu0 0.0
          %642 = vmatpush1.msra.mxu0 0.0
          %643 = vmatprep.subr.mxu0 0.0
          %644 = vmatpush1.msra.mxu0 0.0
          %645 = vmatprep.subr.mxu0 0.0
          %646 = vmatpush1.msra.mxu0 0.0
          %647 = vmatprep.subr.mxu0 0.0
          %648 = vmatpush1.msra.mxu0 0.0
          %649 = vmatprep.subr.mxu0 0.0
          %650 = vmatpush1.msra.mxu0 0.0
          %651 = vmatprep.subr.mxu0 0.0
          %652 = vmatpush1.msra.mxu0 0.0
          %653 = vmatprep.subr.mxu0 0.0
          %654 = vmatpush1.msra.mxu0 0.0
          %655 = vmatprep.subr.mxu0 0.0
          %656 = vmatpush1.msra.mxu0 0.0
          %657 = vmatprep.subr.mxu0 0.0
          %658 = vmatpush1.msra.mxu0 0.0
          %659 = vmatprep.mubr.f32.mxu0 0.0
          %660 = vmatmul.mubr.f32.gmra.mrb[0].mxu0 %v563
          %v661 = vpop.f32.mrb[0].mxu0
          %v662 = vadd.f32 0.0, %v661
          %v663 = vpop.f32.mrb[0].mxu0
          %664 = vmatprep.mubr.f32.mxu0 0.0
          %665 = vmatmul.mubr.f32.gmra.mrb[0].mxu0 %v564
          %v666 = vpop.f32.mrb[0].mxu0
          %v667 = vadd.f32 0.0, %v666
          %v668 = vpop.f32.mrb[0].mxu0
          %669 = vmatprep.mubr.f32.mxu0 0.0
          %670 = vmatmul.mubr.f32.gmra.mrb[0].mxu0 %v565
          %v671 = vpop.f32.mrb[0].mxu0
          %v672 = vadd.f32 0.0, %v671
          %v673 = vpop.f32.mrb[0].mxu0
          %674 = vmatprep.mubr.f32.mxu0 0.0
          %675 = vmatmul.mubr.f32.gmra.mrb[0].mxu0 %v566
          %v676 = vpop.f32.mrb[0].mxu0
          %v677 = vadd.f32 0.0, %v676
          %v678 = vpop.f32.mrb[0].mxu0
          %679 = vmatprep.mubr.f32.mxu0 0.0
          %680 = vmatmul.mubr.f32.gmra.mrb[0].mxu0 %v567
          %v681 = vpop.f32.mrb[0].mxu0
          %v682 = vadd.f32 0.0, %v681
          %v683 = vpop.f32.mrb[0].mxu0
          %684 = vmatprep.mubr.f32.mxu0 0.0
          %685 = vmatmul.mubr.f32.gmra.mrb[0].mxu0 %v568
          %v686 = vpop.f32.mrb[0].mxu0
          %v687 = vadd.f32 0.0, %v686
          %v688 = vpop.f32.mrb[0].mxu0
          %689 = vmatprep.mubr.f32.mxu0 0.0
          %690 = vmatmul.mubr.f32.gmra.mrb[0].mxu0 %v569
          %v691 = vpop.f32.mrb[0].mxu0
          %v692 = vadd.f32 0.0, %v691
          %v693 = vpop.f32.mrb[0].mxu0
          %694 = vmatprep.mubr.f32.mxu0 0.0
          %695 = vmatmul.mubr.f32.gmra.mrb[0].mxu0 %v570
          %v696 = vpop.f32.mrb[0].mxu0
          %v697 = vadd.f32 0.0, %v696
          %v698 = vpop.f32.mrb[0].mxu0
          %699 = vmatprep.mubr.f32.mxu0 0.0
          %700 = vmatmul.mubr.f32.gmra.mrb[0].mxu0 %v571
          %v701 = vpop.f32.mrb[0].mxu0
          %v702 = vadd.f32 0.0, %v701
          %v703 = vpop.f32.mrb[0].mxu0
          %704 = vmatprep.mubr.f32.mxu0 0.0
          %705 = vmatmul.mubr.f32.gmra.mrb[0].mxu0 %v572
          %v706 = vpop.f32.mrb[0].mxu0
          %v707 = vadd.f32 0.0, %v706
          %v708 = vpop.f32.mrb[0].mxu0
          %709 = vmatprep.mubr.f32.mxu0 0.0
          %710 = vmatmul.mubr.f32.gmra.mrb[0].mxu0 %v573
          %v711 = vpop.f32.mrb[0].mxu0
          %v712 = vadd.f32 0.0, %v711
          %v713 = vpop.f32.mrb[0].mxu0
          %714 = vmatprep.mubr.f32.mxu0 0.0
          %715 = vmatmul.mubr.f32.gmra.mrb[0].mxu0 %v574
          %v716 = vpop.f32.mrb[0].mxu0
          %v717 = vadd.f32 0.0, %v716
          %v718 = vpop.f32.mrb[0].mxu0
          %719 = vmatprep.mubr.f32.mxu0 0.0
          %720 = vmatmul.mubr.f32.gmra.mrb[0].mxu0 %v575
          %v721 = vpop.f32.mrb[0].mxu0
          %v722 = vadd.f32 0.0, %v721
          %v723 = vpop.f32.mrb[0].mxu0
          %724 = vmatprep.mubr.f32.mxu0 0.0
          %725 = vmatmul.mubr.f32.gmra.mrb[0].mxu0 %v576
          %v726 = vpop.f32.mrb[0].mxu0
          %v727 = vadd.f32 0.0, %v726
          %v728 = vpop.f32.mrb[0].mxu0
          %729 = vmatprep.mubr.f32.mxu0 0.0
          %730 = vmatmul.mubr.f32.gmra.mrb[0].mxu0 %v577
          %v731 = vpop.f32.mrb[0].mxu0
          %v732 = vadd.f32 0.0, %v731
          %v733 = vpop.f32.mrb[0].mxu0
          %734 = vmatprep.mubr.f32.mxu0 0.0
          %735 = vmatmul.mubr.f32.gmra.mrb[0].mxu0 %v578
          %v736 = vpop.f32.mrb[0].mxu0
          %v737 = vadd.f32 0.0, %v736
          %v738 = vpop.f32.mrb[0].mxu0
          %739 = vdwg.mxu0
          %740 = vmatprep.subr.mxu0 0.0
          %741 = vmatpush1.msra.mxu0 %v547
          %742 = vmatprep.subr.mxu0 0.0
          %743 = vmatpush1.msra.mxu0 %v548
          %744 = vmatprep.subr.mxu0 0.0
          %745 = vmatpush1.msra.mxu0 %v549
          %746 = vmatprep.subr.mxu0 0.0
          %747 = vmatpush1.msra.mxu0 %v550
          %748 = vmatprep.subr.mxu0 0.0
          %749 = vmatpush1.msra.mxu0 %v551
          %750 = vmatprep.subr.mxu0 0.0
          %751 = vmatpush1.msra.mxu0 %v552
          %752 = vmatprep.subr.mxu0 0.0
          %753 = vmatpush1.msra.mxu0 %v553
          %754 = vmatprep.subr.mxu0 0.0
          %755 = vmatpush1.msra.mxu0 %v554
          %756 = vmatprep.subr.mxu0 0.0
          %757 = vmatpush1.msra.mxu0 %v555
          %758 = vmatprep.subr.mxu0 0.0
          %759 = vmatpush1.msra.mxu0 %v556
          %760 = vmatprep.subr.mxu0 0.0
          %761 = vmatpush1.msra.mxu0 %v557
          %762 = vmatprep.subr.mxu0 0.0
          %763 = vmatpush1.msra.mxu0 %v558
          %764 = vmatprep.subr.mxu0 0.0
          %765 = vmatpush1.msra.mxu0 %v559
          %766 = vmatprep.subr.mxu0 0.0
          %767 = vmatpush1.msra.mxu0 %v560
          %768 = vmatprep.subr.mxu0 0.0
          %769 = vmatpush1.msra.mxu0 %v561
          %770 = vmatprep.subr.mxu0 0.0
          %771 = vmatpush1.msra.mxu0 %v562
          %772 = vmatprep.subr.mxu0 0.0
          %773 = vmatpush1.msra.mxu0 0.0
          %774 = vmatprep.subr.mxu0 0.0
          %775 = vmatpush1.msra.mxu0 0.0
          %776 = vmatprep.subr.mxu0 0.0
          %777 = vmatpush1.msra.mxu0 0.0
          %778 = vmatprep.subr.mxu0 0.0
          %779 = vmatpush1.msra.mxu0 0.0
          %780 = vmatprep.subr.mxu0 0.0
          %781 = vmatpush1.msra.mxu0 0.0
          %782 = vmatprep.subr.mxu0 0.0
          %783 = vmatpush1.msra.mxu0 0.0
          %784 = vmatprep.subr.mxu0 0.0
          %785 = vmatpush1.msra.mxu0 0.0
          %786 = vmatprep.subr.mxu0 0.0
          %787 = vmatpush1.msra.mxu0 0.0
          %788 = vmatprep.subr.mxu0 0.0
          %789 = vmatpush1.msra.mxu0 0.0
          %790 = vmatprep.subr.mxu0 0.0
          %791 = vmatpush1.msra.mxu0 0.0
          %792 = vmatprep.subr.mxu0 0.0
          %793 = vmatpush1.msra.mxu0 0.0
          %794 = vmatprep.subr.mxu0 0.0
          %795 = vmatpush1.msra.mxu0 0.0
          %796 = vmatprep.subr.mxu0 0.0
          %797 = vmatpush1.msra.mxu0 0.0
          %798 = vmatprep.subr.mxu0 0.0
          %799 = vmatpush1.msra.mxu0 0.0
          %800 = vmatprep.subr.mxu0 0.0
          %801 = vmatpush1.msra.mxu0 0.0
          %802 = vmatprep.subr.mxu0 0.0
          %803 = vmatpush1.msra.mxu0 0.0
          %804 = vmatprep.mubr.f32.mxu0 0.0
          %805 = vmatmul.mubr.f32.gmra.mrb[0].mxu0 %v531
          %v806 = vpop.f32.mrb[0].mxu0
          %v807 = vadd.f32 %v662, %v806
          %v808 = vpop.f32.mrb[0].mxu0
          %809 = vmatprep.mubr.f32.mxu0 0.0
          %810 = vmatmul.mubr.f32.gmra.mrb[0].mxu0 %v532
          %v811 = vpop.f32.mrb[0].mxu0
          %v812 = vadd.f32 %v667, %v811
          %v813 = vpop.f32.mrb[0].mxu0
          %814 = vmatprep.mubr.f32.mxu0 0.0
          %815 = vmatmul.mubr.f32.gmra.mrb[0].mxu0 %v533
          %v816 = vpop.f32.mrb[0].mxu0
          %v817 = vadd.f32 %v672, %v816
          %v818 = vpop.f32.mrb[0].mxu0
          %819 = vmatprep.mubr.f32.mxu0 0.0
          %820 = vmatmul.mubr.f32.gmra.mrb[0].mxu0 %v534
          %v821 = vpop.f32.mrb[0].mxu0
          %v822 = vadd.f32 %v677, %v821
          %v823 = vpop.f32.mrb[0].mxu0
          %824 = vmatprep.mubr.f32.mxu0 0.0
          %825 = vmatmul.mubr.f32.gmra.mrb[0].mxu0 %v535
          %v826 = vpop.f32.mrb[0].mxu0
          %v827 = vadd.f32 %v682, %v826
          %v828 = vpop.f32.mrb[0].mxu0
          %829 = vmatprep.mubr.f32.mxu0 0.0
          %830 = vmatmul.mubr.f32.gmra.mrb[0].mxu0 %v536
          %v831 = vpop.f32.mrb[0].mxu0
          %v832 = vadd.f32 %v687, %v831
          %v833 = vpop.f32.mrb[0].mxu0
          %834 = vmatprep.mubr.f32.mxu0 0.0
          %835 = vmatmul.mubr.f32.gmra.mrb[0].mxu0 %v537
          %v836 = vpop.f32.mrb[0].mxu0
          %v837 = vadd.f32 %v692, %v836
          %v838 = vpop.f32.mrb[0].mxu0
          %839 = vmatprep.mubr.f32.mxu0 0.0
          %840 = vmatmul.mubr.f32.gmra.mrb[0].mxu0 %v538
          %v841 = vpop.f32.mrb[0].mxu0
          %v842 = vadd.f32 %v697, %v841
          %v843 = vpop.f32.mrb[0].mxu0
          %844 = vmatprep.mubr.f32.mxu0 0.0
          %845 = vmatmul.mubr.f32.gmra.mrb[0].mxu0 %v539
          %v846 = vpop.f32.mrb[0].mxu0
          %v847 = vadd.f32 %v702, %v846
          %v848 = vpop.f32.mrb[0].mxu0
          %849 = vmatprep.mubr.f32.mxu0 0.0
          %850 = vmatmul.mubr.f32.gmra.mrb[0].mxu0 %v540
          %v851 = vpop.f32.mrb[0].mxu0
          %v852 = vadd.f32 %v707, %v851
          %v853 = vpop.f32.mrb[0].mxu0
          %854 = vmatprep.mubr.f32.mxu0 0.0
          %855 = vmatmul.mubr.f32.gmra.mrb[0].mxu0 %v541
          %v856 = vpop.f32.mrb[0].mxu0
          %v857 = vadd.f32 %v712, %v856
          %v858 = vpop.f32.mrb[0].mxu0
          %859 = vmatprep.mubr.f32.mxu0 0.0
          %860 = vmatmul.mubr.f32.gmra.mrb[0].mxu0 %v542
          %v861 = vpop.f32.mrb[0].mxu0
          %v862 = vadd.f32 %v717, %v861
          %v863 = vpop.f32.mrb[0].mxu0
          %864 = vmatprep.mubr.f32.mxu0 0.0
          %865 = vmatmul.mubr.f32.gmra.mrb[0].mxu0 %v543
          %v866 = vpop.f32.mrb[0].mxu0
          %v867 = vadd.f32 %v722, %v866
          %v868 = vpop.f32.mrb[0].mxu0
          %869 = vmatprep.mubr.f32.mxu0 0.0
          %870 = vmatmul.mubr.f32.gmra.mrb[0].mxu0 %v544
          %v871 = vpop.f32.mrb[0].mxu0
          %v872 = vadd.f32 %v727, %v871
          %v873 = vpop.f32.mrb[0].mxu0
          %874 = vmatprep.mubr.f32.mxu0 0.0
          %875 = vmatmul.mubr.f32.gmra.mrb[0].mxu0 %v545
          %v876 = vpop.f32.mrb[0].mxu0
          %v877 = vadd.f32 %v732, %v876
          %v878 = vpop.f32.mrb[0].mxu0
          %879 = vmatprep.mubr.f32.mxu0 0.0
          %880 = vmatmul.mubr.f32.gmra.mrb[0].mxu0 %v546
          %v881 = vpop.f32.mrb[0].mxu0
          %v882 = vadd.f32 %v737, %v881
          %v883 = vpop.f32.mrb[0].mxu0
          %884 = vdwg.mxu0
          %v885 = vld [vmem:[%s6] sm:$0x1]
          %v887 = vlaneseq
          %v888 = vshrl.u32 %v887, 7
          %v889 = vsub.s32 0, %v888
          %v890 = vrot.slane %v885, %v889
          %v892 = vadd.f32 %v807, %v890
          %v893 = vadd.f32 %v812, %v890
          %v894 = vadd.f32 %v817, %v890
          %v895 = vadd.f32 %v822, %v890
          %v896 = vadd.f32 %v827, %v890
          %v897 = vadd.f32 %v832, %v890
          %v898 = vadd.f32 %v837, %v890
          %v899 = vadd.f32 %v842, %v890
          %v900 = vadd.f32 %v847, %v890
          %v901 = vadd.f32 %v852, %v890
          %v902 = vadd.f32 %v857, %v890
          %v903 = vadd.f32 %v862, %v890
          %v904 = vadd.f32 %v867, %v890
          %v905 = vadd.f32 %v872, %v890
          %v906 = vadd.f32 %v877, %v890
          %v907 = vadd.f32 %v882, %v890
          %908 = vst [vmem:[#allocation2] sm:$0xff] %v892
          %909 = vst [vmem:[#allocation2 + $0x8] sm:$0xff] %v893
          %910 = vst [vmem:[#allocation2 + $0x10] sm:$0xff] %v894
          %911 = vst [vmem:[#allocation2 + $0x18] sm:$0xff] %v895
          %912 = vst [vmem:[#allocation2 + $0x20] sm:$0xff] %v896
          %913 = vst [vmem:[#allocation2 + $0x28] sm:$0xff] %v897
          %914 = vst [vmem:[#allocation2 + $0x30] sm:$0xff] %v898
          %915 = vst [vmem:[#allocation2 + $0x38] sm:$0xff] %v899
          %916 = vst [vmem:[#allocation2 + $0x40] sm:$0xff] %v900
          %917 = vst [vmem:[#allocation2 + $0x48] sm:$0xff] %v901
          %918 = vst [vmem:[#allocation2 + $0x50] sm:$0xff] %v902
          %919 = vst [vmem:[#allocation2 + $0x58] sm:$0xff] %v903
          %920 = vst [vmem:[#allocation2 + $0x60] sm:$0xff] %v904
          %921 = vst [vmem:[#allocation2 + $0x68] sm:$0xff] %v905
          %922 = vst [vmem:[#allocation2 + $0x70] sm:$0xff] %v906
          %923 = vst [vmem:[#allocation2 + $0x78] sm:$0xff] %v907
          %vm924 = vcmask 7168
          %925 = vst.msk [vmem:[#allocation3] sm:$0xff] %vm924, 0.0
          %926 = vst.msk [vmem:[#allocation3 + $0x8] sm:$0xff] %vm924, 0.0
          %927 = vst.msk [vmem:[#allocation3 + $0x10] sm:$0xff] %vm924, 0.0
          %928 = vst.msk [vmem:[#allocation3 + $0x18] sm:$0xff] %vm924, 0.0
          %929 = vst.msk [vmem:[#allocation3 + $0x20] sm:$0xff] %vm924, 0.0
          %930 = vst.msk [vmem:[#allocation3 + $0x28] sm:$0xff] %vm924, 0.0
          %931 = vst.msk [vmem:[#allocation3 + $0x30] sm:$0xff] %vm924, 0.0
          %932 = vst.msk [vmem:[#allocation3 + $0x38] sm:$0xff] %vm924, 0.0
          %933 = vst.msk [vmem:[#allocation3 + $0x40] sm:$0xff] %vm924, 0.0
          %934 = vst.msk [vmem:[#allocation3 + $0x48] sm:$0xff] %vm924, 0.0
          %935 = vst.msk [vmem:[#allocation3 + $0x50] sm:$0xff] %vm924, 0.0
          %936 = vst.msk [vmem:[#allocation3 + $0x58] sm:$0xff] %vm924, 0.0
          %937 = vst.msk [vmem:[#allocation3 + $0x60] sm:$0xff] %vm924, 0.0
          %938 = vst.msk [vmem:[#allocation3 + $0x68] sm:$0xff] %vm924, 0.0
          %939 = vst.msk [vmem:[#allocation3 + $0x70] sm:$0xff] %vm924, 0.0
          %940 = vst.msk [vmem:[#allocation3 + $0x78] sm:$0xff] %vm924, 0.0
        $region90: #{update_unit_forward.2} parent=81 // pred_fallthru
          _
        %v941 = vld [vmem:[%s447] sm:$0xff]
        %v942 = vld [vmem:[%s447 + $0x8] sm:$0xff]
        %v943 = vld [vmem:[%s447 + $0x10] sm:$0xff]
        %v944 = vld [vmem:[%s447 + $0x18] sm:$0xff]
        %v945 = vld [vmem:[%s447 + $0x20] sm:$0xff]
        %v946 = vld [vmem:[%s447 + $0x28] sm:$0xff]
        %v947 = vld [vmem:[%s447 + $0x30] sm:$0xff]
        %v948 = vld [vmem:[%s447 + $0x38] sm:$0xff]
        %v949 = vld [vmem:[%s447 + $0x40] sm:$0xff]
        %v950 = vld [vmem:[%s447 + $0x48] sm:$0xff]
        %v951 = vld [vmem:[%s447 + $0x50] sm:$0xff]
        %v952 = vld [vmem:[%s447 + $0x58] sm:$0xff]
        %v953 = vld [vmem:[%s447 + $0x60] sm:$0xff]
        %v954 = vld [vmem:[%s447 + $0x68] sm:$0xff]
        %v955 = vld [vmem:[%s447 + $0x70] sm:$0xff]
        %v956 = vld [vmem:[%s447 + $0x78] sm:$0xff]
        %v957 = vld [vmem:[#allocation2] sm:$0xff]
        %v958 = vld [vmem:[#allocation2 + $0x8] sm:$0xff]
        %v959 = vld [vmem:[#allocation2 + $0x10] sm:$0xff]
        %v960 = vld [vmem:[#allocation2 + $0x18] sm:$0xff]
        %v961 = vld [vmem:[#allocation2 + $0x20] sm:$0xff]
        %v962 = vld [vmem:[#allocation2 + $0x28] sm:$0xff]
        %v963 = vld [vmem:[#allocation2 + $0x30] sm:$0xff]
        %v964 = vld [vmem:[#allocation2 + $0x38] sm:$0xff]
        %v965 = vld [vmem:[#allocation2 + $0x40] sm:$0xff]
        %v966 = vld [vmem:[#allocation2 + $0x48] sm:$0xff]
        %v967 = vld [vmem:[#allocation2 + $0x50] sm:$0xff]
        %v968 = vld [vmem:[#allocation2 + $0x58] sm:$0xff]
        %v969 = vld [vmem:[#allocation2 + $0x60] sm:$0xff]
        %v970 = vld [vmem:[#allocation2 + $0x68] sm:$0xff]
        %v971 = vld [vmem:[#allocation2 + $0x70] sm:$0xff]
        %v972 = vld [vmem:[#allocation2 + $0x78] sm:$0xff]
        %v973 = vld [vmem:[%s518] sm:$0xff]
        %v974 = vld [vmem:[%s518 + $0x8] sm:$0xff]
        %v975 = vld [vmem:[%s518 + $0x10] sm:$0xff]
        %v976 = vld [vmem:[%s518 + $0x18] sm:$0xff]
        %v977 = vld [vmem:[%s518 + $0x20] sm:$0xff]
        %v978 = vld [vmem:[%s518 + $0x28] sm:$0xff]
        %v979 = vld [vmem:[%s518 + $0x30] sm:$0xff]
        %v980 = vld [vmem:[%s518 + $0x38] sm:$0xff]
        %v981 = vld [vmem:[%s518 + $0x40] sm:$0xff]
        %v982 = vld [vmem:[%s518 + $0x48] sm:$0xff]
        %v983 = vld [vmem:[%s518 + $0x50] sm:$0xff]
        %v984 = vld [vmem:[%s518 + $0x58] sm:$0xff]
        %v985 = vld [vmem:[%s518 + $0x60] sm:$0xff]
        %v986 = vld [vmem:[%s518 + $0x68] sm:$0xff]
        %v987 = vld [vmem:[%s518 + $0x70] sm:$0xff]
        %v988 = vld [vmem:[%s518 + $0x78] sm:$0xff]
        %989 = vmatprep.subr.mxu0 0.0
        %990 = vmatpush1.msra.mxu0 %v973
        %991 = vmatprep.subr.mxu0 0.0
        %992 = vmatpush1.msra.mxu0 %v974
        %993 = vmatprep.subr.mxu0 0.0
        %994 = vmatpush1.msra.mxu0 %v975
        %995 = vmatprep.subr.mxu0 0.0
        %996 = vmatpush1.msra.mxu0 %v976
        %997 = vmatprep.subr.mxu0 0.0
        %998 = vmatpush1.msra.mxu0 %v977
        %999 = vmatprep.subr.mxu0 0.0
        %1000 = vmatpush1.msra.mxu0 %v978
        %1001 = vmatprep.subr.mxu0 0.0
        %1002 = vmatpush1.msra.mxu0 %v979
        %1003 = vmatprep.subr.mxu0 0.0
        %1004 = vmatpush1.msra.mxu0 %v980
        %1005 = vmatprep.subr.mxu0 0.0
        %1006 = vmatpush1.msra.mxu0 %v981
        %1007 = vmatprep.subr.mxu0 0.0
        %1008 = vmatpush1.msra.mxu0 %v982
        %1009 = vmatprep.subr.mxu0 0.0
        %1010 = vmatpush1.msra.mxu0 %v983
        %1011 = vmatprep.subr.mxu0 0.0
        %1012 = vmatpush1.msra.mxu0 %v984
        %1013 = vmatprep.subr.mxu0 0.0
        %1014 = vmatpush1.msra.mxu0 %v985
        %1015 = vmatprep.subr.mxu0 0.0
        %1016 = vmatpush1.msra.mxu0 %v986
        %1017 = vmatprep.subr.mxu0 0.0
        %1018 = vmatpush1.msra.mxu0 %v987
        %1019 = vmatprep.subr.mxu0 0.0
        %1020 = vmatpush1.msra.mxu0 %v988
        %1021 = vmatprep.subr.mxu0 0.0
        %1022 = vmatpush1.msra.mxu0 0.0
        %1023 = vmatprep.subr.mxu0 0.0
        %1024 = vmatpush1.msra.mxu0 0.0
        %1025 = vmatprep.subr.mxu0 0.0
        %1026 = vmatpush1.msra.mxu0 0.0
        %1027 = vmatprep.subr.mxu0 0.0
        %1028 = vmatpush1.msra.mxu0 0.0
        %1029 = vmatprep.subr.mxu0 0.0
        %1030 = vmatpush1.msra.mxu0 0.0
        %1031 = vmatprep.subr.mxu0 0.0
        %1032 = vmatpush1.msra.mxu0 0.0
        %1033 = vmatprep.subr.mxu0 0.0
        %1034 = vmatpush1.msra.mxu0 0.0
        %1035 = vmatprep.subr.mxu0 0.0
        %1036 = vmatpush1.msra.mxu0 0.0
        %1037 = vmatprep.subr.mxu0 0.0
        %1038 = vmatpush1.msra.mxu0 0.0
        %1039 = vmatprep.subr.mxu0 0.0
        %1040 = vmatpush1.msra.mxu0 0.0
        %1041 = vmatprep.subr.mxu0 0.0
        %1042 = vmatpush1.msra.mxu0 0.0
        %1043 = vmatprep.subr.mxu0 0.0
        %1044 = vmatpush1.msra.mxu0 0.0
        %1045 = vmatprep.subr.mxu0 0.0
        %1046 = vmatpush1.msra.mxu0 0.0
        %1047 = vmatprep.subr.mxu0 0.0
        %1048 = vmatpush1.msra.mxu0 0.0
        %1049 = vmatprep.subr.mxu0 0.0
        %1050 = vmatpush1.msra.mxu0 0.0
        %1051 = vmatprep.subr.mxu0 0.0
        %1052 = vmatpush1.msra.mxu0 0.0
        %1053 = vmatprep.mubr.f32.mxu0 0.0
        %1054 = vmatmul.mubr.f32.gmra.mrb[0].mxu0 %v941
        %v1055 = vpop.f32.mrb[0].mxu0
        %v1056 = vadd.f32 0.0, %v1055
        %v1057 = vpop.f32.mrb[0].mxu0
        %1058 = vmatprep.mubr.f32.mxu0 0.0
        %1059 = vmatmul.mubr.f32.gmra.mrb[0].mxu0 %v942
        %v1060 = vpop.f32.mrb[0].mxu0
        %v1061 = vadd.f32 0.0, %v1060
        %v1062 = vpop.f32.mrb[0].mxu0
        %1063 = vmatprep.mubr.f32.mxu0 0.0
        %1064 = vmatmul.mubr.f32.gmra.mrb[0].mxu0 %v943
        %v1065 = vpop.f32.mrb[0].mxu0
        %v1066 = vadd.f32 0.0, %v1065
        %v1067 = vpop.f32.mrb[0].mxu0
        %1068 = vmatprep.mubr.f32.mxu0 0.0
        %1069 = vmatmul.mubr.f32.gmra.mrb[0].mxu0 %v944
        %v1070 = vpop.f32.mrb[0].mxu0
        %v1071 = vadd.f32 0.0, %v1070
        %v1072 = vpop.f32.mrb[0].mxu0
        %1073 = vmatprep.mubr.f32.mxu0 0.0
        %1074 = vmatmul.mubr.f32.gmra.mrb[0].mxu0 %v945
        %v1075 = vpop.f32.mrb[0].mxu0
        %v1076 = vadd.f32 0.0, %v1075
        %v1077 = vpop.f32.mrb[0].mxu0
        %1078 = vmatprep.mubr.f32.mxu0 0.0
        %1079 = vmatmul.mubr.f32.gmra.mrb[0].mxu0 %v946
        %v1080 = vpop.f32.mrb[0].mxu0
        %v1081 = vadd.f32 0.0, %v1080
        %v1082 = vpop.f32.mrb[0].mxu0
        %1083 = vmatprep.mubr.f32.mxu0 0.0
        %1084 = vmatmul.mubr.f32.gmra.mrb[0].mxu0 %v947
        %v1085 = vpop.f32.mrb[0].mxu0
        %v1086 = vadd.f32 0.0, %v1085
        %v1087 = vpop.f32.mrb[0].mxu0
        %1088 = vmatprep.mubr.f32.mxu0 0.0
        %1089 = vmatmul.mubr.f32.gmra.mrb[0].mxu0 %v948
        %v1090 = vpop.f32.mrb[0].mxu0
        %v1091 = vadd.f32 0.0, %v1090
        %v1092 = vpop.f32.mrb[0].mxu0
        %1093 = vmatprep.mubr.f32.mxu0 0.0
        %1094 = vmatmul.mubr.f32.gmra.mrb[0].mxu0 %v949
        %v1095 = vpop.f32.mrb[0].mxu0
        %v1096 = vadd.f32 0.0, %v1095
        %v1097 = vpop.f32.mrb[0].mxu0
        %1098 = vmatprep.mubr.f32.mxu0 0.0
        %1099 = vmatmul.mubr.f32.gmra.mrb[0].mxu0 %v950
        %v1100 = vpop.f32.mrb[0].mxu0
        %v1101 = vadd.f32 0.0, %v1100
        %v1102 = vpop.f32.mrb[0].mxu0
        %1103 = vmatprep.mubr.f32.mxu0 0.0
        %1104 = vmatmul.mubr.f32.gmra.mrb[0].mxu0 %v951
        %v1105 = vpop.f32.mrb[0].mxu0
        %v1106 = vadd.f32 0.0, %v1105
        %v1107 = vpop.f32.mrb[0].mxu0
        %1108 = vmatprep.mubr.f32.mxu0 0.0
        %1109 = vmatmul.mubr.f32.gmra.mrb[0].mxu0 %v952
        %v1110 = vpop.f32.mrb[0].mxu0
        %v1111 = vadd.f32 0.0, %v1110
        %v1112 = vpop.f32.mrb[0].mxu0
        %1113 = vmatprep.mubr.f32.mxu0 0.0
        %1114 = vmatmul.mubr.f32.gmra.mrb[0].mxu0 %v953
        %v1115 = vpop.f32.mrb[0].mxu0
        %v1116 = vadd.f32 0.0, %v1115
        %v1117 = vpop.f32.mrb[0].mxu0
        %1118 = vmatprep.mubr.f32.mxu0 0.0
        %1119 = vmatmul.mubr.f32.gmra.mrb[0].mxu0 %v954
        %v1120 = vpop.f32.mrb[0].mxu0
        %v1121 = vadd.f32 0.0, %v1120
        %v1122 = vpop.f32.mrb[0].mxu0
        %1123 = vmatprep.mubr.f32.mxu0 0.0
        %1124 = vmatmul.mubr.f32.gmra.mrb[0].mxu0 %v955
        %v1125 = vpop.f32.mrb[0].mxu0
        %v1126 = vadd.f32 0.0, %v1125
        %v1127 = vpop.f32.mrb[0].mxu0
        %1128 = vmatprep.mubr.f32.mxu0 0.0
        %1129 = vmatmul.mubr.f32.gmra.mrb[0].mxu0 %v956
        %v1130 = vpop.f32.mrb[0].mxu0
        %v1131 = vadd.f32 0.0, %v1130
        %v1132 = vpop.f32.mrb[0].mxu0
        %1133 = vdwg.mxu0
        %v1134 = vadd.f32 %v957, %v1056
        %v1135 = vadd.f32 %v958, %v1061
        %v1136 = vadd.f32 %v959, %v1066
        %v1137 = vadd.f32 %v960, %v1071
        %v1138 = vadd.f32 %v961, %v1076
        %v1139 = vadd.f32 %v962, %v1081
        %v1140 = vadd.f32 %v963, %v1086
        %v1141 = vadd.f32 %v964, %v1091
        %v1142 = vadd.f32 %v965, %v1096
        %v1143 = vadd.f32 %v966, %v1101
        %v1144 = vadd.f32 %v967, %v1106
        %v1145 = vadd.f32 %v968, %v1111
        %v1146 = vadd.f32 %v969, %v1116
        %v1147 = vadd.f32 %v970, %v1121
        %v1148 = vadd.f32 %v971, %v1126
        %v1149 = vadd.f32 %v972, %v1131
        %1150 = vst [vmem:[#allocation2] sm:$0xff] %v1134
        %1151 = vst [vmem:[#allocation2 + $0x8] sm:$0xff] %v1135
        %1152 = vst [vmem:[#allocation2 + $0x10] sm:$0xff] %v1136
        %1153 = vst [vmem:[#allocation2 + $0x18] sm:$0xff] %v1137
        %1154 = vst [vmem:[#allocation2 + $0x20] sm:$0xff] %v1138
        %1155 = vst [vmem:[#allocation2 + $0x28] sm:$0xff] %v1139
        %1156 = vst [vmem:[#allocation2 + $0x30] sm:$0xff] %v1140
        %1157 = vst [vmem:[#allocation2 + $0x38] sm:$0xff] %v1141
        %1158 = vst [vmem:[#allocation2 + $0x40] sm:$0xff] %v1142
        %1159 = vst [vmem:[#allocation2 + $0x48] sm:$0xff] %v1143
        %1160 = vst [vmem:[#allocation2 + $0x50] sm:$0xff] %v1144
        %1161 = vst [vmem:[#allocation2 + $0x58] sm:$0xff] %v1145
        %1162 = vst [vmem:[#allocation2 + $0x60] sm:$0xff] %v1146
        %1163 = vst [vmem:[#allocation2 + $0x68] sm:$0xff] %v1147
        %1164 = vst [vmem:[#allocation2 + $0x70] sm:$0xff] %v1148
        %1165 = vst [vmem:[#allocation2 + $0x78] sm:$0xff] %v1149
        %v1166 = vld [vmem:[#allocation3] sm:$0xff]
        %v1167 = vld [vmem:[#allocation3 + $0x8] sm:$0xff]
        %v1168 = vld [vmem:[#allocation3 + $0x10] sm:$0xff]
        %v1169 = vld [vmem:[#allocation3 + $0x18] sm:$0xff]
        %v1170 = vld [vmem:[#allocation3 + $0x20] sm:$0xff]
        %v1171 = vld [vmem:[#allocation3 + $0x28] sm:$0xff]
        %v1172 = vld [vmem:[#allocation3 + $0x30] sm:$0xff]
        %v1173 = vld [vmem:[#allocation3 + $0x38] sm:$0xff]
        %v1174 = vld [vmem:[#allocation3 + $0x40] sm:$0xff]
        %v1175 = vld [vmem:[#allocation3 + $0x48] sm:$0xff]
        %v1176 = vld [vmem:[#allocation3 + $0x50] sm:$0xff]
        %v1177 = vld [vmem:[#allocation3 + $0x58] sm:$0xff]
        %v1178 = vld [vmem:[#allocation3 + $0x60] sm:$0xff]
        %v1179 = vld [vmem:[#allocation3 + $0x68] sm:$0xff]
        %v1180 = vld [vmem:[#allocation3 + $0x70] sm:$0xff]
        %v1181 = vld [vmem:[#allocation3 + $0x78] sm:$0xff]
        %1182 = vadd.xlane.f32.xlu0 %v941
        %v1183 = vpop.xlane.xlu0 %1182
        %1184 = vadd.xlane.f32.xlu0 %v942
        %v1185 = vpop.xlane.xlu0 %1184
        %1186 = vadd.xlane.f32.xlu0 %v943
        %v1187 = vpop.xlane.xlu0 %1186
        %1188 = vadd.xlane.f32.xlu0 %v944
        %v1189 = vpop.xlane.xlu0 %1188
        %1190 = vadd.xlane.f32.xlu0 %v945
        %v1191 = vpop.xlane.xlu0 %1190
        %1192 = vadd.xlane.f32.xlu0 %v946
        %v1193 = vpop.xlane.xlu0 %1192
        %1194 = vadd.xlane.f32.xlu0 %v947
        %v1195 = vpop.xlane.xlu0 %1194
        %1196 = vadd.xlane.f32.xlu0 %v948
        %v1197 = vpop.xlane.xlu0 %1196
        %1198 = vadd.xlane.f32.xlu0 %v949
        %v1199 = vpop.xlane.xlu0 %1198
        %1200 = vadd.xlane.f32.xlu0 %v950
        %v1201 = vpop.xlane.xlu0 %1200
        %1202 = vadd.xlane.f32.xlu0 %v951
        %v1203 = vpop.xlane.xlu0 %1202
        %1204 = vadd.xlane.f32.xlu0 %v952
        %v1205 = vpop.xlane.xlu0 %1204
        %1206 = vadd.xlane.f32.xlu0 %v953
        %v1207 = vpop.xlane.xlu0 %1206
        %1208 = vadd.xlane.f32.xlu0 %v954
        %v1209 = vpop.xlane.xlu0 %1208
        %1210 = vadd.xlane.f32.xlu0 %v955
        %v1211 = vpop.xlane.xlu0 %1210
        %1212 = vadd.xlane.f32.xlu0 %v956
        %v1213 = vpop.xlane.xlu0 %1212
        %v1214 = vadd.f32 %v1166, %v1183
        %v1215 = vadd.f32 %v1167, %v1185
        %v1216 = vadd.f32 %v1168, %v1187
        %v1217 = vadd.f32 %v1169, %v1189
        %v1218 = vadd.f32 %v1170, %v1191
        %v1219 = vadd.f32 %v1171, %v1193
        %v1220 = vadd.f32 %v1172, %v1195
        %v1221 = vadd.f32 %v1173, %v1197
        %v1222 = vadd.f32 %v1174, %v1199
        %v1223 = vadd.f32 %v1175, %v1201
        %v1224 = vadd.f32 %v1176, %v1203
        %v1225 = vadd.f32 %v1177, %v1205
        %v1226 = vadd.f32 %v1178, %v1207
        %v1227 = vadd.f32 %v1179, %v1209
        %v1228 = vadd.f32 %v1180, %v1211
        %v1229 = vadd.f32 %v1181, %v1213
        %vm1230 = vcmask 7168
        %1231 = vst.msk [vmem:[#allocation3] sm:$0xff] %vm1230, %v1214
        %1232 = vst.msk [vmem:[#allocation3 + $0x8] sm:$0xff] %vm1230, %v1215
        %1233 = vst.msk [vmem:[#allocation3 + $0x10] sm:$0xff] %vm1230, %v1216
        %1234 = vst.msk [vmem:[#allocation3 + $0x18] sm:$0xff] %vm1230, %v1217
        %1235 = vst.msk [vmem:[#allocation3 + $0x20] sm:$0xff] %vm1230, %v1218
        %1236 = vst.msk [vmem:[#allocation3 + $0x28] sm:$0xff] %vm1230, %v1219
        %1237 = vst.msk [vmem:[#allocation3 + $0x30] sm:$0xff] %vm1230, %v1220
        %1238 = vst.msk [vmem:[#allocation3 + $0x38] sm:$0xff] %vm1230, %v1221
        %1239 = vst.msk [vmem:[#allocation3 + $0x40] sm:$0xff] %vm1230, %v1222
        %1240 = vst.msk [vmem:[#allocation3 + $0x48] sm:$0xff] %vm1230, %v1223
        %1241 = vst.msk [vmem:[#allocation3 + $0x50] sm:$0xff] %vm1230, %v1224
        %1242 = vst.msk [vmem:[#allocation3 + $0x58] sm:$0xff] %vm1230, %v1225
        %1243 = vst.msk [vmem:[#allocation3 + $0x60] sm:$0xff] %vm1230, %v1226
        %1244 = vst.msk [vmem:[#allocation3 + $0x68] sm:$0xff] %vm1230, %v1227
        %1245 = vst.msk [vmem:[#allocation3 + $0x70] sm:$0xff] %vm1230, %v1228
        %1246 = vst.msk [vmem:[#allocation3 + $0x78] sm:$0xff] %vm1230, %v1229
        %p1247 = scmp.eq.s32.totalorder %s29, 1
        // Predicated region
        $region91: #{update_unit_forward.2} parent=81 // pred_check
          %p1248 = pneg %p1247
        $region92: #{update_unit_forward.2} parent=81 // pred_check_branch
          %1250 = sbr.rel (%p1248) target = $region94
        $region93: #{update_unit_forward.2} parent=81 // pred_region
          %v1251 = vld [vmem:[#allocation3] sm:$0xff]
          %v1252 = vld [vmem:[#allocation3 + $0x8] sm:$0xff]
          %v1253 = vld [vmem:[#allocation3 + $0x10] sm:$0xff]
          %v1254 = vld [vmem:[#allocation3 + $0x18] sm:$0xff]
          %v1255 = vld [vmem:[#allocation3 + $0x20] sm:$0xff]
          %v1256 = vld [vmem:[#allocation3 + $0x28] sm:$0xff]
          %v1257 = vld [vmem:[#allocation3 + $0x30] sm:$0xff]
          %v1258 = vld [vmem:[#allocation3 + $0x38] sm:$0xff]
          %v1259 = vld [vmem:[#allocation3 + $0x40] sm:$0xff]
          %v1260 = vld [vmem:[#allocation3 + $0x48] sm:$0xff]
          %v1261 = vld [vmem:[#allocation3 + $0x50] sm:$0xff]
          %v1262 = vld [vmem:[#allocation3 + $0x58] sm:$0xff]
          %v1263 = vld [vmem:[#allocation3 + $0x60] sm:$0xff]
          %v1264 = vld [vmem:[#allocation3 + $0x68] sm:$0xff]
          %v1265 = vld [vmem:[#allocation3 + $0x70] sm:$0xff]
          %v1266 = vld [vmem:[#allocation3 + $0x78] sm:$0xff]
          %vm1267 = vcmp.gt.f32.partialorder %v1251, 0.0
          %vm1268 = vcmp.gt.f32.partialorder %v1252, 0.0
          %vm1269 = vcmp.gt.f32.partialorder %v1253, 0.0
          %vm1270 = vcmp.gt.f32.partialorder %v1254, 0.0
          %vm1271 = vcmp.gt.f32.partialorder %v1255, 0.0
          %vm1272 = vcmp.gt.f32.partialorder %v1256, 0.0
          %vm1273 = vcmp.gt.f32.partialorder %v1257, 0.0
          %vm1274 = vcmp.gt.f32.partialorder %v1258, 0.0
          %vm1275 = vcmp.gt.f32.partialorder %v1259, 0.0
          %vm1276 = vcmp.gt.f32.partialorder %v1260, 0.0
          %vm1277 = vcmp.gt.f32.partialorder %v1261, 0.0
          %vm1278 = vcmp.gt.f32.partialorder %v1262, 0.0
          %vm1279 = vcmp.gt.f32.partialorder %v1263, 0.0
          %vm1280 = vcmp.gt.f32.partialorder %v1264, 0.0
          %vm1281 = vcmp.gt.f32.partialorder %v1265, 0.0
          %vm1282 = vcmp.gt.f32.partialorder %v1266, 0.0
          %v1283 = vsel %vm1267, 1, 0
          %v1284 = vsel %vm1268, 1, 0
          %v1285 = vsel %vm1269, 1, 0
          %v1286 = vsel %vm1270, 1, 0
          %v1287 = vsel %vm1271, 1, 0
          %v1288 = vsel %vm1272, 1, 0
          %v1289 = vsel %vm1273, 1, 0
          %v1290 = vsel %vm1274, 1, 0
          %v1291 = vsel %vm1275, 1, 0
          %v1292 = vsel %vm1276, 1, 0
          %v1293 = vsel %vm1277, 1, 0
          %v1294 = vsel %vm1278, 1, 0
          %v1295 = vsel %vm1279, 1, 0
          %v1296 = vsel %vm1280, 1, 0
          %v1297 = vsel %vm1281, 1, 0
          %v1298 = vsel %vm1282, 1, 0
          %v1299 = vcvt.s32.f32 %v1283
          %v1300 = vcvt.s32.f32 %v1284
          %v1301 = vcvt.s32.f32 %v1285
          %v1302 = vcvt.s32.f32 %v1286
          %v1303 = vcvt.s32.f32 %v1287
          %v1304 = vcvt.s32.f32 %v1288
          %v1305 = vcvt.s32.f32 %v1289
          %v1306 = vcvt.s32.f32 %v1290
          %v1307 = vcvt.s32.f32 %v1291
          %v1308 = vcvt.s32.f32 %v1292
          %v1309 = vcvt.s32.f32 %v1293
          %v1310 = vcvt.s32.f32 %v1294
          %v1311 = vcvt.s32.f32 %v1295
          %v1312 = vcvt.s32.f32 %v1296
          %v1313 = vcvt.s32.f32 %v1297
          %v1314 = vcvt.s32.f32 %v1298
          %v1315 = vld [vmem:[#allocation2] sm:$0xff]
          %v1316 = vld [vmem:[#allocation2 + $0x8] sm:$0xff]
          %v1317 = vld [vmem:[#allocation2 + $0x10] sm:$0xff]
          %v1318 = vld [vmem:[#allocation2 + $0x18] sm:$0xff]
          %v1319 = vld [vmem:[#allocation2 + $0x20] sm:$0xff]
          %v1320 = vld [vmem:[#allocation2 + $0x28] sm:$0xff]
          %v1321 = vld [vmem:[#allocation2 + $0x30] sm:$0xff]
          %v1322 = vld [vmem:[#allocation2 + $0x38] sm:$0xff]
          %v1323 = vld [vmem:[#allocation2 + $0x40] sm:$0xff]
          %v1324 = vld [vmem:[#allocation2 + $0x48] sm:$0xff]
          %v1325 = vld [vmem:[#allocation2 + $0x50] sm:$0xff]
          %v1326 = vld [vmem:[#allocation2 + $0x58] sm:$0xff]
          %v1327 = vld [vmem:[#allocation2 + $0x60] sm:$0xff]
          %v1328 = vld [vmem:[#allocation2 + $0x68] sm:$0xff]
          %v1329 = vld [vmem:[#allocation2 + $0x70] sm:$0xff]
          %v1330 = vld [vmem:[#allocation2 + $0x78] sm:$0xff]
          %v1331 = vmax.f32 %v1315, 0.0
          %v1332 = vmax.f32 %v1316, 0.0
          %v1333 = vmax.f32 %v1317, 0.0
          %v1334 = vmax.f32 %v1318, 0.0
          %v1335 = vmax.f32 %v1319, 0.0
          %v1336 = vmax.f32 %v1320, 0.0
          %v1337 = vmax.f32 %v1321, 0.0
          %v1338 = vmax.f32 %v1322, 0.0
          %v1339 = vmax.f32 %v1323, 0.0
          %v1340 = vmax.f32 %v1324, 0.0
          %v1341 = vmax.f32 %v1325, 0.0
          %v1342 = vmax.f32 %v1326, 0.0
          %v1343 = vmax.f32 %v1327, 0.0
          %v1344 = vmax.f32 %v1328, 0.0
          %v1345 = vmax.f32 %v1329, 0.0
          %v1346 = vmax.f32 %v1330, 0.0
          %1348 = vset.pattern.permute.xlu0 0
          %1349 = vperm.xlu0 %1348, %v1299
          %v1350 = vpop.permute.xlu0 %1349
          %1353 = vset.pattern.permute.xlu0 0
          %1354 = vperm.xlu0 %1353, %v1300
          %v1355 = vpop.permute.xlu0 %1354
          %1358 = vset.pattern.permute.xlu0 0
          %1359 = vperm.xlu0 %1358, %v1301
          %v1360 = vpop.permute.xlu0 %1359
          %1363 = vset.pattern.permute.xlu0 0
          %1364 = vperm.xlu0 %1363, %v1302
          %v1365 = vpop.permute.xlu0 %1364
          %1368 = vset.pattern.permute.xlu0 0
          %1369 = vperm.xlu0 %1368, %v1303
          %v1370 = vpop.permute.xlu0 %1369
          %1373 = vset.pattern.permute.xlu0 0
          %1374 = vperm.xlu0 %1373, %v1304
          %v1375 = vpop.permute.xlu0 %1374
          %1378 = vset.pattern.permute.xlu0 0
          %1379 = vperm.xlu0 %1378, %v1305
          %v1380 = vpop.permute.xlu0 %1379
          %1383 = vset.pattern.permute.xlu0 0
          %1384 = vperm.xlu0 %1383, %v1306
          %v1385 = vpop.permute.xlu0 %1384
          %1388 = vset.pattern.permute.xlu0 0
          %1389 = vperm.xlu0 %1388, %v1307
          %v1390 = vpop.permute.xlu0 %1389
          %1393 = vset.pattern.permute.xlu0 0
          %1394 = vperm.xlu0 %1393, %v1308
          %v1395 = vpop.permute.xlu0 %1394
          %1398 = vset.pattern.permute.xlu0 0
          %1399 = vperm.xlu0 %1398, %v1309
          %v1400 = vpop.permute.xlu0 %1399
          %1403 = vset.pattern.permute.xlu0 0
          %1404 = vperm.xlu0 %1403, %v1310
          %v1405 = vpop.permute.xlu0 %1404
          %1408 = vset.pattern.permute.xlu0 0
          %1409 = vperm.xlu0 %1408, %v1311
          %v1410 = vpop.permute.xlu0 %1409
          %1413 = vset.pattern.permute.xlu0 0
          %1414 = vperm.xlu0 %1413, %v1312
          %v1415 = vpop.permute.xlu0 %1414
          %1418 = vset.pattern.permute.xlu0 0
          %1419 = vperm.xlu0 %1418, %v1313
          %v1420 = vpop.permute.xlu0 %1419
          %1423 = vset.pattern.permute.xlu0 0
          %1424 = vperm.xlu0 %1423, %v1314
          %v1425 = vpop.permute.xlu0 %1424
          %v1427 = vmul.f32 %v1331, %v1350
          %v1428 = vmul.f32 %v1332, %v1355
          %v1429 = vmul.f32 %v1333, %v1360
          %v1430 = vmul.f32 %v1334, %v1365
          %v1431 = vmul.f32 %v1335, %v1370
          %v1432 = vmul.f32 %v1336, %v1375
          %v1433 = vmul.f32 %v1337, %v1380
          %v1434 = vmul.f32 %v1338, %v1385
          %v1435 = vmul.f32 %v1339, %v1390
          %v1436 = vmul.f32 %v1340, %v1395
          %v1437 = vmul.f32 %v1341, %v1400
          %v1438 = vmul.f32 %v1342, %v1405
          %v1439 = vmul.f32 %v1343, %v1410
          %v1440 = vmul.f32 %v1344, %v1415
          %v1441 = vmul.f32 %v1345, %v1420
          %v1442 = vmul.f32 %v1346, %v1425
          %v1443 = vld [vmem:[%s505] sm:$0xff]
          %v1444 = vld [vmem:[%s505 + $0x8] sm:$0xff]
          %v1445 = vld [vmem:[%s505 + $0x10] sm:$0xff]
          %v1446 = vld [vmem:[%s505 + $0x18] sm:$0xff]
          %v1447 = vld [vmem:[%s505 + $0x20] sm:$0xff]
          %v1448 = vld [vmem:[%s505 + $0x28] sm:$0xff]
          %v1449 = vld [vmem:[%s505 + $0x30] sm:$0xff]
          %v1450 = vld [vmem:[%s505 + $0x38] sm:$0xff]
          %v1451 = vld [vmem:[%s505 + $0x40] sm:$0xff]
          %v1452 = vld [vmem:[%s505 + $0x48] sm:$0xff]
          %v1453 = vld [vmem:[%s505 + $0x50] sm:$0xff]
          %v1454 = vld [vmem:[%s505 + $0x58] sm:$0xff]
          %v1455 = vld [vmem:[%s505 + $0x60] sm:$0xff]
          %v1456 = vld [vmem:[%s505 + $0x68] sm:$0xff]
          %v1457 = vld [vmem:[%s505 + $0x70] sm:$0xff]
          %v1458 = vld [vmem:[%s505 + $0x78] sm:$0xff]
          %v1459 = vadd.f32 %v1443, %v1427
          %v1460 = vadd.f32 %v1444, %v1428
          %v1461 = vadd.f32 %v1445, %v1429
          %v1462 = vadd.f32 %v1446, %v1430
          %v1463 = vadd.f32 %v1447, %v1431
          %v1464 = vadd.f32 %v1448, %v1432
          %v1465 = vadd.f32 %v1449, %v1433
          %v1466 = vadd.f32 %v1450, %v1434
          %v1467 = vadd.f32 %v1451, %v1435
          %v1468 = vadd.f32 %v1452, %v1436
          %v1469 = vadd.f32 %v1453, %v1437
          %v1470 = vadd.f32 %v1454, %v1438
          %v1471 = vadd.f32 %v1455, %v1439
          %v1472 = vadd.f32 %v1456, %v1440
          %v1473 = vadd.f32 %v1457, %v1441
          %v1474 = vadd.f32 %v1458, %v1442
          %1475 = vst [vmem:[%s490] sm:$0xff] %v1459
          %1476 = vst [vmem:[%s490 + $0x8] sm:$0xff] %v1460
          %1477 = vst [vmem:[%s490 + $0x10] sm:$0xff] %v1461
          %1478 = vst [vmem:[%s490 + $0x18] sm:$0xff] %v1462
          %1479 = vst [vmem:[%s490 + $0x20] sm:$0xff] %v1463
          %1480 = vst [vmem:[%s490 + $0x28] sm:$0xff] %v1464
          %1481 = vst [vmem:[%s490 + $0x30] sm:$0xff] %v1465
          %1482 = vst [vmem:[%s490 + $0x38] sm:$0xff] %v1466
          %1483 = vst [vmem:[%s490 + $0x40] sm:$0xff] %v1467
          %1484 = vst [vmem:[%s490 + $0x48] sm:$0xff] %v1468
          %1485 = vst [vmem:[%s490 + $0x50] sm:$0xff] %v1469
          %1486 = vst [vmem:[%s490 + $0x58] sm:$0xff] %v1470
          %1487 = vst [vmem:[%s490 + $0x60] sm:$0xff] %v1471
          %1488 = vst [vmem:[%s490 + $0x68] sm:$0xff] %v1472
          %1489 = vst [vmem:[%s490 + $0x70] sm:$0xff] %v1473
          %1490 = vst [vmem:[%s490 + $0x78] sm:$0xff] %v1474
          %v1491 = vmul.f32 %v1427, %v1427
          %v1492 = vmul.f32 %v1428, %v1428
          %v1493 = vmul.f32 %v1429, %v1429
          %v1494 = vmul.f32 %v1430, %v1430
          %v1495 = vmul.f32 %v1431, %v1431
          %v1496 = vmul.f32 %v1432, %v1432
          %v1497 = vmul.f32 %v1433, %v1433
          %v1498 = vmul.f32 %v1434, %v1434
          %v1499 = vmul.f32 %v1435, %v1435
          %v1500 = vmul.f32 %v1436, %v1436
          %v1501 = vmul.f32 %v1437, %v1437
          %v1502 = vmul.f32 %v1438, %v1438
          %v1503 = vmul.f32 %v1439, %v1439
          %v1504 = vmul.f32 %v1440, %v1440
          %v1505 = vmul.f32 %v1441, %v1441
          %v1506 = vmul.f32 %v1442, %v1442
          %v1507 = vadd.f32 %v1491, %v1492
          %v1508 = vadd.f32 %v1507, %v1493
          %v1509 = vadd.f32 %v1508, %v1494
          %v1510 = vadd.f32 %v1509, %v1495
          %v1511 = vadd.f32 %v1510, %v1496
          %v1512 = vadd.f32 %v1511, %v1497
          %v1513 = vadd.f32 %v1512, %v1498
          %v1514 = vadd.f32 %v1513, %v1499
          %v1515 = vadd.f32 %v1514, %v1500
          %v1516 = vadd.f32 %v1515, %v1501
          %v1517 = vadd.f32 %v1516, %v1502
          %v1518 = vadd.f32 %v1517, %v1503
          %v1519 = vadd.f32 %v1518, %v1504
          %v1520 = vadd.f32 %v1519, %v1505
          %v1521 = vadd.f32 %v1520, %v1506
          %1522 = vadd.xlane.f32.xlu0 %v1521
          %v1523 = vpop.xlane.xlu0 %1522
          %v1524 = vrot.slane %v1523, 4
          %v1525 = vadd.f32 %v1523, %v1524
          %v1526 = vrot.slane %v1525, 2
          %v1527 = vadd.f32 %v1525, %v1526
          %v1528 = vrot.slane %v1527, 1
          %v1529 = vadd.f32 %v1527, %v1528
          %s1530 = vtos %v1529
          %v1531 = vstv %s1530
          %1532 = vst [vmem:[%s523] sm:$0x1] %v1531
          %v1533 = vsel %vm1230, %v1299, 0.0
          %v1534 = vsel %vm1230, %v1300, 0.0
          %v1535 = vadd.f32 %v1533, %v1534
          %v1536 = vsel %vm1230, %v1301, 0.0
          %v1537 = vadd.f32 %v1535, %v1536
          %v1538 = vsel %vm1230, %v1302, 0.0
          %v1539 = vadd.f32 %v1537, %v1538
          %v1540 = vsel %vm1230, %v1303, 0.0
          %v1541 = vadd.f32 %v1539, %v1540
          %v1542 = vsel %vm1230, %v1304, 0.0
          %v1543 = vadd.f32 %v1541, %v1542
          %v1544 = vsel %vm1230, %v1305, 0.0
          %v1545 = vadd.f32 %v1543, %v1544
          %v1546 = vsel %vm1230, %v1306, 0.0
          %v1547 = vadd.f32 %v1545, %v1546
          %v1548 = vsel %vm1230, %v1307, 0.0
          %v1549 = vadd.f32 %v1547, %v1548
          %v1550 = vsel %vm1230, %v1308, 0.0
          %v1551 = vadd.f32 %v1549, %v1550
          %v1552 = vsel %vm1230, %v1309, 0.0
          %v1553 = vadd.f32 %v1551, %v1552
          %v1554 = vsel %vm1230, %v1310, 0.0
          %v1555 = vadd.f32 %v1553, %v1554
          %v1556 = vsel %vm1230, %v1311, 0.0
          %v1557 = vadd.f32 %v1555, %v1556
          %v1558 = vsel %vm1230, %v1312, 0.0
          %v1559 = vadd.f32 %v1557, %v1558
          %v1560 = vsel %vm1230, %v1313, 0.0
          %v1561 = vadd.f32 %v1559, %v1560
          %v1562 = vsel %vm1230, %v1314, 0.0
          %v1563 = vadd.f32 %v1561, %v1562
          %1564 = vadd.xlane.f32.xlu0 %v1563
          %v1565 = vpop.xlane.xlu0 %1564
          %v1566 = vrot.slane %v1565, 4
          %v1567 = vadd.f32 %v1565, %v1566
          %v1568 = vrot.slane %v1567, 2
          %v1569 = vadd.f32 %v1567, %v1568
          %v1570 = vrot.slane %v1569, 1
          %v1571 = vadd.f32 %v1569, %v1570
          %s1572 = vtos %v1571
          %v1573 = vstv %s1572
          %1574 = vst [vmem:[%s526] sm:$0x1] %v1573
        $region94: #{update_unit_forward.2} parent=81 // pred_fallthru
          _
        %s1575 = sand.u32 %s213, 1
        %s1576 = scalar_lea.sflag [#allocation6], %s1575
        %s1577 = sand.u32 %s213, 1
        %s1578 = smul.addr %s1577, 128
        %s1579 = scalar_lea.vmem [#allocation5], %s1578
        %p1580 = scmp.lt.s32.totalorder %s28, 2
        %s1581 = scalar_select %p1580, %s28, 2
        %s1582 = scalar_lea.vmem %s8, %s1581
        %p1583 = scmp.lt.s32.totalorder %s28, 2
        %s1584 = scalar_select %p1583, %s28, 2
        %s1585 = scalar_lea.vmem %s9, %s1584
        // Predicated region
        $region95: #{update_unit_forward.2} parent=81 // pred_check
          %p1586 = pneg %p223
        $region96: #{update_unit_forward.2} parent=81 // pred_check_branch
          %1588 = sbr.rel (%p1586) target = $region98
        $region97: #{update_unit_forward.2} parent=81 // pred_region
          %s1589 = smul.u32 16, %s28
          %s1591 = ssub.s32 2048, 2048
          %1592 = vsyncadd %s1576, %s1591
          %s1593 = smul.addr %s1589, 128
          %s1594 = scalar_lea.hbm %s7, %s1593
          %s1595 = sshll.u32 %s1579, 4
          %s1596 = int_to_ptr.vmem [resolvable:$true] %s1595
          %1601 = dma.vmem_to_hbm [thread:$0]  %s1596, 2048, %s1594, %s1576, 128, 128, 8
        $region98: #{update_unit_forward.2} parent=81 // pred_fallthru
          _
        // Predicated region
        $region99: #{update_unit_forward.2} parent=81 // pred_check
          %p1602 = pneg %p249
        $region100: #{update_unit_forward.2} parent=81 // pred_check_branch
          %1604 = sbr.rel (%p1602) target = $region102
        $region101: #{update_unit_forward.2} parent=81 // pred_region
          _
        $region102: #{update_unit_forward.2} parent=81 // pred_fallthru
          _
        // Predicated region
        $region103: #{update_unit_forward.2} parent=81 // pred_check
          %p1605 = pneg %p275
        $region104: #{update_unit_forward.2} parent=81 // pred_check_branch
          %1607 = sbr.rel (%p1605) target = $region106
        $region105: #{update_unit_forward.2} parent=81 // pred_region
          _
        $region106: #{update_unit_forward.2} parent=81 // pred_fallthru
          _
      $region82: #{update_unit_forward.2} parent=5 // pred_fallthru
        _
      %p1608 = scmp.le.s32.totalorder 2, %s19
      // Predicated region
      $region107: #{update_unit_forward.2} parent=5 // pred_check
        %p1609 = pneg %p1608
      $region108: #{update_unit_forward.2} parent=5 // pred_check_branch
        %1611 = sbr.rel (%p1609) target = $region110
      $region109: #{update_unit_forward.2} parent=5 // pred_region
        %s1612 = ssub.s32 %s19, 2
        // Predicated region
        $region111: #{update_unit_forward.2} parent=109 // pred_check
          %p1613 = pneg %p229
        $region112: #{update_unit_forward.2} parent=109 // pred_check_branch
          %1615 = sbr.rel (%p1613) target = $region114
        $region113: #{update_unit_forward.2} parent=109 // pred_region
          %s1616 = sand.u32 %s214, 1
          %s1617 = scalar_lea.sflag [#allocation6], %s1616
          %s1618 = sand.u32 %s214, 1
          %s1619 = smul.addr %s1618, 128
          %s1620 = scalar_lea.vmem [#allocation5], %s1619
          %1621 = dma.done %s1617, 2048
        $region114: #{update_unit_forward.2} parent=109 // pred_fallthru
          _
        // Predicated region
        $region115: #{update_unit_forward.2} parent=109 // pred_check
          %p1622 = pneg %p255
        $region116: #{update_unit_forward.2} parent=109 // pred_check_branch
          %1624 = sbr.rel (%p1622) target = $region118
        $region117: #{update_unit_forward.2} parent=109 // pred_region
          %p1625 = scmp.lt.s32.totalorder %s30, 2
          %s1626 = scalar_select %p1625, %s30, 2
          %s1627 = scalar_lea.vmem %s8, %s1626
        $region118: #{update_unit_forward.2} parent=109 // pred_fallthru
          _
        // Predicated region
        $region119: #{update_unit_forward.2} parent=109 // pred_check
          %p1628 = pneg %p281
        $region120: #{update_unit_forward.2} parent=109 // pred_check_branch
          %1630 = sbr.rel (%p1628) target = $region122
        $region121: #{update_unit_forward.2} parent=109 // pred_region
          %p1631 = scmp.lt.s32.totalorder %s30, 2
          %s1632 = scalar_select %p1631, %s30, 2
          %s1633 = scalar_lea.vmem %s9, %s1632
        $region122: #{update_unit_forward.2} parent=109 // pred_fallthru
          _
      $region110: #{update_unit_forward.2} parent=5 // pred_fallthru
        _
    $region6: #{update_unit_forward.2} parent=1 // loop_footer
      %s23 = sadd.s32 1, %s19
    $region7: #{update_unit_forward.2} parent=1 // loop_footer_branch
      %18 = sbr.rel target = $region3
    $region8: #{update_unit_forward.2} parent=1 // loop_exit
      _
    %1634 = vsyncpa [#allocation6], 1
    %s1635 = scalar_lea.sflag [#allocation6], 1
    %1636 = vsyncpa %s1635, 1

</llo_original>
